<compile_context>
chip_gen: v7x
topology: tpu7x:2x2x1
jax: 0.10.0
libtpu: 0.0.40
codegen_flags: <defaults>
</compile_context>

<pallas_src>
import jax
import jax.numpy as jnp
import numpy as np
from jax.experimental import pallas as pl
from jax.experimental.pallas import tpu as pltpu


_VMEM_BUDGET_BYTES = 24 * 1024 * 1024   # target per-step working set
_VMEM_LIMIT_BYTES = 48 * 1024 * 1024    # scoped VMEM limit (v7x physical = 64 MiB)


def _round_up(x, n):
    return ((x + n - 1) // n) * n


# --------------------------------------------------------------------------
# Exact (erf-based) GELU matching torch.nn.GELU() default.
# --------------------------------------------------------------------------
def _gelu_exact(x):
    z = x * jnp.float32(0.7071067811865476)            # x / sqrt(2)
    a = jnp.abs(z)
    t = 1.0 / (1.0 + jnp.float32(0.3275911) * a)
    poly = t * (jnp.float32(0.254829592)
         + t * (jnp.float32(-0.284496736)
         + t * (jnp.float32(1.421413741)
         + t * (jnp.float32(-1.453152027)
         + t *  jnp.float32(1.061405429)))))
    erf_abs = 1.0 - poly * jnp.exp(-a * a)              # erf(|z|), A&S 7.1.26
    erf_z = jnp.where(z >= 0, erf_abs, -erf_abs)
    return 0.5 * x * (1.0 + erf_z)


# --------------------------------------------------------------------------
# Kernel: one (rm)-row block of tokens x one hidden-dim tile through
# fc1 -> GELU -> partial fc2, accumulated in an f32 VMEM scratch.
# --------------------------------------------------------------------------
def mlp_kernel(x_ref, w1_ref, b1_ref, w2_ref, b2_ref, o_ref, acc_ref):
    h_idx = pl.program_id(1)

    @pl.when(h_idx == 0)
    def _():
        acc_ref[...] = jnp.zeros_like(acc_ref)

    x = x_ref[...]                                                      # (rm, c_in)
    h = jnp.dot(x, w1_ref[...], preferred_element_type=jnp.float32)    # MXU
    h = h + b1_ref[...]
    h = _gelu_exact(h)                                                  # VPU / EUP
    # TODO(synk): nn.Dropout(drop=0.0) is identity at inference and is omitted.
    acc_ref[...] += jnp.dot(h, w2_ref[...],
                            preferred_element_type=jnp.float32)        # MXU

    @pl.when(h_idx == pl.num_programs(1) - 1)
    def _():
        o_ref[...] = (acc_ref[...] + b2_ref[...]).astype(o_ref.dtype)


# --------------------------------------------------------------------------
# Tile selection: large row blocks (but keep the row grid >= 2 for v7x's two
# TensorCores) and an exact-divisor hidden tile that keeps the per-step
# working set under the VMEM budget.
# --------------------------------------------------------------------------
def _vmem_bytes(rm, c_in, th, c_out):
    f = 4  # f32
    x_blk = 2 * rm * c_in * f          # double-buffered input rows
    o_blk = 2 * rm * c_out * f         # double-buffered output rows
    w1 = 2 * c_in * th * f
    w2 = 2 * th * c_out * f
    b = 2 * (th + c_out) * f
    acc = rm * c_out * f
    hid = 2 * rm * th * f              # fc1 output + GELU temporaries
    return x_blk + o_blk + w1 + w2 + b + acc + hid


def _pick_tiles(m, c_in, hidden, c_out, block_rows):
    # Row block: as big as possible, capped so there are >= 2 row-grid steps.
    rm = min(block_rows, max(8, _round_up(pl.cdiv(m, 2), 8)))
    rm = min(rm, _round_up(m, 8))

    # Hidden tile: keep the whole hidden dim resident if it fits; otherwise
    # use the largest 128-multiple exact divisor of `hidden` that fits.
    th = hidden
    if _vmem_bytes(rm, c_in, th, c_out) > _VMEM_BUDGET_BYTES and hidden % 128 == 0:
        t = hidden // 128
        for d in sorted({d for d in range(1, t + 1) if t % d == 0}, reverse=True):
            th = d * 128
            if _vmem_bytes(rm, c_in, th, c_out) <= _VMEM_BUDGET_BYTES:
                break

    # Last resort: shrink the row block until the working set fits.
    while _vmem_bytes(rm, c_in, th, c_out) > _VMEM_BUDGET_BYTES and rm > 8:
        rm = max(8, _round_up(rm // 2, 8))
    return rm, th


def mlp_forward(x, w1, b1, w2, b2, *, block_rows=512):
    """y = GELU(x @ w1 + b1) @ w2 + b2 over the last axis of x.

    Weights are stored pre-transposed relative to nn.Linear (w1 = W1.T, etc.)
    and biases as (1, dim) rows, so the kernel does plain row-major matmuls.
    """
    orig_shape = x.shape
    c_in = orig_shape[-1]
    hidden = w1.shape[1]
    c_out = w2.shape[1]

    x2 = x.reshape(-1, c_in)                 # flatten leading dims (x.view(-1, C))
    m = x2.shape[0]

    rm, th = _pick_tiles(m, c_in, hidden, c_out, block_rows)
    grid = (pl.cdiv(m, rm), hidden // th)    # th always divides hidden exactly

    y2 = pl.pallas_call(
        mlp_kernel,
        out_shape=jax.ShapeDtypeStruct((m, c_out), x.dtype),
        grid=grid,
        in_specs=[
            pl.BlockSpec((rm, c_in), lambda i, h: (i, 0)),      # token rows
            pl.BlockSpec((c_in, th), lambda i, h: (0, h)),      # W1^T tile
            pl.BlockSpec((1, th), lambda i, h: (0, h)),         # b1 tile
            pl.BlockSpec((th, c_out), lambda i, h: (h, 0)),     # W2^T tile
            pl.BlockSpec((1, c_out), lambda i, h: (0, 0)),      # b2
        ],
        out_specs=pl.BlockSpec((rm, c_out), lambda i, h: (i, 0)),
        scratch_shapes=[pltpu.VMEM((rm, c_out), jnp.float32)],
        compiler_params=pltpu.CompilerParams(
            dimension_semantics=("parallel", "arbitrary"),
            vmem_limit_bytes=_VMEM_LIMIT_BYTES),
    )(x2, w1, b1, w2, b2)

    return y2.reshape(*orig_shape[:-1], c_out)


# --------------------------------------------------------------------------
# Plain-JAX reference mirroring the PyTorch forward (exact GELU via erf).
# --------------------------------------------------------------------------
def reference(x, w1, b1, w2, b2):
    h = x @ w1 + b1
    h = jax.nn.gelu(h, approximate=False)     # torch.nn.GELU() default (erf)
    return h @ w2 + b2


if __name__ == "__main__":
    # Small shapes consistent with the module: tokens (B=2, N=512) of width
    # in_features=32, hidden_features=128, out_features=32 -> M = 1024 rows,
    # i.e. two 512-row grid steps (both v7x TensorCores get one) and a single
    # hidden tile (hidden fits VMEM comfortably).
    B, N, C_in, C_hidden, C_out = 2, 512, 32, 128, 32

    key = jax.random.PRNGKey(0)
    kx, k1w, k1b, k2w, k2b = jax.random.split(key, 5)

    x = jax.random.normal(kx, (B, N, C_in), dtype=jnp.float32)

    # Deterministic synthetic parameters (stored pre-transposed: y = x @ W^T).
    w1 = 0.05 * jax.random.normal(k1w, (C_in, C_hidden), dtype=jnp.float32)
    b1 = 0.05 * jax.random.normal(k1b, (1, C_hidden), dtype=jnp.float32)
    w2 = 0.05 * jax.random.normal(k2w, (C_hidden, C_out), dtype=jnp.float32)
    b2 = 0.05 * jax.random.normal(k2b, (1, C_out), dtype=jnp.float32)

    y = mlp_forward(x, w1, b1, w2, b2)
    y = jax.block_until_ready(y)

    y_ref = reference(x, w1, b1, w2, b2)
    np.testing.assert_allclose(np.asarray(y), np.asarray(y_ref),
                               rtol=1e-4, atol=1e-4)

    print("KERNEL_OK")
</pallas_src>

<mosaic_0001>
module attributes {stable_mosaic.version = 11 : i64} {
  func.func @mlp_kernel(%arg0: i32, %arg1: i32, %arg2: memref<512x32xf32, #tpu.memory_space<vmem>>, %arg3: memref<32x128xf32, #tpu.memory_space<vmem>>, %arg4: memref<1x128xf32, #tpu.memory_space<vmem>>, %arg5: memref<128x32xf32, #tpu.memory_space<vmem>>, %arg6: memref<1x32xf32, #tpu.memory_space<vmem>>, %arg7: memref<512x32xf32, #tpu.memory_space<vmem>>, %arg8: memref<512x32xf32, #tpu.memory_space<vmem>>) attributes {dimension_semantics = [#tpu.dimension_semantics<parallel>, #tpu.dimension_semantics<arbitrary>], iteration_bounds = array<i64: 2, 1>, scalar_prefetch = 0 : i64, scratch_operands = 1 : i64, tpu.core_type = #tpu.core_type<tc>, window_params = [{transform_indices = @transform_0, window_bounds = array<i64: 512, 32>}, {transform_indices = @transform_1, window_bounds = array<i64: 32, 128>}, {transform_indices = @transform_2, window_bounds = array<i64: 1, 128>}, {transform_indices = @transform_3, window_bounds = array<i64: 128, 32>}, {pipeline_mode = #tpu.pipeline_mode<synchronous>, transform_indices = @transform_4, window_bounds = array<i64: 1, 32>}, {transform_indices = @transform_5, window_bounds = array<i64: 512, 32>}]} {
    %c0_i32 = arith.constant 0 : i32
    %0 = arith.cmpi eq, %arg1, %c0_i32 : i32
    %1 = arith.extui %0 : i1 to i32
    %c0_i32_0 = arith.constant 0 : i32
    %2 = arith.cmpi ne, %1, %c0_i32_0 : i32
    scf.if %2 {
      %cst_30 = arith.constant 0.000000e+00 : f32
      %57 = vector.broadcast %cst_30 : f32 to vector<512x32xf32>
      %c0_31 = arith.constant 0 : index
      %c0_32 = arith.constant 0 : index
      %58 = vector.load %arg8[%c0_31, %c0_32] : memref<512x32xf32, #tpu.memory_space<vmem>>, vector<512x32xf32>
      tpu.vector_store %arg8[%c0_31, %c0_32], %57 {strides = array<i32>} : memref<512x32xf32, #tpu.memory_space<vmem>>, vector<512x32xf32>,
    } else {
    }
    %c0 = arith.constant 0 : index
    %c0_1 = arith.constant 0 : index
    %3 = vector.load %arg2[%c0, %c0_1] : memref<512x32xf32, #tpu.memory_space<vmem>>, vector<512x32xf32>
    %c0_2 = arith.constant 0 : index
    %c0_3 = arith.constant 0 : index
    %4 = vector.load %arg3[%c0_2, %c0_3] : memref<32x128xf32, #tpu.memory_space<vmem>>, vector<32x128xf32>
    %cst = arith.constant dense<0.000000e+00> : vector<512x128xf32>
    %5 = tpu.matmul %3, %4, %cst {dimension_numbers = #tpu.dot_dimension_numbers<[1], [0], [0], [1], [0, 0, 1, 1], [], []>} : vector<512x32xf32>, vector<32x128xf32>, vector<512x128xf32> -> vector<512x128xf32>
    %c0_4 = arith.constant 0 : index
    %c0_5 = arith.constant 0 : index
    %6 = vector.load %arg4[%c0_4, %c0_5] : memref<1x128xf32, #tpu.memory_space<vmem>>, vector<1x128xf32>
    %7 = vector.broadcast %6 : vector<1x128xf32> to vector<512x128xf32>
    %8 = arith.addf %5, %7 : vector<512x128xf32>
    %cst_6 = arith.constant 0.707106769 : f32
    %9 = vector.broadcast %cst_6 : f32 to vector<512x128xf32>
    %10 = arith.mulf %8, %9 : vector<512x128xf32>
    %11 = math.absf %10 : vector<512x128xf32>
    %cst_7 = arith.constant 0.327591091 : f32
    %12 = vector.broadcast %cst_7 : f32 to vector<512x128xf32>
    %13 = arith.mulf %12, %11 : vector<512x128xf32>
    %cst_8 = arith.constant 1.000000e+00 : f32
    %14 = vector.broadcast %cst_8 : f32 to vector<512x128xf32>
    %15 = arith.addf %14, %13 : vector<512x128xf32>
    %cst_9 = arith.constant 1.000000e+00 : f32
    %16 = vector.broadcast %cst_9 : f32 to vector<512x128xf32>
    %17 = arith.divf %16, %15 : vector<512x128xf32>
    %cst_10 = arith.constant 1.06140542 : f32
    %18 = vector.broadcast %cst_10 : f32 to vector<512x128xf32>
    %19 = arith.mulf %17, %18 : vector<512x128xf32>
    %cst_11 = arith.constant -1.45315206 : f32
    %20 = vector.broadcast %cst_11 : f32 to vector<512x128xf32>
    %21 = arith.addf %20, %19 : vector<512x128xf32>
    %22 = arith.mulf %17, %21 : vector<512x128xf32>
    %cst_12 = arith.constant 1.42141378 : f32
    %23 = vector.broadcast %cst_12 : f32 to vector<512x128xf32>
    %24 = arith.addf %23, %22 : vector<512x128xf32>
    %25 = arith.mulf %17, %24 : vector<512x128xf32>
    %cst_13 = arith.constant -0.284496725 : f32
    %26 = vector.broadcast %cst_13 : f32 to vector<512x128xf32>
    %27 = arith.addf %26, %25 : vector<512x128xf32>
    %28 = arith.mulf %17, %27 : vector<512x128xf32>
    %cst_14 = arith.constant 0.254829586 : f32
    %29 = vector.broadcast %cst_14 : f32 to vector<512x128xf32>
    %30 = arith.addf %29, %28 : vector<512x128xf32>
    %31 = arith.mulf %17, %30 : vector<512x128xf32>
    %cst_15 = arith.constant 0.000000e+00 : f32
    %32 = vector.broadcast %cst_15 : f32 to vector<512x128xf32>
    %33 = arith.subf %32, %11 : vector<512x128xf32>
    %34 = arith.mulf %33, %11 : vector<512x128xf32>
    %35 = math.exp %34 : vector<512x128xf32>
    %36 = arith.mulf %31, %35 : vector<512x128xf32>
    %cst_16 = arith.constant 1.000000e+00 : f32
    %37 = vector.broadcast %cst_16 : f32 to vector<512x128xf32>
    %38 = arith.subf %37, %36 : vector<512x128xf32>
    %cst_17 = arith.constant 0.000000e+00 : f32
    %39 = vector.broadcast %cst_17 : f32 to vector<512x128xf32>
    %40 = arith.cmpf oge, %10, %39 : vector<512x128xf32>
    %cst_18 = arith.constant 0.000000e+00 : f32
    %41 = vector.broadcast %cst_18 : f32 to vector<512x128xf32>
    %42 = arith.subf %41, %38 : vector<512x128xf32>
    %43 = arith.select %40, %38, %42 : vector<512x128xi1>, vector<512x128xf32>
    %cst_19 = arith.constant 5.000000e-01 : f32
    %44 = vector.broadcast %cst_19 : f32 to vector<512x128xf32>
    %45 = arith.mulf %44, %8 : vector<512x128xf32>
    %cst_20 = arith.constant 1.000000e+00 : f32
    %46 = vector.broadcast %cst_20 : f32 to vector<512x128xf32>
    %47 = arith.addf %46, %43 : vector<512x128xf32>
    %48 = arith.mulf %45, %47 : vector<512x128xf32>
    %c0_21 = arith.constant 0 : index
    %c0_22 = arith.constant 0 : index
    %49 = vector.load %arg8[%c0_21, %c0_22] : memref<512x32xf32, #tpu.memory_space<vmem>>, vector<512x32xf32>
    %c0_23 = arith.constant 0 : index
    %c0_24 = arith.constant 0 : index
    %50 = vector.load %arg5[%c0_23, %c0_24] : memref<128x32xf32, #tpu.memory_space<vmem>>, vector<128x32xf32>
    %cst_25 = arith.constant dense<0.000000e+00> : vector<512x32xf32>
    %51 = tpu.matmul %48, %50, %cst_25 {dimension_numbers = #tpu.dot_dimension_numbers<[1], [0], [0], [1], [0, 0, 1, 1], [], []>} : vector<512x128xf32>, vector<128x32xf32>, vector<512x32xf32> -> vector<512x32xf32>
    %52 = arith.addf %49, %51 : vector<512x32xf32>
    %c0_26 = arith.constant 0 : index
    %c0_27 = arith.constant 0 : index
    %53 = vector.load %arg8[%c0_26, %c0_27] : memref<512x32xf32, #tpu.memory_space<vmem>>, vector<512x32xf32>
    tpu.vector_store %arg8[%c0_26, %c0_27], %52 {strides = array<i32>} : memref<512x32xf32, #tpu.memory_space<vmem>>, vector<512x32xf32>,
    %c0_i32_28 = arith.constant 0 : i32
    %54 = arith.cmpi eq, %arg1, %c0_i32_28 : i32
    %55 = arith.extui %54 : i1 to i32
    %c0_i32_29 = arith.constant 0 : i32
    %56 = arith.cmpi ne, %55, %c0_i32_29 : i32
    scf.if %56 {
      %c0_30 = arith.constant 0 : index
      %c0_31 = arith.constant 0 : index
      %57 = vector.load %arg8[%c0_30, %c0_31] : memref<512x32xf32, #tpu.memory_space<vmem>>, vector<512x32xf32>
      %c0_32 = arith.constant 0 : index
      %c0_33 = arith.constant 0 : index
      %58 = vector.load %arg6[%c0_32, %c0_33] : memref<1x32xf32, #tpu.memory_space<vmem>>, vector<1x32xf32>
      %59 = vector.broadcast %58 : vector<1x32xf32> to vector<512x32xf32>
      %60 = arith.addf %57, %59 : vector<512x32xf32>
      %c0_34 = arith.constant 0 : index
      %c0_35 = arith.constant 0 : index
      %61 = vector.load %arg7[%c0_34, %c0_35] : memref<512x32xf32, #tpu.memory_space<vmem>>, vector<512x32xf32>
      tpu.vector_store %arg7[%c0_34, %c0_35], %60 {strides = array<i32>} : memref<512x32xf32, #tpu.memory_space<vmem>>, vector<512x32xf32>,
    } else {
    }
    return
  }
  func.func @transform_0(%arg0: i32, %arg1: i32) -> (i32, i32) {
    %c0_i32 = arith.constant 0 : i32
    %c0_i32_0 = arith.constant 0 : i32
    return %arg0, %c0_i32 : i32, i32
  }
  func.func @transform_1(%arg0: i32, %arg1: i32) -> (i32, i32) {
    %c0_i32 = arith.constant 0 : i32
    %c0_i32_0 = arith.constant 0 : i32
    return %c0_i32, %arg1 : i32, i32
  }
  func.func @transform_2(%arg0: i32, %arg1: i32) -> (i32, i32) {
    %c0_i32 = arith.constant 0 : i32
    %c0_i32_0 = arith.constant 0 : i32
    return %c0_i32, %arg1 : i32, i32
  }
  func.func @transform_3(%arg0: i32, %arg1: i32) -> (i32, i32) {
    %c0_i32 = arith.constant 0 : i32
    %c0_i32_0 = arith.constant 0 : i32
    return %arg1, %c0_i32 : i32, i32
  }
  func.func @transform_4(%arg0: i32, %arg1: i32) -> (i32, i32) {
    %c0_i32 = arith.constant 0 : i32
    %c0_i32_0 = arith.constant 0 : i32
    %c0_i32_1 = arith.constant 0 : i32
    return %c0_i32, %c0_i32_0 : i32, i32
  }
  func.func @transform_5(%arg0: i32, %arg1: i32) -> (i32, i32) {
    %c0_i32 = arith.constant 0 : i32
    %c0_i32_0 = arith.constant 0 : i32
    return %arg0, %c0_i32 : i32, i32
  }
}

</mosaic_0001>

<llo_original>
// kernel: tpu_custom_call.1
$region0: #{tpu_custom_call.1}
  #allocation0 [shape = 'u32[]', space=smem, size = 0x4, offset = 0x4, fixed_abs, tag = 'smem constant byte address 0x4 - core index']
  #allocation1 [shape = 'u32[144,128]{1,0:T(1,128)}', space=vmem, size = 0x12000, scoped, tag = 'internal scratch']
  #allocation2 [shape = 'f32[512,32]{1,0:T(8,128)}', space=vmem, size = 0x40000, scoped, tag = 'scratch operand']
  %s0 = inlined_call_operand.vmem [shape: f32[1024,32], index: 0, kind: input, shape index: {}]
  %s1 = inlined_call_operand.vmem [shape: f32[32,128], index: 1, kind: input, shape index: {}]
  %s2 = inlined_call_operand.vmem [shape: f32[1,128], index: 2, kind: input, shape index: {}]
  %s3 = inlined_call_operand.vmem [shape: f32[128,32], index: 3, kind: input, shape index: {}]
  %s4 = inlined_call_operand.vmem [shape: f32[1,32], index: 4, kind: input, shape index: {}]
  %s5 = inlined_call_operand.vmem [shape: f32[1024,32], index: 5, kind: output, shape index: {}]
  %s6 = sld [smem:[#allocation0]]
  $region61: #{tpu_custom_call.1} parent=0
    _
  %s8 = ssub.s32 1, %s6
  %s9 = scalar_select 0, %s8, %s6
  loop: start=0, step=1, limit=4
  $region2: #{tpu_custom_call.1} parent=0 // loop_pre_header
    _
  $region3: #{tpu_custom_call.1} parent=0 // loop_header
    %s11 = sphi 0, %s15
    %p12 = scmp.ge.s32.totalorder %s11, 4
    %s18 = sphi 0, %s30
    %s19 = sphi 0, %s26
    %s20 = sphi 0, %s18
    %s21 = sphi 0, %s19
    %s22 = sphi 0, %s20
    %s23 = sphi 0, %s21
    %s33 = sphi 0, %s35
    %s36 = sphi 0, %s33
    %s37 = sphi 0, %s36
    %s53 = sphi 0, %s37
    %s59 = sphi 0, %s61
    %s62 = sphi 0, %s59
    %s63 = sphi 0, %s62
    %s79 = sphi 0, %s63
    %s85 = sphi 0, %s87
    %s88 = sphi 0, %s85
    %s89 = sphi 0, %s88
    %s105 = sphi 0, %s89
    %s111 = sphi 0, %s113
    %s114 = sphi 0, %s111
    %s115 = sphi 0, %s114
    %s131 = sphi 0, %s115
    %s135 = sphi 0, %s135
    %s137 = sphi 0, %s135
    %s138 = sphi 0, %s137
    %s152 = sphi 0, %s138
    %s158 = sphi 0, %s160
    %s161 = sphi 0, %s158
    %s162 = sphi 0, %s161
    %s178 = sphi 0, %s162
  $region4: #{tpu_custom_call.1} parent=0 // loop_header_branch
    %14 = sbr.rel (%p12) target = $region8
  $region5: #{tpu_custom_call.1} parent=0 // loop_body
    %s16 = ssub.s32 %s11, 1
    %s17 = ssub.s32 %s11, 2
    %s24 = sadd.s32 1, %s19
    %p25 = scmp.ge.s32.totalorder %s24, 1
    %s26 = scalar_select %p25, 0, %s24
    %s27 = sadd.s32 1, %s18
    %s28 = scalar_select %p25, %s27, %s18
    %p29 = scmp.ge.s32.totalorder %s28, 2
    %s30 = scalar_select %p29, 0, %s28
    %s31 = ssub.s32 %s18, %s30
    %p32 = scmp.eq.s32.totalorder %s31, 0
    %s34 = sadd.s32 %s33, 1
    %s35 = scalar_select %p32, %s33, %s34
    %p38 = pneg %p32
    %p39 = scmp.eq.s32.totalorder %s11, 1
    %p40 = por %p38, %p39
    %p41 = scmp.ne.s32.totalorder %s33, %s36
    %p42 = scmp.eq.s32.totalorder %s11, 0
    %p43 = por %p41, %p42
    %p44 = scmp.ne.s32.totalorder %s33, %s36
    %p45 = scmp.eq.s32.totalorder %s16, 1
    %p46 = por %p44, %p45
    %p47 = scmp.ne.s32.totalorder %s36, %s37
    %p48 = scmp.eq.s32.totalorder %s16, 0
    %p49 = por %p47, %p48
    %p50 = scmp.ne.s32.totalorder %s36, %s37
    %p51 = scmp.eq.s32.totalorder %s17, 1
    %p52 = por %p50, %p51
    %p54 = scmp.ne.s32.totalorder %s37, %s53
    %p55 = scmp.eq.s32.totalorder %s17, 0
    %p56 = por %p54, %p55
    %s57 = ssub.s32 %s19, %s26
    %p58 = scmp.eq.s32.totalorder %s57, 0
    %s60 = sadd.s32 %s59, 1
    %s61 = scalar_select %p58, %s59, %s60
    %p64 = pneg %p58
    %p65 = scmp.eq.s32.totalorder %s11, 1
    %p66 = por %p64, %p65
    %p67 = scmp.ne.s32.totalorder %s59, %s62
    %p68 = scmp.eq.s32.totalorder %s11, 0
    %p69 = por %p67, %p68
    %p70 = scmp.ne.s32.totalorder %s59, %s62
    %p71 = scmp.eq.s32.totalorder %s16, 1
    %p72 = por %p70, %p71
    %p73 = scmp.ne.s32.totalorder %s62, %s63
    %p74 = scmp.eq.s32.totalorder %s16, 0
    %p75 = por %p73, %p74
    %p76 = scmp.ne.s32.totalorder %s62, %s63
    %p77 = scmp.eq.s32.totalorder %s17, 1
    %p78 = por %p76, %p77
    %p80 = scmp.ne.s32.totalorder %s63, %s79
    %p81 = scmp.eq.s32.totalorder %s17, 0
    %p82 = por %p80, %p81
    %s83 = ssub.s32 %s19, %s26
    %p84 = scmp.eq.s32.totalorder %s83, 0
    %s86 = sadd.s32 %s85, 1
    %s87 = scalar_select %p84, %s85, %s86
    %p90 = pneg %p84
    %p91 = scmp.eq.s32.totalorder %s11, 1
    %p92 = por %p90, %p91
    %p93 = scmp.ne.s32.totalorder %s85, %s88
    %p94 = scmp.eq.s32.totalorder %s11, 0
    %p95 = por %p93, %p94
    %p96 = scmp.ne.s32.totalorder %s85, %s88
    %p97 = scmp.eq.s32.totalorder %s16, 1
    %p98 = por %p96, %p97
    %p99 = scmp.ne.s32.totalorder %s88, %s89
    %p100 = scmp.eq.s32.totalorder %s16, 0
    %p101 = por %p99, %p100
    %p102 = scmp.ne.s32.totalorder %s88, %s89
    %p103 = scmp.eq.s32.totalorder %s17, 1
    %p104 = por %p102, %p103
    %p106 = scmp.ne.s32.totalorder %s89, %s105
    %p107 = scmp.eq.s32.totalorder %s17, 0
    %p108 = por %p106, %p107
    %s109 = ssub.s32 %s19, %s26
    %p110 = scmp.eq.s32.totalorder %s109, 0
    %s112 = sadd.s32 %s111, 1
    %s113 = scalar_select %p110, %s111, %s112
    %p116 = pneg %p110
    %p117 = scmp.eq.s32.totalorder %s11, 1
    %p118 = por %p116, %p117
    %p119 = scmp.ne.s32.totalorder %s111, %s114
    %p120 = scmp.eq.s32.totalorder %s11, 0
    %p121 = por %p119, %p120
    %p122 = scmp.ne.s32.totalorder %s111, %s114
    %p123 = scmp.eq.s32.totalorder %s16, 1
    %p124 = por %p122, %p123
    %p125 = scmp.ne.s32.totalorder %s114, %s115
    %p126 = scmp.eq.s32.totalorder %s16, 0
    %p127 = por %p125, %p126
    %p128 = scmp.ne.s32.totalorder %s114, %s115
    %p129 = scmp.eq.s32.totalorder %s17, 1
    %p130 = por %p128, %p129
    %p132 = scmp.ne.s32.totalorder %s115, %s131
    %p133 = scmp.eq.s32.totalorder %s17, 0
    %p134 = por %p132, %p133
    %s136 = sadd.s32 %s135, 1
    %p139 = scmp.eq.s32.totalorder %s11, 1
    %p140 = scmp.ne.s32.totalorder %s135, %s137
    %p141 = scmp.eq.s32.totalorder %s11, 0
    %p142 = por %p140, %p141
    %p143 = scmp.ne.s32.totalorder %s135, %s137
    %p144 = scmp.eq.s32.totalorder %s16, 1
    %p145 = por %p143, %p144
    %p146 = scmp.ne.s32.totalorder %s137, %s138
    %p147 = scmp.eq.s32.totalorder %s16, 0
    %p148 = por %p146, %p147
    %p149 = scmp.ne.s32.totalorder %s137, %s138
    %p150 = scmp.eq.s32.totalorder %s17, 1
    %p151 = por %p149, %p150
    %p153 = scmp.ne.s32.totalorder %s138, %s152
    %p154 = scmp.eq.s32.totalorder %s17, 0
    %p155 = por %p153, %p154
    %s156 = ssub.s32 %s18, %s30
    %p157 = scmp.eq.s32.totalorder %s156, 0
    %s159 = sadd.s32 %s158, 1
    %s160 = scalar_select %p157, %s158, %s159
    %p163 = pneg %p157
    %p164 = scmp.eq.s32.totalorder %s11, 1
    %p165 = por %p163, %p164
    %p166 = scmp.ne.s32.totalorder %s158, %s161
    %p167 = scmp.eq.s32.totalorder %s11, 0
    %p168 = por %p166, %p167
    %p169 = scmp.ne.s32.totalorder %s158, %s161
    %p170 = scmp.eq.s32.totalorder %s16, 1
    %p171 = por %p169, %p170
    %p172 = scmp.ne.s32.totalorder %s161, %s162
    %p173 = scmp.eq.s32.totalorder %s16, 0
    %p174 = por %p172, %p173
    %p175 = scmp.ne.s32.totalorder %s161, %s162
    %p176 = scmp.eq.s32.totalorder %s17, 1
    %p177 = por %p175, %p176
    %p179 = scmp.ne.s32.totalorder %s162, %s178
    %p180 = scmp.eq.s32.totalorder %s17, 0
    %p181 = por %p179, %p180
    %p182 = scmp.le.s32.totalorder 1, %s11
    %p183 = scmp.lt.s32.totalorder %s11, 3
    %p184 = pnand %p182, %p183
    %p185 = pneg %p184
    // Predicated region
    $region9: #{tpu_custom_call.1} parent=5 // pred_check
      _
    $region10: #{tpu_custom_call.1} parent=5 // pred_check_branch
      %187 = sbr.rel (%p184) target = $region12
    $region11: #{tpu_custom_call.1} parent=5 // pred_region
      %s188 = ssub.s32 %s11, 1
      // Predicated region
      $region13: #{tpu_custom_call.1} parent=11 // pred_check
        %p189 = pneg %p75
      $region14: #{tpu_custom_call.1} parent=11 // pred_check_branch
        %191 = sbr.rel (%p189) target = $region16
      $region15: #{tpu_custom_call.1} parent=11 // pred_region
        %p192 = scmp.lt.s32.totalorder %s21, 0
        %s193 = scalar_select %p192, %s21, 0
        %s194 = smul.addr %s193, 8
        %s195 = scalar_lea.vmem %s1, %s194
      $region16: #{tpu_custom_call.1} parent=11 // pred_fallthru
        _
      // Predicated region
      $region17: #{tpu_custom_call.1} parent=11 // pred_check
        %p196 = pneg %p101
      $region18: #{tpu_custom_call.1} parent=11 // pred_check_branch
        %198 = sbr.rel (%p196) target = $region20
      $region19: #{tpu_custom_call.1} parent=11 // pred_region
        %p199 = scmp.lt.s32.totalorder %s21, 0
        %s200 = scalar_select %p199, %s21, 0
        %s201 = scalar_lea.vmem %s2, %s200
      $region20: #{tpu_custom_call.1} parent=11 // pred_fallthru
        _
      // Predicated region
      $region21: #{tpu_custom_call.1} parent=11 // pred_check
        %p202 = pneg %p127
      $region22: #{tpu_custom_call.1} parent=11 // pred_check_branch
        %204 = sbr.rel (%p202) target = $region24
      $region23: #{tpu_custom_call.1} parent=11 // pred_region
        %s205 = smul.u32 16, %s21
        %p206 = scmp.lt.s32.totalorder %s205, 15
        %s207 = scalar_select %p206, %s205, 15
        %s208 = smul.addr %s207, 8
        %s209 = scalar_lea.vmem %s3, %s208
        %s210 = smul.u32 16, %s21
      $region24: #{tpu_custom_call.1} parent=11 // pred_fallthru
        _
      // Predicated region
      $region25: #{tpu_custom_call.1} parent=11 // pred_check
        %p211 = pneg %p148
      $region26: #{tpu_custom_call.1} parent=11 // pred_check_branch
        %213 = sbr.rel (%p211) target = $region28
      $region27: #{tpu_custom_call.1} parent=11 // pred_region
        _
      $region28: #{tpu_custom_call.1} parent=11 // pred_fallthru
        _
    $region12: #{tpu_custom_call.1} parent=5 // pred_fallthru
      _
    %p214 = scmp.lt.s32.totalorder %s11, 2
    // Predicated region
    $region29: #{tpu_custom_call.1} parent=5 // pred_check
      %p215 = pneg %p214
    $region30: #{tpu_custom_call.1} parent=5 // pred_check_branch
      %217 = sbr.rel (%p215) target = $region32
    $region31: #{tpu_custom_call.1} parent=5 // pred_region
      // Predicated region
      $region33: #{tpu_custom_call.1} parent=31 // pred_check
        %p218 = pneg %p43
      $region34: #{tpu_custom_call.1} parent=31 // pred_check_branch
        %220 = sbr.rel (%p218) target = $region36
      $region35: #{tpu_custom_call.1} parent=31 // pred_region
        %s221 = smul.u32 64, %s18
        %p222 = scmp.lt.s32.totalorder %s221, 127
        %s223 = scalar_select %p222, %s221, 127
        %s224 = smul.addr %s223, 8
        %s225 = scalar_lea.vmem %s0, %s224
        %s226 = smul.u32 64, %s18
      $region36: #{tpu_custom_call.1} parent=31 // pred_fallthru
        _
    $region32: #{tpu_custom_call.1} parent=5 // pred_fallthru
      _
    %p227 = scmp.le.s32.totalorder 1, %s11
    %p228 = scmp.lt.s32.totalorder %s11, 3
    %p229 = pnand %p227, %p228
    %p230 = pneg %p229
    // Predicated region
    $region37: #{tpu_custom_call.1} parent=5 // pred_check
      _
    $region38: #{tpu_custom_call.1} parent=5 // pred_check_branch
      %232 = sbr.rel (%p229) target = $region40
    $region39: #{tpu_custom_call.1} parent=5 // pred_region
      %s233 = ssub.s32 %s11, 1
      %s234 = smul.u32 64, %s20
      %p235 = scmp.lt.s32.totalorder %s234, 127
      %s236 = scalar_select %p235, %s234, 127
      %s237 = smul.addr %s236, 8
      %s238 = scalar_lea.vmem %s0, %s237
      %p239 = pneg %p49
      %p240 = pneg %p46
      %p241 = scmp.lt.s32.totalorder %s21, 0
      %s242 = scalar_select %p241, %s21, 0
      %s243 = smul.addr %s242, 8
      %s244 = scalar_lea.vmem %s1, %s243
      %p245 = pneg %p75
      %p246 = pneg %p72
      %p247 = scmp.lt.s32.totalorder %s21, 0
      %s248 = scalar_select %p247, %s21, 0
      %s249 = scalar_lea.vmem %s2, %s248
      %p250 = pneg %p101
      %p251 = pneg %p98
      %s252 = smul.u32 16, %s21
      %p253 = scmp.lt.s32.totalorder %s252, 15
      %s254 = scalar_select %p253, %s252, 15
      %s255 = smul.addr %s254, 8
      %s256 = scalar_lea.vmem %s3, %s255
      %p257 = pneg %p127
      %p258 = pneg %p124
      %p259 = pneg %p148
      %p260 = pneg %p145
      %p261 = pneg %p174
      %p262 = pneg %p171
      %s263 = smul.u32 64, %s20
      %p264 = scmp.lt.s32.totalorder %s263, 127
      %s265 = scalar_select %p264, %s263, 127
      %s266 = smul.addr %s265, 8
      %s267 = scalar_lea.vmem %s5, %s266
      %s268 = smul.u32 64, %s20
      %p269 = scmp.lt.s32.totalorder %s268, 127
      %s270 = scalar_select %p269, %s268, 127
      %s271 = smul.addr %s270, 8
      %s272 = scalar_lea.vmem %s0, %s271
      %s273 = smul.u32 64, %s20
      %p274 = scmp.lt.s32.totalorder %s21, 0
      %s275 = scalar_select %p274, %s21, 0
      %s276 = smul.addr %s275, 8
      %s277 = scalar_lea.vmem %s1, %s276
      %p278 = scmp.lt.s32.totalorder %s21, 0
      %s279 = scalar_select %p278, %s21, 0
      %s280 = scalar_lea.vmem %s2, %s279
      %s281 = smul.u32 16, %s21
      %p282 = scmp.lt.s32.totalorder %s281, 15
      %s283 = scalar_select %p282, %s281, 15
      %s284 = smul.addr %s283, 8
      %s285 = scalar_lea.vmem %s3, %s284
      %s286 = smul.u32 16, %s21
      %s287 = smul.u32 64, %s20
      %p288 = scmp.lt.s32.totalorder %s287, 127
      %s289 = scalar_select %p288, %s287, 127
      %s290 = smul.addr %s289, 8
      %s291 = scalar_lea.vmem %s5, %s290
      %s292 = smul.u32 64, %s20
      %p293 = scmp.eq.s32.totalorder %s21, 0
      // Predicated region
      $region41: #{tpu_custom_call.1} parent=39 // pred_check
        %p294 = pneg %p293
      $region42: #{tpu_custom_call.1} parent=39 // pred_check_branch
        %296 = sbr.rel (%p294) target = $region44
      $region43: #{tpu_custom_call.1} parent=39 // pred_region
        %vm297 = vcmask 261120
        %298 = vst.msk [vmem:[#allocation2] sm:$0xff] %vm297, 0.0
        %299 = vst.msk [vmem:[#allocation2 + $0x8] sm:$0xff] %vm297, 0.0
        %300 = vst.msk [vmem:[#allocation2 + $0x10] sm:$0xff] %vm297, 0.0
        %301 = vst.msk [vmem:[#allocation2 + $0x18] sm:$0xff] %vm297, 0.0
        %302 = vst.msk [vmem:[#allocation2 + $0x20] sm:$0xff] %vm297, 0.0
        %303 = vst.msk [vmem:[#allocation2 + $0x28] sm:$0xff] %vm297, 0.0
        %304 = vst.msk [vmem:[#allocation2 + $0x30] sm:$0xff] %vm297, 0.0
        %305 = vst.msk [vmem:[#allocation2 + $0x38] sm:$0xff] %vm297, 0.0
        %306 = vst.msk [vmem:[#allocation2 + $0x40] sm:$0xff] %vm297, 0.0
        %307 = vst.msk [vmem:[#allocation2 + $0x48] sm:$0xff] %vm297, 0.0
        %308 = vst.msk [vmem:[#allocation2 + $0x50] sm:$0xff] %vm297, 0.0
        %309 = vst.msk [vmem:[#allocation2 + $0x58] sm:$0xff] %vm297, 0.0
        %310 = vst.msk [vmem:[#allocation2 + $0x60] sm:$0xff] %vm297, 0.0
        %311 = vst.msk [vmem:[#allocation2 + $0x68] sm:$0xff] %vm297, 0.0
        %312 = vst.msk [vmem:[#allocation2 + $0x70] sm:$0xff] %vm297, 0.0
        %313 = vst.msk [vmem:[#allocation2 + $0x78] sm:$0xff] %vm297, 0.0
        %314 = vst.msk [vmem:[#allocation2 + $0x80] sm:$0xff] %vm297, 0.0
        %315 = vst.msk [vmem:[#allocation2 + $0x88] sm:$0xff] %vm297, 0.0
        %316 = vst.msk [vmem:[#allocation2 + $0x90] sm:$0xff] %vm297, 0.0
        %317 = vst.msk [vmem:[#allocation2 + $0x98] sm:$0xff] %vm297, 0.0
        %318 = vst.msk [vmem:[#allocation2 + $0xa0] sm:$0xff] %vm297, 0.0
        %319 = vst.msk [vmem:[#allocation2 + $0xa8] sm:$0xff] %vm297, 0.0
        %320 = vst.msk [vmem:[#allocation2 + $0xb0] sm:$0xff] %vm297, 0.0
        %321 = vst.msk [vmem:[#allocation2 + $0xb8] sm:$0xff] %vm297, 0.0
        %322 = vst.msk [vmem:[#allocation2 + $0xc0] sm:$0xff] %vm297, 0.0
        %323 = vst.msk [vmem:[#allocation2 + $0xc8] sm:$0xff] %vm297, 0.0
        %324 = vst.msk [vmem:[#allocation2 + $0xd0] sm:$0xff] %vm297, 0.0
        %325 = vst.msk [vmem:[#allocation2 + $0xd8] sm:$0xff] %vm297, 0.0
        %326 = vst.msk [vmem:[#allocation2 + $0xe0] sm:$0xff] %vm297, 0.0
        %327 = vst.msk [vmem:[#allocation2 + $0xe8] sm:$0xff] %vm297, 0.0
        %328 = vst.msk [vmem:[#allocation2 + $0xf0] sm:$0xff] %vm297, 0.0
        %329 = vst.msk [vmem:[#allocation2 + $0xf8] sm:$0xff] %vm297, 0.0
        %330 = vst.msk [vmem:[#allocation2 + $0x100] sm:$0xff] %vm297, 0.0
        %331 = vst.msk [vmem:[#allocation2 + $0x108] sm:$0xff] %vm297, 0.0
        %332 = vst.msk [vmem:[#allocation2 + $0x110] sm:$0xff] %vm297, 0.0
        %333 = vst.msk [vmem:[#allocation2 + $0x118] sm:$0xff] %vm297, 0.0
        %334 = vst.msk [vmem:[#allocation2 + $0x120] sm:$0xff] %vm297, 0.0
        %335 = vst.msk [vmem:[#allocation2 + $0x128] sm:$0xff] %vm297, 0.0
        %336 = vst.msk [vmem:[#allocation2 + $0x130] sm:$0xff] %vm297, 0.0
        %337 = vst.msk [vmem:[#allocation2 + $0x138] sm:$0xff] %vm297, 0.0
        %338 = vst.msk [vmem:[#allocation2 + $0x140] sm:$0xff] %vm297, 0.0
        %339 = vst.msk [vmem:[#allocation2 + $0x148] sm:$0xff] %vm297, 0.0
        %340 = vst.msk [vmem:[#allocation2 + $0x150] sm:$0xff] %vm297, 0.0
        %341 = vst.msk [vmem:[#allocation2 + $0x158] sm:$0xff] %vm297, 0.0
        %342 = vst.msk [vmem:[#allocation2 + $0x160] sm:$0xff] %vm297, 0.0
        %343 = vst.msk [vmem:[#allocation2 + $0x168] sm:$0xff] %vm297, 0.0
        %344 = vst.msk [vmem:[#allocation2 + $0x170] sm:$0xff] %vm297, 0.0
        %345 = vst.msk [vmem:[#allocation2 + $0x178] sm:$0xff] %vm297, 0.0
        %346 = vst.msk [vmem:[#allocation2 + $0x180] sm:$0xff] %vm297, 0.0
        %347 = vst.msk [vmem:[#allocation2 + $0x188] sm:$0xff] %vm297, 0.0
        %348 = vst.msk [vmem:[#allocation2 + $0x190] sm:$0xff] %vm297, 0.0
        %349 = vst.msk [vmem:[#allocation2 + $0x198] sm:$0xff] %vm297, 0.0
        %350 = vst.msk [vmem:[#allocation2 + $0x1a0] sm:$0xff] %vm297, 0.0
        %351 = vst.msk [vmem:[#allocation2 + $0x1a8] sm:$0xff] %vm297, 0.0
        %352 = vst.msk [vmem:[#allocation2 + $0x1b0] sm:$0xff] %vm297, 0.0
        %353 = vst.msk [vmem:[#allocation2 + $0x1b8] sm:$0xff] %vm297, 0.0
        %354 = vst.msk [vmem:[#allocation2 + $0x1c0] sm:$0xff] %vm297, 0.0
        %355 = vst.msk [vmem:[#allocation2 + $0x1c8] sm:$0xff] %vm297, 0.0
        %356 = vst.msk [vmem:[#allocation2 + $0x1d0] sm:$0xff] %vm297, 0.0
        %357 = vst.msk [vmem:[#allocation2 + $0x1d8] sm:$0xff] %vm297, 0.0
        %358 = vst.msk [vmem:[#allocation2 + $0x1e0] sm:$0xff] %vm297, 0.0
        %359 = vst.msk [vmem:[#allocation2 + $0x1e8] sm:$0xff] %vm297, 0.0
        %360 = vst.msk [vmem:[#allocation2 + $0x1f0] sm:$0xff] %vm297, 0.0
        %361 = vst.msk [vmem:[#allocation2 + $0x1f8] sm:$0xff] %vm297, 0.0
      $region44: #{tpu_custom_call.1} parent=39 // pred_fallthru
        _
      %v362 = vld [vmem:[%s272] sm:$0xff]
      %v363 = vld [vmem:[%s272 + $0x8] sm:$0xff]
      %v364 = vld [vmem:[%s272 + $0x10] sm:$0xff]
      %v365 = vld [vmem:[%s272 + $0x18] sm:$0xff]
      %v366 = vld [vmem:[%s272 + $0x20] sm:$0xff]
      %v367 = vld [vmem:[%s272 + $0x28] sm:$0xff]
      %v368 = vld [vmem:[%s272 + $0x30] sm:$0xff]
      %v369 = vld [vmem:[%s272 + $0x38] sm:$0xff]
      %v370 = vld [vmem:[%s272 + $0x40] sm:$0xff]
      %v371 = vld [vmem:[%s272 + $0x48] sm:$0xff]
      %v372 = vld [vmem:[%s272 + $0x50] sm:$0xff]
      %v373 = vld [vmem:[%s272 + $0x58] sm:$0xff]
      %v374 = vld [vmem:[%s272 + $0x60] sm:$0xff]
      %v375 = vld [vmem:[%s272 + $0x68] sm:$0xff]
      %v376 = vld [vmem:[%s272 + $0x70] sm:$0xff]
      %v377 = vld [vmem:[%s272 + $0x78] sm:$0xff]
      %v378 = vld [vmem:[%s272 + $0x80] sm:$0xff]
      %v379 = vld [vmem:[%s272 + $0x88] sm:$0xff]
      %v380 = vld [vmem:[%s272 + $0x90] sm:$0xff]
      %v381 = vld [vmem:[%s272 + $0x98] sm:$0xff]
      %v382 = vld [vmem:[%s272 + $0xa0] sm:$0xff]
      %v383 = vld [vmem:[%s272 + $0xa8] sm:$0xff]
      %v384 = vld [vmem:[%s272 + $0xb0] sm:$0xff]
      %v385 = vld [vmem:[%s272 + $0xb8] sm:$0xff]
      %v386 = vld [vmem:[%s272 + $0xc0] sm:$0xff]
      %v387 = vld [vmem:[%s272 + $0xc8] sm:$0xff]
      %v388 = vld [vmem:[%s272 + $0xd0] sm:$0xff]
      %v389 = vld [vmem:[%s272 + $0xd8] sm:$0xff]
      %v390 = vld [vmem:[%s272 + $0xe0] sm:$0xff]
      %v391 = vld [vmem:[%s272 + $0xe8] sm:$0xff]
      %v392 = vld [vmem:[%s272 + $0xf0] sm:$0xff]
      %v393 = vld [vmem:[%s272 + $0xf8] sm:$0xff]
      %v394 = vld [vmem:[%s272 + $0x100] sm:$0xff]
      %v395 = vld [vmem:[%s272 + $0x108] sm:$0xff]
      %v396 = vld [vmem:[%s272 + $0x110] sm:$0xff]
      %v397 = vld [vmem:[%s272 + $0x118] sm:$0xff]
      %v398 = vld [vmem:[%s272 + $0x120] sm:$0xff]
      %v399 = vld [vmem:[%s272 + $0x128] sm:$0xff]
      %v400 = vld [vmem:[%s272 + $0x130] sm:$0xff]
      %v401 = vld [vmem:[%s272 + $0x138] sm:$0xff]
      %v402 = vld [vmem:[%s272 + $0x140] sm:$0xff]
      %v403 = vld [vmem:[%s272 + $0x148] sm:$0xff]
      %v404 = vld [vmem:[%s272 + $0x150] sm:$0xff]
      %v405 = vld [vmem:[%s272 + $0x158] sm:$0xff]
      %v406 = vld [vmem:[%s272 + $0x160] sm:$0xff]
      %v407 = vld [vmem:[%s272 + $0x168] sm:$0xff]
      %v408 = vld [vmem:[%s272 + $0x170] sm:$0xff]
      %v409 = vld [vmem:[%s272 + $0x178] sm:$0xff]
      %v410 = vld [vmem:[%s272 + $0x180] sm:$0xff]
      %v411 = vld [vmem:[%s272 + $0x188] sm:$0xff]
      %v412 = vld [vmem:[%s272 + $0x190] sm:$0xff]
      %v413 = vld [vmem:[%s272 + $0x198] sm:$0xff]
      %v414 = vld [vmem:[%s272 + $0x1a0] sm:$0xff]
      %v415 = vld [vmem:[%s272 + $0x1a8] sm:$0xff]
      %v416 = vld [vmem:[%s272 + $0x1b0] sm:$0xff]
      %v417 = vld [vmem:[%s272 + $0x1b8] sm:$0xff]
      %v418 = vld [vmem:[%s272 + $0x1c0] sm:$0xff]
      %v419 = vld [vmem:[%s272 + $0x1c8] sm:$0xff]
      %v420 = vld [vmem:[%s272 + $0x1d0] sm:$0xff]
      %v421 = vld [vmem:[%s272 + $0x1d8] sm:$0xff]
      %v422 = vld [vmem:[%s272 + $0x1e0] sm:$0xff]
      %v423 = vld [vmem:[%s272 + $0x1e8] sm:$0xff]
      %v424 = vld [vmem:[%s272 + $0x1f0] sm:$0xff]
      %v425 = vld [vmem:[%s272 + $0x1f8] sm:$0xff]
      %v426 = vld [vmem:[%s277] sm:$0xff]
      %v427 = vld [vmem:[%s277 + $0x8] sm:$0xff]
      %v428 = vld [vmem:[%s277 + $0x10] sm:$0xff]
      %v429 = vld [vmem:[%s277 + $0x18] sm:$0xff]
      %v430 = vld [vmem:[%s280] sm:$0x1]
      %v432 = vlaneseq
      %v433 = vshrl.u32 %v432, 7
      %v434 = vsub.s32 0, %v433
      %v435 = vrot.slane %v430, %v434
      %vm437 = vcmask 261120
      %v439 = vsel %vm437, %v362, 0
      %v442 = vsel %vm437, %v363, 0
      %v445 = vsel %vm437, %v364, 0
      %v448 = vsel %vm437, %v365, 0
      %v451 = vsel %vm437, %v366, 0
      %v454 = vsel %vm437, %v367, 0
      %v457 = vsel %vm437, %v368, 0
      %v460 = vsel %vm437, %v369, 0
      %v463 = vsel %vm437, %v370, 0
      %v466 = vsel %vm437, %v371, 0
      %v469 = vsel %vm437, %v372, 0
      %v472 = vsel %vm437, %v373, 0
      %v475 = vsel %vm437, %v374, 0
      %v478 = vsel %vm437, %v375, 0
      %v481 = vsel %vm437, %v376, 0
      %v484 = vsel %vm437, %v377, 0
      %v487 = vsel %vm437, %v378, 0
      %v490 = vsel %vm437, %v379, 0
      %v493 = vsel %vm437, %v380, 0
      %v496 = vsel %vm437, %v381, 0
      %v499 = vsel %vm437, %v382, 0
      %v502 = vsel %vm437, %v383, 0
      %v505 = vsel %vm437, %v384, 0
      %v508 = vsel %vm437, %v385, 0
      %v511 = vsel %vm437, %v386, 0
      %v514 = vsel %vm437, %v387, 0
      %v517 = vsel %vm437, %v388, 0
      %v520 = vsel %vm437, %v389, 0
      %v523 = vsel %vm437, %v390, 0
      %v526 = vsel %vm437, %v391, 0
      %v529 = vsel %vm437, %v392, 0
      %v532 = vsel %vm437, %v393, 0
      %v535 = vsel %vm437, %v394, 0
      %v538 = vsel %vm437, %v395, 0
      %v541 = vsel %vm437, %v396, 0
      %v544 = vsel %vm437, %v397, 0
      %v547 = vsel %vm437, %v398, 0
      %v550 = vsel %vm437, %v399, 0
      %v553 = vsel %vm437, %v400, 0
      %v556 = vsel %vm437, %v401, 0
      %v559 = vsel %vm437, %v402, 0
      %v562 = vsel %vm437, %v403, 0
      %v565 = vsel %vm437, %v404, 0
      %v568 = vsel %vm437, %v405, 0
      %v571 = vsel %vm437, %v406, 0
      %v574 = vsel %vm437, %v407, 0
      %v577 = vsel %vm437, %v408, 0
      %v580 = vsel %vm437, %v409, 0
      %v583 = vsel %vm437, %v410, 0
      %v586 = vsel %vm437, %v411, 0
      %v589 = vsel %vm437, %v412, 0
      %v592 = vsel %vm437, %v413, 0
      %v595 = vsel %vm437, %v414, 0
      %v598 = vsel %vm437, %v415, 0
      %v601 = vsel %vm437, %v416, 0
      %v604 = vsel %vm437, %v417, 0
      %v607 = vsel %vm437, %v418, 0
      %v610 = vsel %vm437, %v419, 0
      %v613 = vsel %vm437, %v420, 0
      %v616 = vsel %vm437, %v421, 0
      %v619 = vsel %vm437, %v422, 0
      %v622 = vsel %vm437, %v423, 0
      %v625 = vsel %vm437, %v424, 0
      %v628 = vsel %vm437, %v425, 0
      %630 = vmatprep.subr.mxu0 0.0
      %631 = vmatpush1.msra.mxu0 %v426
      %632 = vmatprep.subr.mxu0 0.0
      %633 = vmatpush1.msra.mxu0 %v427
      %634 = vmatprep.subr.mxu0 0.0
      %635 = vmatpush1.msra.mxu0 %v428
      %636 = vmatprep.subr.mxu0 0.0
      %637 = vmatpush1.msra.mxu0 %v429
      %638 = vmatprep.subr.mxu0 0.0
      %639 = vmatpush1.msra.mxu0 0.0
      %640 = vmatprep.subr.mxu0 0.0
      %641 = vmatpush1.msra.mxu0 0.0
      %642 = vmatprep.subr.mxu0 0.0
      %643 = vmatpush1.msra.mxu0 0.0
      %644 = vmatprep.subr.mxu0 0.0
      %645 = vmatpush1.msra.mxu0 0.0
      %646 = vmatprep.subr.mxu0 0.0
      %647 = vmatpush1.msra.mxu0 0.0
      %648 = vmatprep.subr.mxu0 0.0
      %649 = vmatpush1.msra.mxu0 0.0
      %650 = vmatprep.subr.mxu0 0.0
      %651 = vmatpush1.msra.mxu0 0.0
      %652 = vmatprep.subr.mxu0 0.0
      %653 = vmatpush1.msra.mxu0 0.0
      %654 = vmatprep.subr.mxu0 0.0
      %655 = vmatpush1.msra.mxu0 0.0
      %656 = vmatprep.subr.mxu0 0.0
      %657 = vmatpush1.msra.mxu0 0.0
      %658 = vmatprep.subr.mxu0 0.0
      %659 = vmatpush1.msra.mxu0 0.0
      %660 = vmatprep.subr.mxu0 0.0
      %661 = vmatpush1.msra.mxu0 0.0
      %662 = vmatprep.subr.mxu0 0.0
      %663 = vmatpush1.msra.mxu0 0.0
      %664 = vmatprep.subr.mxu0 0.0
      %665 = vmatpush1.msra.mxu0 0.0
      %666 = vmatprep.subr.mxu0 0.0
      %667 = vmatpush1.msra.mxu0 0.0
      %668 = vmatprep.subr.mxu0 0.0
      %669 = vmatpush1.msra.mxu0 0.0
      %670 = vmatprep.subr.mxu0 0.0
      %671 = vmatpush1.msra.mxu0 0.0
      %672 = vmatprep.subr.mxu0 0.0
      %673 = vmatpush1.msra.mxu0 0.0
      %674 = vmatprep.subr.mxu0 0.0
      %675 = vmatpush1.msra.mxu0 0.0
      %676 = vmatprep.subr.mxu0 0.0
      %677 = vmatpush1.msra.mxu0 0.0
      %678 = vmatprep.subr.mxu0 0.0
      %679 = vmatpush1.msra.mxu0 0.0
      %680 = vmatprep.subr.mxu0 0.0
      %681 = vmatpush1.msra.mxu0 0.0
      %682 = vmatprep.subr.mxu0 0.0
      %683 = vmatpush1.msra.mxu0 0.0
      %684 = vmatprep.subr.mxu0 0.0
      %685 = vmatpush1.msra.mxu0 0.0
      %686 = vmatprep.subr.mxu0 0.0
      %687 = vmatpush1.msra.mxu0 0.0
      %688 = vmatprep.subr.mxu0 0.0
      %689 = vmatpush1.msra.mxu0 0.0
      %690 = vmatprep.subr.mxu0 0.0
      %691 = vmatpush1.msra.mxu0 0.0
      %692 = vmatprep.subr.mxu0 0.0
      %693 = vmatpush1.msra.mxu0 0.0
      %694 = vmatprep.mubr.f32.mxu0 0.0
      %695 = vmatmul.mubr.f32.gmra.mrb[0].mxu0 %v439
      %v696 = vpop.f32.mrb[0].mxu0
      %v697 = vadd.f32 %v435, %v696
      %v698 = vpop.f32.mrb[0].mxu0
      %699 = vmatprep.mubr.f32.mxu0 0.0
      %700 = vmatmul.mubr.f32.gmra.mrb[0].mxu0 %v442
      %v701 = vpop.f32.mrb[0].mxu0
      %v702 = vadd.f32 %v435, %v701
      %v703 = vpop.f32.mrb[0].mxu0
      %704 = vmatprep.mubr.f32.mxu0 0.0
      %705 = vmatmul.mubr.f32.gmra.mrb[0].mxu0 %v445
      %v706 = vpop.f32.mrb[0].mxu0
      %v707 = vadd.f32 %v435, %v706
      %v708 = vpop.f32.mrb[0].mxu0
      %709 = vmatprep.mubr.f32.mxu0 0.0
      %710 = vmatmul.mubr.f32.gmra.mrb[0].mxu0 %v448
      %v711 = vpop.f32.mrb[0].mxu0
      %v712 = vadd.f32 %v435, %v711
      %v713 = vpop.f32.mrb[0].mxu0
      %714 = vmatprep.mubr.f32.mxu0 0.0
      %715 = vmatmul.mubr.f32.gmra.mrb[0].mxu0 %v451
      %v716 = vpop.f32.mrb[0].mxu0
      %v717 = vadd.f32 %v435, %v716
      %v718 = vpop.f32.mrb[0].mxu0
      %719 = vmatprep.mubr.f32.mxu0 0.0
      %720 = vmatmul.mubr.f32.gmra.mrb[0].mxu0 %v454
      %v721 = vpop.f32.mrb[0].mxu0
      %v722 = vadd.f32 %v435, %v721
      %v723 = vpop.f32.mrb[0].mxu0
      %724 = vmatprep.mubr.f32.mxu0 0.0
      %725 = vmatmul.mubr.f32.gmra.mrb[0].mxu0 %v457
      %v726 = vpop.f32.mrb[0].mxu0
      %v727 = vadd.f32 %v435, %v726
      %v728 = vpop.f32.mrb[0].mxu0
      %729 = vmatprep.mubr.f32.mxu0 0.0
      %730 = vmatmul.mubr.f32.gmra.mrb[0].mxu0 %v460
      %v731 = vpop.f32.mrb[0].mxu0
      %v732 = vadd.f32 %v435, %v731
      %v733 = vpop.f32.mrb[0].mxu0
      %734 = vmatprep.mubr.f32.mxu0 0.0
      %735 = vmatmul.mubr.f32.gmra.mrb[0].mxu0 %v463
      %v736 = vpop.f32.mrb[0].mxu0
      %v737 = vadd.f32 %v435, %v736
      %v738 = vpop.f32.mrb[0].mxu0
      %739 = vmatprep.mubr.f32.mxu0 0.0
      %740 = vmatmul.mubr.f32.gmra.mrb[0].mxu0 %v466
      %v741 = vpop.f32.mrb[0].mxu0
      %v742 = vadd.f32 %v435, %v741
      %v743 = vpop.f32.mrb[0].mxu0
      %744 = vmatprep.mubr.f32.mxu0 0.0
      %745 = vmatmul.mubr.f32.gmra.mrb[0].mxu0 %v469
      %v746 = vpop.f32.mrb[0].mxu0
      %v747 = vadd.f32 %v435, %v746
      %v748 = vpop.f32.mrb[0].mxu0
      %749 = vmatprep.mubr.f32.mxu0 0.0
      %750 = vmatmul.mubr.f32.gmra.mrb[0].mxu0 %v472
      %v751 = vpop.f32.mrb[0].mxu0
      %v752 = vadd.f32 %v435, %v751
      %v753 = vpop.f32.mrb[0].mxu0
      %754 = vmatprep.mubr.f32.mxu0 0.0
      %755 = vmatmul.mubr.f32.gmra.mrb[0].mxu0 %v475
      %v756 = vpop.f32.mrb[0].mxu0
      %v757 = vadd.f32 %v435, %v756
      %v758 = vpop.f32.mrb[0].mxu0
      %759 = vmatprep.mubr.f32.mxu0 0.0
      %760 = vmatmul.mubr.f32.gmra.mrb[0].mxu0 %v478
      %v761 = vpop.f32.mrb[0].mxu0
      %v762 = vadd.f32 %v435, %v761
      %v763 = vpop.f32.mrb[0].mxu0
      %764 = vmatprep.mubr.f32.mxu0 0.0
      %765 = vmatmul.mubr.f32.gmra.mrb[0].mxu0 %v481
      %v766 = vpop.f32.mrb[0].mxu0
      %v767 = vadd.f32 %v435, %v766
      %v768 = vpop.f32.mrb[0].mxu0
      %769 = vmatprep.mubr.f32.mxu0 0.0
      %770 = vmatmul.mubr.f32.gmra.mrb[0].mxu0 %v484
      %v771 = vpop.f32.mrb[0].mxu0
      %v772 = vadd.f32 %v435, %v771
      %v773 = vpop.f32.mrb[0].mxu0
      %774 = vmatprep.mubr.f32.mxu0 0.0
      %775 = vmatmul.mubr.f32.gmra.mrb[0].mxu0 %v487
      %v776 = vpop.f32.mrb[0].mxu0
      %v777 = vadd.f32 %v435, %v776
      %v778 = vpop.f32.mrb[0].mxu0
      %779 = vmatprep.mubr.f32.mxu0 0.0
      %780 = vmatmul.mubr.f32.gmra.mrb[0].mxu0 %v490
      %v781 = vpop.f32.mrb[0].mxu0
      %v782 = vadd.f32 %v435, %v781
      %v783 = vpop.f32.mrb[0].mxu0
      %784 = vmatprep.mubr.f32.mxu0 0.0
      %785 = vmatmul.mubr.f32.gmra.mrb[0].mxu0 %v493
      %v786 = vpop.f32.mrb[0].mxu0
      %v787 = vadd.f32 %v435, %v786
      %v788 = vpop.f32.mrb[0].mxu0
      %789 = vmatprep.mubr.f32.mxu0 0.0
      %790 = vmatmul.mubr.f32.gmra.mrb[0].mxu0 %v496
      %v791 = vpop.f32.mrb[0].mxu0
      %v792 = vadd.f32 %v435, %v791
      %v793 = vpop.f32.mrb[0].mxu0
      %794 = vmatprep.mubr.f32.mxu0 0.0
      %795 = vmatmul.mubr.f32.gmra.mrb[0].mxu0 %v499
      %v796 = vpop.f32.mrb[0].mxu0
      %v797 = vadd.f32 %v435, %v796
      %v798 = vpop.f32.mrb[0].mxu0
      %799 = vmatprep.mubr.f32.mxu0 0.0
      %800 = vmatmul.mubr.f32.gmra.mrb[0].mxu0 %v502
      %v801 = vpop.f32.mrb[0].mxu0
      %v802 = vadd.f32 %v435, %v801
      %v803 = vpop.f32.mrb[0].mxu0
      %804 = vmatprep.mubr.f32.mxu0 0.0
      %805 = vmatmul.mubr.f32.gmra.mrb[0].mxu0 %v505
      %v806 = vpop.f32.mrb[0].mxu0
      %v807 = vadd.f32 %v435, %v806
      %v808 = vpop.f32.mrb[0].mxu0
      %809 = vmatprep.mubr.f32.mxu0 0.0
      %810 = vmatmul.mubr.f32.gmra.mrb[0].mxu0 %v508
      %v811 = vpop.f32.mrb[0].mxu0
      %v812 = vadd.f32 %v435, %v811
      %v813 = vpop.f32.mrb[0].mxu0
      %814 = vmatprep.mubr.f32.mxu0 0.0
      %815 = vmatmul.mubr.f32.gmra.mrb[0].mxu0 %v511
      %v816 = vpop.f32.mrb[0].mxu0
      %v817 = vadd.f32 %v435, %v816
      %v818 = vpop.f32.mrb[0].mxu0
      %819 = vmatprep.mubr.f32.mxu0 0.0
      %820 = vmatmul.mubr.f32.gmra.mrb[0].mxu0 %v514
      %v821 = vpop.f32.mrb[0].mxu0
      %v822 = vadd.f32 %v435, %v821
      %v823 = vpop.f32.mrb[0].mxu0
      %824 = vmatprep.mubr.f32.mxu0 0.0
      %825 = vmatmul.mubr.f32.gmra.mrb[0].mxu0 %v517
      %v826 = vpop.f32.mrb[0].mxu0
      %v827 = vadd.f32 %v435, %v826
      %v828 = vpop.f32.mrb[0].mxu0
      %829 = vmatprep.mubr.f32.mxu0 0.0
      %830 = vmatmul.mubr.f32.gmra.mrb[0].mxu0 %v520
      %v831 = vpop.f32.mrb[0].mxu0
      %v832 = vadd.f32 %v435, %v831
      %v833 = vpop.f32.mrb[0].mxu0
      %834 = vmatprep.mubr.f32.mxu0 0.0
      %835 = vmatmul.mubr.f32.gmra.mrb[0].mxu0 %v523
      %v836 = vpop.f32.mrb[0].mxu0
      %v837 = vadd.f32 %v435, %v836
      %v838 = vpop.f32.mrb[0].mxu0
      %839 = vmatprep.mubr.f32.mxu0 0.0
      %840 = vmatmul.mubr.f32.gmra.mrb[0].mxu0 %v526
      %v841 = vpop.f32.mrb[0].mxu0
      %v842 = vadd.f32 %v435, %v841
      %v843 = vpop.f32.mrb[0].mxu0
      %844 = vmatprep.mubr.f32.mxu0 0.0
      %845 = vmatmul.mubr.f32.gmra.mrb[0].mxu0 %v529
      %v846 = vpop.f32.mrb[0].mxu0
      %v847 = vadd.f32 %v435, %v846
      %v848 = vpop.f32.mrb[0].mxu0
      %849 = vmatprep.mubr.f32.mxu0 0.0
      %850 = vmatmul.mubr.f32.gmra.mrb[0].mxu0 %v532
      %v851 = vpop.f32.mrb[0].mxu0
      %v852 = vadd.f32 %v435, %v851
      %v853 = vpop.f32.mrb[0].mxu0
      %854 = vmatprep.mubr.f32.mxu0 0.0
      %855 = vmatmul.mubr.f32.gmra.mrb[0].mxu0 %v535
      %v856 = vpop.f32.mrb[0].mxu0
      %v857 = vadd.f32 %v435, %v856
      %v858 = vpop.f32.mrb[0].mxu0
      %859 = vmatprep.mubr.f32.mxu0 0.0
      %860 = vmatmul.mubr.f32.gmra.mrb[0].mxu0 %v538
      %v861 = vpop.f32.mrb[0].mxu0
      %v862 = vadd.f32 %v435, %v861
      %v863 = vpop.f32.mrb[0].mxu0
      %864 = vmatprep.mubr.f32.mxu0 0.0
      %865 = vmatmul.mubr.f32.gmra.mrb[0].mxu0 %v541
      %v866 = vpop.f32.mrb[0].mxu0
      %v867 = vadd.f32 %v435, %v866
      %v868 = vpop.f32.mrb[0].mxu0
      %869 = vmatprep.mubr.f32.mxu0 0.0
      %870 = vmatmul.mubr.f32.gmra.mrb[0].mxu0 %v544
      %v871 = vpop.f32.mrb[0].mxu0
      %v872 = vadd.f32 %v435, %v871
      %v873 = vpop.f32.mrb[0].mxu0
      %874 = vmatprep.mubr.f32.mxu0 0.0
      %875 = vmatmul.mubr.f32.gmra.mrb[0].mxu0 %v547
      %v876 = vpop.f32.mrb[0].mxu0
      %v877 = vadd.f32 %v435, %v876
      %v878 = vpop.f32.mrb[0].mxu0
      %879 = vmatprep.mubr.f32.mxu0 0.0
      %880 = vmatmul.mubr.f32.gmra.mrb[0].mxu0 %v550
      %v881 = vpop.f32.mrb[0].mxu0
      %v882 = vadd.f32 %v435, %v881
      %v883 = vpop.f32.mrb[0].mxu0
      %884 = vmatprep.mubr.f32.mxu0 0.0
      %885 = vmatmul.mubr.f32.gmra.mrb[0].mxu0 %v553
      %v886 = vpop.f32.mrb[0].mxu0
      %v887 = vadd.f32 %v435, %v886
      %v888 = vpop.f32.mrb[0].mxu0
      %889 = vmatprep.mubr.f32.mxu0 0.0
      %890 = vmatmul.mubr.f32.gmra.mrb[0].mxu0 %v556
      %v891 = vpop.f32.mrb[0].mxu0
      %v892 = vadd.f32 %v435, %v891
      %v893 = vpop.f32.mrb[0].mxu0
      %894 = vmatprep.mubr.f32.mxu0 0.0
      %895 = vmatmul.mubr.f32.gmra.mrb[0].mxu0 %v559
      %v896 = vpop.f32.mrb[0].mxu0
      %v897 = vadd.f32 %v435, %v896
      %v898 = vpop.f32.mrb[0].mxu0
      %899 = vmatprep.mubr.f32.mxu0 0.0
      %900 = vmatmul.mubr.f32.gmra.mrb[0].mxu0 %v562
      %v901 = vpop.f32.mrb[0].mxu0
      %v902 = vadd.f32 %v435, %v901
      %v903 = vpop.f32.mrb[0].mxu0
      %904 = vmatprep.mubr.f32.mxu0 0.0
      %905 = vmatmul.mubr.f32.gmra.mrb[0].mxu0 %v565
      %v906 = vpop.f32.mrb[0].mxu0
      %v907 = vadd.f32 %v435, %v906
      %v908 = vpop.f32.mrb[0].mxu0
      %909 = vmatprep.mubr.f32.mxu0 0.0
      %910 = vmatmul.mubr.f32.gmra.mrb[0].mxu0 %v568
      %v911 = vpop.f32.mrb[0].mxu0
      %v912 = vadd.f32 %v435, %v911
      %v913 = vpop.f32.mrb[0].mxu0
      %914 = vmatprep.mubr.f32.mxu0 0.0
      %915 = vmatmul.mubr.f32.gmra.mrb[0].mxu0 %v571
      %v916 = vpop.f32.mrb[0].mxu0
      %v917 = vadd.f32 %v435, %v916
      %v918 = vpop.f32.mrb[0].mxu0
      %919 = vmatprep.mubr.f32.mxu0 0.0
      %920 = vmatmul.mubr.f32.gmra.mrb[0].mxu0 %v574
      %v921 = vpop.f32.mrb[0].mxu0
      %v922 = vadd.f32 %v435, %v921
      %v923 = vpop.f32.mrb[0].mxu0
      %924 = vmatprep.mubr.f32.mxu0 0.0
      %925 = vmatmul.mubr.f32.gmra.mrb[0].mxu0 %v577
      %v926 = vpop.f32.mrb[0].mxu0
      %v927 = vadd.f32 %v435, %v926
      %v928 = vpop.f32.mrb[0].mxu0
      %929 = vmatprep.mubr.f32.mxu0 0.0
      %930 = vmatmul.mubr.f32.gmra.mrb[0].mxu0 %v580
      %v931 = vpop.f32.mrb[0].mxu0
      %v932 = vadd.f32 %v435, %v931
      %v933 = vpop.f32.mrb[0].mxu0
      %934 = vmatprep.mubr.f32.mxu0 0.0
      %935 = vmatmul.mubr.f32.gmra.mrb[0].mxu0 %v583
      %v936 = vpop.f32.mrb[0].mxu0
      %v937 = vadd.f32 %v435, %v936
      %v938 = vpop.f32.mrb[0].mxu0
      %939 = vmatprep.mubr.f32.mxu0 0.0
      %940 = vmatmul.mubr.f32.gmra.mrb[0].mxu0 %v586
      %v941 = vpop.f32.mrb[0].mxu0
      %v942 = vadd.f32 %v435, %v941
      %v943 = vpop.f32.mrb[0].mxu0
      %944 = vmatprep.mubr.f32.mxu0 0.0
      %945 = vmatmul.mubr.f32.gmra.mrb[0].mxu0 %v589
      %v946 = vpop.f32.mrb[0].mxu0
      %v947 = vadd.f32 %v435, %v946
      %v948 = vpop.f32.mrb[0].mxu0
      %949 = vmatprep.mubr.f32.mxu0 0.0
      %950 = vmatmul.mubr.f32.gmra.mrb[0].mxu0 %v592
      %v951 = vpop.f32.mrb[0].mxu0
      %v952 = vadd.f32 %v435, %v951
      %v953 = vpop.f32.mrb[0].mxu0
      %954 = vmatprep.mubr.f32.mxu0 0.0
      %955 = vmatmul.mubr.f32.gmra.mrb[0].mxu0 %v595
      %v956 = vpop.f32.mrb[0].mxu0
      %v957 = vadd.f32 %v435, %v956
      %v958 = vpop.f32.mrb[0].mxu0
      %959 = vmatprep.mubr.f32.mxu0 0.0
      %960 = vmatmul.mubr.f32.gmra.mrb[0].mxu0 %v598
      %v961 = vpop.f32.mrb[0].mxu0
      %v962 = vadd.f32 %v435, %v961
      %v963 = vpop.f32.mrb[0].mxu0
      %964 = vmatprep.mubr.f32.mxu0 0.0
      %965 = vmatmul.mubr.f32.gmra.mrb[0].mxu0 %v601
      %v966 = vpop.f32.mrb[0].mxu0
      %v967 = vadd.f32 %v435, %v966
      %v968 = vpop.f32.mrb[0].mxu0
      %969 = vmatprep.mubr.f32.mxu0 0.0
      %970 = vmatmul.mubr.f32.gmra.mrb[0].mxu0 %v604
      %v971 = vpop.f32.mrb[0].mxu0
      %v972 = vadd.f32 %v435, %v971
      %v973 = vpop.f32.mrb[0].mxu0
      %974 = vmatprep.mubr.f32.mxu0 0.0
      %975 = vmatmul.mubr.f32.gmra.mrb[0].mxu0 %v607
      %v976 = vpop.f32.mrb[0].mxu0
      %v977 = vadd.f32 %v435, %v976
      %v978 = vpop.f32.mrb[0].mxu0
      %979 = vmatprep.mubr.f32.mxu0 0.0
      %980 = vmatmul.mubr.f32.gmra.mrb[0].mxu0 %v610
      %v981 = vpop.f32.mrb[0].mxu0
      %v982 = vadd.f32 %v435, %v981
      %v983 = vpop.f32.mrb[0].mxu0
      %984 = vmatprep.mubr.f32.mxu0 0.0
      %985 = vmatmul.mubr.f32.gmra.mrb[0].mxu0 %v613
      %v986 = vpop.f32.mrb[0].mxu0
      %v987 = vadd.f32 %v435, %v986
      %v988 = vpop.f32.mrb[0].mxu0
      %989 = vmatprep.mubr.f32.mxu0 0.0
      %990 = vmatmul.mubr.f32.gmra.mrb[0].mxu0 %v616
      %v991 = vpop.f32.mrb[0].mxu0
      %v992 = vadd.f32 %v435, %v991
      %v993 = vpop.f32.mrb[0].mxu0
      %994 = vmatprep.mubr.f32.mxu0 0.0
      %995 = vmatmul.mubr.f32.gmra.mrb[0].mxu0 %v619
      %v996 = vpop.f32.mrb[0].mxu0
      %v997 = vadd.f32 %v435, %v996
      %v998 = vpop.f32.mrb[0].mxu0
      %999 = vmatprep.mubr.f32.mxu0 0.0
      %1000 = vmatmul.mubr.f32.gmra.mrb[0].mxu0 %v622
      %v1001 = vpop.f32.mrb[0].mxu0
      %v1002 = vadd.f32 %v435, %v1001
      %v1003 = vpop.f32.mrb[0].mxu0
      %1004 = vmatprep.mubr.f32.mxu0 0.0
      %1005 = vmatmul.mubr.f32.gmra.mrb[0].mxu0 %v625
      %v1006 = vpop.f32.mrb[0].mxu0
      %v1007 = vadd.f32 %v435, %v1006
      %v1008 = vpop.f32.mrb[0].mxu0
      %1009 = vmatprep.mubr.f32.mxu0 0.0
      %1010 = vmatmul.mubr.f32.gmra.mrb[0].mxu0 %v628
      %v1011 = vpop.f32.mrb[0].mxu0
      %v1012 = vadd.f32 %v435, %v1011
      %v1013 = vpop.f32.mrb[0].mxu0
      %1014 = vdwg.mxu0
      %v1015 = vmul.f32 %v697, 0.70710677
      %v1016 = vmul.f32 %v702, 0.70710677
      %v1017 = vmul.f32 %v707, 0.70710677
      %v1018 = vmul.f32 %v712, 0.70710677
      %v1019 = vmul.f32 %v717, 0.70710677
      %v1020 = vmul.f32 %v722, 0.70710677
      %v1021 = vmul.f32 %v727, 0.70710677
      %v1022 = vmul.f32 %v732, 0.70710677
      %v1023 = vmul.f32 %v737, 0.70710677
      %v1024 = vmul.f32 %v742, 0.70710677
      %v1025 = vmul.f32 %v747, 0.70710677
      %v1026 = vmul.f32 %v752, 0.70710677
      %v1027 = vmul.f32 %v757, 0.70710677
      %v1028 = vmul.f32 %v762, 0.70710677
      %v1029 = vmul.f32 %v767, 0.70710677
      %v1030 = vmul.f32 %v772, 0.70710677
      %v1031 = vmul.f32 %v777, 0.70710677
      %v1032 = vmul.f32 %v782, 0.70710677
      %v1033 = vmul.f32 %v787, 0.70710677
      %v1034 = vmul.f32 %v792, 0.70710677
      %v1035 = vmul.f32 %v797, 0.70710677
      %v1036 = vmul.f32 %v802, 0.70710677
      %v1037 = vmul.f32 %v807, 0.70710677
      %v1038 = vmul.f32 %v812, 0.70710677
      %v1039 = vmul.f32 %v817, 0.70710677
      %v1040 = vmul.f32 %v822, 0.70710677
      %v1041 = vmul.f32 %v827, 0.70710677
      %v1042 = vmul.f32 %v832, 0.70710677
      %v1043 = vmul.f32 %v837, 0.70710677
      %v1044 = vmul.f32 %v842, 0.70710677
      %v1045 = vmul.f32 %v847, 0.70710677
      %v1046 = vmul.f32 %v852, 0.70710677
      %v1047 = vmul.f32 %v857, 0.70710677
      %v1048 = vmul.f32 %v862, 0.70710677
      %v1049 = vmul.f32 %v867, 0.70710677
      %v1050 = vmul.f32 %v872, 0.70710677
      %v1051 = vmul.f32 %v877, 0.70710677
      %v1052 = vmul.f32 %v882, 0.70710677
      %v1053 = vmul.f32 %v887, 0.70710677
      %v1054 = vmul.f32 %v892, 0.70710677
      %v1055 = vmul.f32 %v897, 0.70710677
      %v1056 = vmul.f32 %v902, 0.70710677
      %v1057 = vmul.f32 %v907, 0.70710677
      %v1058 = vmul.f32 %v912, 0.70710677
      %v1059 = vmul.f32 %v917, 0.70710677
      %v1060 = vmul.f32 %v922, 0.70710677
      %v1061 = vmul.f32 %v927, 0.70710677
      %v1062 = vmul.f32 %v932, 0.70710677
      %v1063 = vmul.f32 %v937, 0.70710677
      %v1064 = vmul.f32 %v942, 0.70710677
      %v1065 = vmul.f32 %v947, 0.70710677
      %v1066 = vmul.f32 %v952, 0.70710677
      %v1067 = vmul.f32 %v957, 0.70710677
      %v1068 = vmul.f32 %v962, 0.70710677
      %v1069 = vmul.f32 %v967, 0.70710677
      %v1070 = vmul.f32 %v972, 0.70710677
      %v1071 = vmul.f32 %v977, 0.70710677
      %v1072 = vmul.f32 %v982, 0.70710677
      %v1073 = vmul.f32 %v987, 0.70710677
      %v1074 = vmul.f32 %v992, 0.70710677
      %v1075 = vmul.f32 %v997, 0.70710677
      %v1076 = vmul.f32 %v1002, 0.70710677
      %v1077 = vmul.f32 %v1007, 0.70710677
      %v1078 = vmul.f32 %v1012, 0.70710677
      %v1079 = vand.u32 2147483647, %v1015
      %v1080 = vand.u32 2147483647, %v1016
      %v1081 = vand.u32 2147483647, %v1017
      %v1082 = vand.u32 2147483647, %v1018
      %v1083 = vand.u32 2147483647, %v1019
      %v1084 = vand.u32 2147483647, %v1020
      %v1085 = vand.u32 2147483647, %v1021
      %v1086 = vand.u32 2147483647, %v1022
      %v1087 = vand.u32 2147483647, %v1023
      %v1088 = vand.u32 2147483647, %v1024
      %v1089 = vand.u32 2147483647, %v1025
      %v1090 = vand.u32 2147483647, %v1026
      %v1091 = vand.u32 2147483647, %v1027
      %v1092 = vand.u32 2147483647, %v1028
      %v1093 = vand.u32 2147483647, %v1029
      %v1094 = vand.u32 2147483647, %v1030
      %v1095 = vand.u32 2147483647, %v1031
      %v1096 = vand.u32 2147483647, %v1032
      %v1097 = vand.u32 2147483647, %v1033
      %v1098 = vand.u32 2147483647, %v1034
      %v1099 = vand.u32 2147483647, %v1035
      %v1100 = vand.u32 2147483647, %v1036
      %v1101 = vand.u32 2147483647, %v1037
      %v1102 = vand.u32 2147483647, %v1038
      %v1103 = vand.u32 2147483647, %v1039
      %v1104 = vand.u32 2147483647, %v1040
      %v1105 = vand.u32 2147483647, %v1041
      %v1106 = vand.u32 2147483647, %v1042
      %v1107 = vand.u32 2147483647, %v1043
      %v1108 = vand.u32 2147483647, %v1044
      %v1109 = vand.u32 2147483647, %v1045
      %v1110 = vand.u32 2147483647, %v1046
      %v1111 = vand.u32 2147483647, %v1047
      %v1112 = vand.u32 2147483647, %v1048
      %v1113 = vand.u32 2147483647, %v1049
      %v1114 = vand.u32 2147483647, %v1050
      %v1115 = vand.u32 2147483647, %v1051
      %v1116 = vand.u32 2147483647, %v1052
      %v1117 = vand.u32 2147483647, %v1053
      %v1118 = vand.u32 2147483647, %v1054
      %v1119 = vand.u32 2147483647, %v1055
      %v1120 = vand.u32 2147483647, %v1056
      %v1121 = vand.u32 2147483647, %v1057
      %v1122 = vand.u32 2147483647, %v1058
      %v1123 = vand.u32 2147483647, %v1059
      %v1124 = vand.u32 2147483647, %v1060
      %v1125 = vand.u32 2147483647, %v1061
      %v1126 = vand.u32 2147483647, %v1062
      %v1127 = vand.u32 2147483647, %v1063
      %v1128 = vand.u32 2147483647, %v1064
      %v1129 = vand.u32 2147483647, %v1065
      %v1130 = vand.u32 2147483647, %v1066
      %v1131 = vand.u32 2147483647, %v1067
      %v1132 = vand.u32 2147483647, %v1068
      %v1133 = vand.u32 2147483647, %v1069
      %v1134 = vand.u32 2147483647, %v1070
      %v1135 = vand.u32 2147483647, %v1071
      %v1136 = vand.u32 2147483647, %v1072
      %v1137 = vand.u32 2147483647, %v1073
      %v1138 = vand.u32 2147483647, %v1074
      %v1139 = vand.u32 2147483647, %v1075
      %v1140 = vand.u32 2147483647, %v1076
      %v1141 = vand.u32 2147483647, %v1077
      %v1142 = vand.u32 2147483647, %v1078
      %v1143 = vmul.f32 %v1079, 0.3275911
      %v1144 = vmul.f32 %v1080, 0.3275911
      %v1145 = vmul.f32 %v1081, 0.3275911
      %v1146 = vmul.f32 %v1082, 0.3275911
      %v1147 = vmul.f32 %v1083, 0.3275911
      %v1148 = vmul.f32 %v1084, 0.3275911
      %v1149 = vmul.f32 %v1085, 0.3275911
      %v1150 = vmul.f32 %v1086, 0.3275911
      %v1151 = vmul.f32 %v1087, 0.3275911
      %v1152 = vmul.f32 %v1088, 0.3275911
      %v1153 = vmul.f32 %v1089, 0.3275911
      %v1154 = vmul.f32 %v1090, 0.3275911
      %v1155 = vmul.f32 %v1091, 0.3275911
      %v1156 = vmul.f32 %v1092, 0.3275911
      %v1157 = vmul.f32 %v1093, 0.3275911
      %v1158 = vmul.f32 %v1094, 0.3275911
      %v1159 = vmul.f32 %v1095, 0.3275911
      %v1160 = vmul.f32 %v1096, 0.3275911
      %v1161 = vmul.f32 %v1097, 0.3275911
      %v1162 = vmul.f32 %v1098, 0.3275911
      %v1163 = vmul.f32 %v1099, 0.3275911
      %v1164 = vmul.f32 %v1100, 0.3275911
      %v1165 = vmul.f32 %v1101, 0.3275911
      %v1166 = vmul.f32 %v1102, 0.3275911
      %v1167 = vmul.f32 %v1103, 0.3275911
      %v1168 = vmul.f32 %v1104, 0.3275911
      %v1169 = vmul.f32 %v1105, 0.3275911
      %v1170 = vmul.f32 %v1106, 0.3275911
      %v1171 = vmul.f32 %v1107, 0.3275911
      %v1172 = vmul.f32 %v1108, 0.3275911
      %v1173 = vmul.f32 %v1109, 0.3275911
      %v1174 = vmul.f32 %v1110, 0.3275911
      %v1175 = vmul.f32 %v1111, 0.3275911
      %v1176 = vmul.f32 %v1112, 0.3275911
      %v1177 = vmul.f32 %v1113, 0.3275911
      %v1178 = vmul.f32 %v1114, 0.3275911
      %v1179 = vmul.f32 %v1115, 0.3275911
      %v1180 = vmul.f32 %v1116, 0.3275911
      %v1181 = vmul.f32 %v1117, 0.3275911
      %v1182 = vmul.f32 %v1118, 0.3275911
      %v1183 = vmul.f32 %v1119, 0.3275911
      %v1184 = vmul.f32 %v1120, 0.3275911
      %v1185 = vmul.f32 %v1121, 0.3275911
      %v1186 = vmul.f32 %v1122, 0.3275911
      %v1187 = vmul.f32 %v1123, 0.3275911
      %v1188 = vmul.f32 %v1124, 0.3275911
      %v1189 = vmul.f32 %v1125, 0.3275911
      %v1190 = vmul.f32 %v1126, 0.3275911
      %v1191 = vmul.f32 %v1127, 0.3275911
      %v1192 = vmul.f32 %v1128, 0.3275911
      %v1193 = vmul.f32 %v1129, 0.3275911
      %v1194 = vmul.f32 %v1130, 0.3275911
      %v1195 = vmul.f32 %v1131, 0.3275911
      %v1196 = vmul.f32 %v1132, 0.3275911
      %v1197 = vmul.f32 %v1133, 0.3275911
      %v1198 = vmul.f32 %v1134, 0.3275911
      %v1199 = vmul.f32 %v1135, 0.3275911
      %v1200 = vmul.f32 %v1136, 0.3275911
      %v1201 = vmul.f32 %v1137, 0.3275911
      %v1202 = vmul.f32 %v1138, 0.3275911
      %v1203 = vmul.f32 %v1139, 0.3275911
      %v1204 = vmul.f32 %v1140, 0.3275911
      %v1205 = vmul.f32 %v1141, 0.3275911
      %v1206 = vmul.f32 %v1142, 0.3275911
      %v1207 = vadd.f32 %v1143, 1.0
      %v1208 = vadd.f32 %v1144, 1.0
      %v1209 = vadd.f32 %v1145, 1.0
      %v1210 = vadd.f32 %v1146, 1.0
      %v1211 = vadd.f32 %v1147, 1.0
      %v1212 = vadd.f32 %v1148, 1.0
      %v1213 = vadd.f32 %v1149, 1.0
      %v1214 = vadd.f32 %v1150, 1.0
      %v1215 = vadd.f32 %v1151, 1.0
      %v1216 = vadd.f32 %v1152, 1.0
      %v1217 = vadd.f32 %v1153, 1.0
      %v1218 = vadd.f32 %v1154, 1.0
      %v1219 = vadd.f32 %v1155, 1.0
      %v1220 = vadd.f32 %v1156, 1.0
      %v1221 = vadd.f32 %v1157, 1.0
      %v1222 = vadd.f32 %v1158, 1.0
      %v1223 = vadd.f32 %v1159, 1.0
      %v1224 = vadd.f32 %v1160, 1.0
      %v1225 = vadd.f32 %v1161, 1.0
      %v1226 = vadd.f32 %v1162, 1.0
      %v1227 = vadd.f32 %v1163, 1.0
      %v1228 = vadd.f32 %v1164, 1.0
      %v1229 = vadd.f32 %v1165, 1.0
      %v1230 = vadd.f32 %v1166, 1.0
      %v1231 = vadd.f32 %v1167, 1.0
      %v1232 = vadd.f32 %v1168, 1.0
      %v1233 = vadd.f32 %v1169, 1.0
      %v1234 = vadd.f32 %v1170, 1.0
      %v1235 = vadd.f32 %v1171, 1.0
      %v1236 = vadd.f32 %v1172, 1.0
      %v1237 = vadd.f32 %v1173, 1.0
      %v1238 = vadd.f32 %v1174, 1.0
      %v1239 = vadd.f32 %v1175, 1.0
      %v1240 = vadd.f32 %v1176, 1.0
      %v1241 = vadd.f32 %v1177, 1.0
      %v1242 = vadd.f32 %v1178, 1.0
      %v1243 = vadd.f32 %v1179, 1.0
      %v1244 = vadd.f32 %v1180, 1.0
      %v1245 = vadd.f32 %v1181, 1.0
      %v1246 = vadd.f32 %v1182, 1.0
      %v1247 = vadd.f32 %v1183, 1.0
      %v1248 = vadd.f32 %v1184, 1.0
      %v1249 = vadd.f32 %v1185, 1.0
      %v1250 = vadd.f32 %v1186, 1.0
      %v1251 = vadd.f32 %v1187, 1.0
      %v1252 = vadd.f32 %v1188, 1.0
      %v1253 = vadd.f32 %v1189, 1.0
      %v1254 = vadd.f32 %v1190, 1.0
      %v1255 = vadd.f32 %v1191, 1.0
      %v1256 = vadd.f32 %v1192, 1.0
      %v1257 = vadd.f32 %v1193, 1.0
      %v1258 = vadd.f32 %v1194, 1.0
      %v1259 = vadd.f32 %v1195, 1.0
      %v1260 = vadd.f32 %v1196, 1.0
      %v1261 = vadd.f32 %v1197, 1.0
      %v1262 = vadd.f32 %v1198, 1.0
      %v1263 = vadd.f32 %v1199, 1.0
      %v1264 = vadd.f32 %v1200, 1.0
      %v1265 = vadd.f32 %v1201, 1.0
      %v1266 = vadd.f32 %v1202, 1.0
      %v1267 = vadd.f32 %v1203, 1.0
      %v1268 = vadd.f32 %v1204, 1.0
      %v1269 = vadd.f32 %v1205, 1.0
      %v1270 = vadd.f32 %v1206, 1.0
      %v1271 = vrcp.pop %v1207
      %v1272 = vmul.f32 1.0, %v1271
      %v1273 = vrcp.pop %v1208
      %v1274 = vmul.f32 1.0, %v1273
      %v1275 = vrcp.pop %v1209
      %v1276 = vmul.f32 1.0, %v1275
      %v1277 = vrcp.pop %v1210
      %v1278 = vmul.f32 1.0, %v1277
      %v1279 = vrcp.pop %v1211
      %v1280 = vmul.f32 1.0, %v1279
      %v1281 = vrcp.pop %v1212
      %v1282 = vmul.f32 1.0, %v1281
      %v1283 = vrcp.pop %v1213
      %v1284 = vmul.f32 1.0, %v1283
      %v1285 = vrcp.pop %v1214
      %v1286 = vmul.f32 1.0, %v1285
      %v1287 = vrcp.pop %v1215
      %v1288 = vmul.f32 1.0, %v1287
      %v1289 = vrcp.pop %v1216
      %v1290 = vmul.f32 1.0, %v1289
      %v1291 = vrcp.pop %v1217
      %v1292 = vmul.f32 1.0, %v1291
      %v1293 = vrcp.pop %v1218
      %v1294 = vmul.f32 1.0, %v1293
      %v1295 = vrcp.pop %v1219
      %v1296 = vmul.f32 1.0, %v1295
      %v1297 = vrcp.pop %v1220
      %v1298 = vmul.f32 1.0, %v1297
      %v1299 = vrcp.pop %v1221
      %v1300 = vmul.f32 1.0, %v1299
      %v1301 = vrcp.pop %v1222
      %v1302 = vmul.f32 1.0, %v1301
      %v1303 = vrcp.pop %v1223
      %v1304 = vmul.f32 1.0, %v1303
      %v1305 = vrcp.pop %v1224
      %v1306 = vmul.f32 1.0, %v1305
      %v1307 = vrcp.pop %v1225
      %v1308 = vmul.f32 1.0, %v1307
      %v1309 = vrcp.pop %v1226
      %v1310 = vmul.f32 1.0, %v1309
      %v1311 = vrcp.pop %v1227
      %v1312 = vmul.f32 1.0, %v1311
      %v1313 = vrcp.pop %v1228
      %v1314 = vmul.f32 1.0, %v1313
      %v1315 = vrcp.pop %v1229
      %v1316 = vmul.f32 1.0, %v1315
      %v1317 = vrcp.pop %v1230
      %v1318 = vmul.f32 1.0, %v1317
      %v1319 = vrcp.pop %v1231
      %v1320 = vmul.f32 1.0, %v1319
      %v1321 = vrcp.pop %v1232
      %v1322 = vmul.f32 1.0, %v1321
      %v1323 = vrcp.pop %v1233
      %v1324 = vmul.f32 1.0, %v1323
      %v1325 = vrcp.pop %v1234
      %v1326 = vmul.f32 1.0, %v1325
      %v1327 = vrcp.pop %v1235
      %v1328 = vmul.f32 1.0, %v1327
      %v1329 = vrcp.pop %v1236
      %v1330 = vmul.f32 1.0, %v1329
      %v1331 = vrcp.pop %v1237
      %v1332 = vmul.f32 1.0, %v1331
      %v1333 = vrcp.pop %v1238
      %v1334 = vmul.f32 1.0, %v1333
      %v1335 = vrcp.pop %v1239
      %v1336 = vmul.f32 1.0, %v1335
      %v1337 = vrcp.pop %v1240
      %v1338 = vmul.f32 1.0, %v1337
      %v1339 = vrcp.pop %v1241
      %v1340 = vmul.f32 1.0, %v1339
      %v1341 = vrcp.pop %v1242
      %v1342 = vmul.f32 1.0, %v1341
      %v1343 = vrcp.pop %v1243
      %v1344 = vmul.f32 1.0, %v1343
      %v1345 = vrcp.pop %v1244
      %v1346 = vmul.f32 1.0, %v1345
      %v1347 = vrcp.pop %v1245
      %v1348 = vmul.f32 1.0, %v1347
      %v1349 = vrcp.pop %v1246
      %v1350 = vmul.f32 1.0, %v1349
      %v1351 = vrcp.pop %v1247
      %v1352 = vmul.f32 1.0, %v1351
      %v1353 = vrcp.pop %v1248
      %v1354 = vmul.f32 1.0, %v1353
      %v1355 = vrcp.pop %v1249
      %v1356 = vmul.f32 1.0, %v1355
      %v1357 = vrcp.pop %v1250
      %v1358 = vmul.f32 1.0, %v1357
      %v1359 = vrcp.pop %v1251
      %v1360 = vmul.f32 1.0, %v1359
      %v1361 = vrcp.pop %v1252
      %v1362 = vmul.f32 1.0, %v1361
      %v1363 = vrcp.pop %v1253
      %v1364 = vmul.f32 1.0, %v1363
      %v1365 = vrcp.pop %v1254
      %v1366 = vmul.f32 1.0, %v1365
      %v1367 = vrcp.pop %v1255
      %v1368 = vmul.f32 1.0, %v1367
      %v1369 = vrcp.pop %v1256
      %v1370 = vmul.f32 1.0, %v1369
      %v1371 = vrcp.pop %v1257
      %v1372 = vmul.f32 1.0, %v1371
      %v1373 = vrcp.pop %v1258
      %v1374 = vmul.f32 1.0, %v1373
      %v1375 = vrcp.pop %v1259
      %v1376 = vmul.f32 1.0, %v1375
      %v1377 = vrcp.pop %v1260
      %v1378 = vmul.f32 1.0, %v1377
      %v1379 = vrcp.pop %v1261
      %v1380 = vmul.f32 1.0, %v1379
      %v1381 = vrcp.pop %v1262
      %v1382 = vmul.f32 1.0, %v1381
      %v1383 = vrcp.pop %v1263
      %v1384 = vmul.f32 1.0, %v1383
      %v1385 = vrcp.pop %v1264
      %v1386 = vmul.f32 1.0, %v1385
      %v1387 = vrcp.pop %v1265
      %v1388 = vmul.f32 1.0, %v1387
      %v1389 = vrcp.pop %v1266
      %v1390 = vmul.f32 1.0, %v1389
      %v1391 = vrcp.pop %v1267
      %v1392 = vmul.f32 1.0, %v1391
      %v1393 = vrcp.pop %v1268
      %v1394 = vmul.f32 1.0, %v1393
      %v1395 = vrcp.pop %v1269
      %v1396 = vmul.f32 1.0, %v1395
      %v1397 = vrcp.pop %v1270
      %v1398 = vmul.f32 1.0, %v1397
      %v1399 = vmul.f32 %v1272, 1.0614054
      %v1400 = vmul.f32 %v1274, 1.0614054
      %v1401 = vmul.f32 %v1276, 1.0614054
      %v1402 = vmul.f32 %v1278, 1.0614054
      %v1403 = vmul.f32 %v1280, 1.0614054
      %v1404 = vmul.f32 %v1282, 1.0614054
      %v1405 = vmul.f32 %v1284, 1.0614054
      %v1406 = vmul.f32 %v1286, 1.0614054
      %v1407 = vmul.f32 %v1288, 1.0614054
      %v1408 = vmul.f32 %v1290, 1.0614054
      %v1409 = vmul.f32 %v1292, 1.0614054
      %v1410 = vmul.f32 %v1294, 1.0614054
      %v1411 = vmul.f32 %v1296, 1.0614054
      %v1412 = vmul.f32 %v1298, 1.0614054
      %v1413 = vmul.f32 %v1300, 1.0614054
      %v1414 = vmul.f32 %v1302, 1.0614054
      %v1415 = vmul.f32 %v1304, 1.0614054
      %v1416 = vmul.f32 %v1306, 1.0614054
      %v1417 = vmul.f32 %v1308, 1.0614054
      %v1418 = vmul.f32 %v1310, 1.0614054
      %v1419 = vmul.f32 %v1312, 1.0614054
      %v1420 = vmul.f32 %v1314, 1.0614054
      %v1421 = vmul.f32 %v1316, 1.0614054
      %v1422 = vmul.f32 %v1318, 1.0614054
      %v1423 = vmul.f32 %v1320, 1.0614054
      %v1424 = vmul.f32 %v1322, 1.0614054
      %v1425 = vmul.f32 %v1324, 1.0614054
      %v1426 = vmul.f32 %v1326, 1.0614054
      %v1427 = vmul.f32 %v1328, 1.0614054
      %v1428 = vmul.f32 %v1330, 1.0614054
      %v1429 = vmul.f32 %v1332, 1.0614054
      %v1430 = vmul.f32 %v1334, 1.0614054
      %v1431 = vmul.f32 %v1336, 1.0614054
      %v1432 = vmul.f32 %v1338, 1.0614054
      %v1433 = vmul.f32 %v1340, 1.0614054
      %v1434 = vmul.f32 %v1342, 1.0614054
      %v1435 = vmul.f32 %v1344, 1.0614054
      %v1436 = vmul.f32 %v1346, 1.0614054
      %v1437 = vmul.f32 %v1348, 1.0614054
      %v1438 = vmul.f32 %v1350, 1.0614054
      %v1439 = vmul.f32 %v1352, 1.0614054
      %v1440 = vmul.f32 %v1354, 1.0614054
      %v1441 = vmul.f32 %v1356, 1.0614054
      %v1442 = vmul.f32 %v1358, 1.0614054
      %v1443 = vmul.f32 %v1360, 1.0614054
      %v1444 = vmul.f32 %v1362, 1.0614054
      %v1445 = vmul.f32 %v1364, 1.0614054
      %v1446 = vmul.f32 %v1366, 1.0614054
      %v1447 = vmul.f32 %v1368, 1.0614054
      %v1448 = vmul.f32 %v1370, 1.0614054
      %v1449 = vmul.f32 %v1372, 1.0614054
      %v1450 = vmul.f32 %v1374, 1.0614054
      %v1451 = vmul.f32 %v1376, 1.0614054
      %v1452 = vmul.f32 %v1378, 1.0614054
      %v1453 = vmul.f32 %v1380, 1.0614054
      %v1454 = vmul.f32 %v1382, 1.0614054
      %v1455 = vmul.f32 %v1384, 1.0614054
      %v1456 = vmul.f32 %v1386, 1.0614054
      %v1457 = vmul.f32 %v1388, 1.0614054
      %v1458 = vmul.f32 %v1390, 1.0614054
      %v1459 = vmul.f32 %v1392, 1.0614054
      %v1460 = vmul.f32 %v1394, 1.0614054
      %v1461 = vmul.f32 %v1396, 1.0614054
      %v1462 = vmul.f32 %v1398, 1.0614054
      %v1463 = vadd.f32 %v1399, -1.4531521
      %v1464 = vadd.f32 %v1400, -1.4531521
      %v1465 = vadd.f32 %v1401, -1.4531521
      %v1466 = vadd.f32 %v1402, -1.4531521
      %v1467 = vadd.f32 %v1403, -1.4531521
      %v1468 = vadd.f32 %v1404, -1.4531521
      %v1469 = vadd.f32 %v1405, -1.4531521
      %v1470 = vadd.f32 %v1406, -1.4531521
      %v1471 = vadd.f32 %v1407, -1.4531521
      %v1472 = vadd.f32 %v1408, -1.4531521
      %v1473 = vadd.f32 %v1409, -1.4531521
      %v1474 = vadd.f32 %v1410, -1.4531521
      %v1475 = vadd.f32 %v1411, -1.4531521
      %v1476 = vadd.f32 %v1412, -1.4531521
      %v1477 = vadd.f32 %v1413, -1.4531521
      %v1478 = vadd.f32 %v1414, -1.4531521
      %v1479 = vadd.f32 %v1415, -1.4531521
      %v1480 = vadd.f32 %v1416, -1.4531521
      %v1481 = vadd.f32 %v1417, -1.4531521
      %v1482 = vadd.f32 %v1418, -1.4531521
      %v1483 = vadd.f32 %v1419, -1.4531521
      %v1484 = vadd.f32 %v1420, -1.4531521
      %v1485 = vadd.f32 %v1421, -1.4531521
      %v1486 = vadd.f32 %v1422, -1.4531521
      %v1487 = vadd.f32 %v1423, -1.4531521
      %v1488 = vadd.f32 %v1424, -1.4531521
      %v1489 = vadd.f32 %v1425, -1.4531521
      %v1490 = vadd.f32 %v1426, -1.4531521
      %v1491 = vadd.f32 %v1427, -1.4531521
      %v1492 = vadd.f32 %v1428, -1.4531521
      %v1493 = vadd.f32 %v1429, -1.4531521
      %v1494 = vadd.f32 %v1430, -1.4531521
      %v1495 = vadd.f32 %v1431, -1.4531521
      %v1496 = vadd.f32 %v1432, -1.4531521
      %v1497 = vadd.f32 %v1433, -1.4531521
      %v1498 = vadd.f32 %v1434, -1.4531521
      %v1499 = vadd.f32 %v1435, -1.4531521
      %v1500 = vadd.f32 %v1436, -1.4531521
      %v1501 = vadd.f32 %v1437, -1.4531521
      %v1502 = vadd.f32 %v1438, -1.4531521
      %v1503 = vadd.f32 %v1439, -1.4531521
      %v1504 = vadd.f32 %v1440, -1.4531521
      %v1505 = vadd.f32 %v1441, -1.4531521
      %v1506 = vadd.f32 %v1442, -1.4531521
      %v1507 = vadd.f32 %v1443, -1.4531521
      %v1508 = vadd.f32 %v1444, -1.4531521
      %v1509 = vadd.f32 %v1445, -1.4531521
      %v1510 = vadd.f32 %v1446, -1.4531521
      %v1511 = vadd.f32 %v1447, -1.4531521
      %v1512 = vadd.f32 %v1448, -1.4531521
      %v1513 = vadd.f32 %v1449, -1.4531521
      %v1514 = vadd.f32 %v1450, -1.4531521
      %v1515 = vadd.f32 %v1451, -1.4531521
      %v1516 = vadd.f32 %v1452, -1.4531521
      %v1517 = vadd.f32 %v1453, -1.4531521
      %v1518 = vadd.f32 %v1454, -1.4531521
      %v1519 = vadd.f32 %v1455, -1.4531521
      %v1520 = vadd.f32 %v1456, -1.4531521
      %v1521 = vadd.f32 %v1457, -1.4531521
      %v1522 = vadd.f32 %v1458, -1.4531521
      %v1523 = vadd.f32 %v1459, -1.4531521
      %v1524 = vadd.f32 %v1460, -1.4531521
      %v1525 = vadd.f32 %v1461, -1.4531521
      %v1526 = vadd.f32 %v1462, -1.4531521
      %v1527 = vmul.f32 %v1272, %v1463
      %v1528 = vmul.f32 %v1274, %v1464
      %v1529 = vmul.f32 %v1276, %v1465
      %v1530 = vmul.f32 %v1278, %v1466
      %v1531 = vmul.f32 %v1280, %v1467
      %v1532 = vmul.f32 %v1282, %v1468
      %v1533 = vmul.f32 %v1284, %v1469
      %v1534 = vmul.f32 %v1286, %v1470
      %v1535 = vmul.f32 %v1288, %v1471
      %v1536 = vmul.f32 %v1290, %v1472
      %v1537 = vmul.f32 %v1292, %v1473
      %v1538 = vmul.f32 %v1294, %v1474
      %v1539 = vmul.f32 %v1296, %v1475
      %v1540 = vmul.f32 %v1298, %v1476
      %v1541 = vmul.f32 %v1300, %v1477
      %v1542 = vmul.f32 %v1302, %v1478
      %v1543 = vmul.f32 %v1304, %v1479
      %v1544 = vmul.f32 %v1306, %v1480
      %v1545 = vmul.f32 %v1308, %v1481
      %v1546 = vmul.f32 %v1310, %v1482
      %v1547 = vmul.f32 %v1312, %v1483
      %v1548 = vmul.f32 %v1314, %v1484
      %v1549 = vmul.f32 %v1316, %v1485
      %v1550 = vmul.f32 %v1318, %v1486
      %v1551 = vmul.f32 %v1320, %v1487
      %v1552 = vmul.f32 %v1322, %v1488
      %v1553 = vmul.f32 %v1324, %v1489
      %v1554 = vmul.f32 %v1326, %v1490
      %v1555 = vmul.f32 %v1328, %v1491
      %v1556 = vmul.f32 %v1330, %v1492
      %v1557 = vmul.f32 %v1332, %v1493
      %v1558 = vmul.f32 %v1334, %v1494
      %v1559 = vmul.f32 %v1336, %v1495
      %v1560 = vmul.f32 %v1338, %v1496
      %v1561 = vmul.f32 %v1340, %v1497
      %v1562 = vmul.f32 %v1342, %v1498
      %v1563 = vmul.f32 %v1344, %v1499
      %v1564 = vmul.f32 %v1346, %v1500
      %v1565 = vmul.f32 %v1348, %v1501
      %v1566 = vmul.f32 %v1350, %v1502
      %v1567 = vmul.f32 %v1352, %v1503
      %v1568 = vmul.f32 %v1354, %v1504
      %v1569 = vmul.f32 %v1356, %v1505
      %v1570 = vmul.f32 %v1358, %v1506
      %v1571 = vmul.f32 %v1360, %v1507
      %v1572 = vmul.f32 %v1362, %v1508
      %v1573 = vmul.f32 %v1364, %v1509
      %v1574 = vmul.f32 %v1366, %v1510
      %v1575 = vmul.f32 %v1368, %v1511
      %v1576 = vmul.f32 %v1370, %v1512
      %v1577 = vmul.f32 %v1372, %v1513
      %v1578 = vmul.f32 %v1374, %v1514
      %v1579 = vmul.f32 %v1376, %v1515
      %v1580 = vmul.f32 %v1378, %v1516
      %v1581 = vmul.f32 %v1380, %v1517
      %v1582 = vmul.f32 %v1382, %v1518
      %v1583 = vmul.f32 %v1384, %v1519
      %v1584 = vmul.f32 %v1386, %v1520
      %v1585 = vmul.f32 %v1388, %v1521
      %v1586 = vmul.f32 %v1390, %v1522
      %v1587 = vmul.f32 %v1392, %v1523
      %v1588 = vmul.f32 %v1394, %v1524
      %v1589 = vmul.f32 %v1396, %v1525
      %v1590 = vmul.f32 %v1398, %v1526
      %v1591 = vadd.f32 %v1527, 1.4214138
      %v1592 = vadd.f32 %v1528, 1.4214138
      %v1593 = vadd.f32 %v1529, 1.4214138
      %v1594 = vadd.f32 %v1530, 1.4214138
      %v1595 = vadd.f32 %v1531, 1.4214138
      %v1596 = vadd.f32 %v1532, 1.4214138
      %v1597 = vadd.f32 %v1533, 1.4214138
      %v1598 = vadd.f32 %v1534, 1.4214138
      %v1599 = vadd.f32 %v1535, 1.4214138
      %v1600 = vadd.f32 %v1536, 1.4214138
      %v1601 = vadd.f32 %v1537, 1.4214138
      %v1602 = vadd.f32 %v1538, 1.4214138
      %v1603 = vadd.f32 %v1539, 1.4214138
      %v1604 = vadd.f32 %v1540, 1.4214138
      %v1605 = vadd.f32 %v1541, 1.4214138
      %v1606 = vadd.f32 %v1542, 1.4214138
      %v1607 = vadd.f32 %v1543, 1.4214138
      %v1608 = vadd.f32 %v1544, 1.4214138
      %v1609 = vadd.f32 %v1545, 1.4214138
      %v1610 = vadd.f32 %v1546, 1.4214138
      %v1611 = vadd.f32 %v1547, 1.4214138
      %v1612 = vadd.f32 %v1548, 1.4214138
      %v1613 = vadd.f32 %v1549, 1.4214138
      %v1614 = vadd.f32 %v1550, 1.4214138
      %v1615 = vadd.f32 %v1551, 1.4214138
      %v1616 = vadd.f32 %v1552, 1.4214138
      %v1617 = vadd.f32 %v1553, 1.4214138
      %v1618 = vadd.f32 %v1554, 1.4214138
      %v1619 = vadd.f32 %v1555, 1.4214138
      %v1620 = vadd.f32 %v1556, 1.4214138
      %v1621 = vadd.f32 %v1557, 1.4214138
      %v1622 = vadd.f32 %v1558, 1.4214138
      %v1623 = vadd.f32 %v1559, 1.4214138
      %v1624 = vadd.f32 %v1560, 1.4214138
      %v1625 = vadd.f32 %v1561, 1.4214138
      %v1626 = vadd.f32 %v1562, 1.4214138
      %v1627 = vadd.f32 %v1563, 1.4214138
      %v1628 = vadd.f32 %v1564, 1.4214138
      %v1629 = vadd.f32 %v1565, 1.4214138
      %v1630 = vadd.f32 %v1566, 1.4214138
      %v1631 = vadd.f32 %v1567, 1.4214138
      %v1632 = vadd.f32 %v1568, 1.4214138
      %v1633 = vadd.f32 %v1569, 1.4214138
      %v1634 = vadd.f32 %v1570, 1.4214138
      %v1635 = vadd.f32 %v1571, 1.4214138
      %v1636 = vadd.f32 %v1572, 1.4214138
      %v1637 = vadd.f32 %v1573, 1.4214138
      %v1638 = vadd.f32 %v1574, 1.4214138
      %v1639 = vadd.f32 %v1575, 1.4214138
      %v1640 = vadd.f32 %v1576, 1.4214138
      %v1641 = vadd.f32 %v1577, 1.4214138
      %v1642 = vadd.f32 %v1578, 1.4214138
      %v1643 = vadd.f32 %v1579, 1.4214138
      %v1644 = vadd.f32 %v1580, 1.4214138
      %v1645 = vadd.f32 %v1581, 1.4214138
      %v1646 = vadd.f32 %v1582, 1.4214138
      %v1647 = vadd.f32 %v1583, 1.4214138
      %v1648 = vadd.f32 %v1584, 1.4214138
      %v1649 = vadd.f32 %v1585, 1.4214138
      %v1650 = vadd.f32 %v1586, 1.4214138
      %v1651 = vadd.f32 %v1587, 1.4214138
      %v1652 = vadd.f32 %v1588, 1.4214138
      %v1653 = vadd.f32 %v1589, 1.4214138
      %v1654 = vadd.f32 %v1590, 1.4214138
      %v1655 = vmul.f32 %v1272, %v1591
      %v1656 = vmul.f32 %v1274, %v1592
      %v1657 = vmul.f32 %v1276, %v1593
      %v1658 = vmul.f32 %v1278, %v1594
      %v1659 = vmul.f32 %v1280, %v1595
      %v1660 = vmul.f32 %v1282, %v1596
      %v1661 = vmul.f32 %v1284, %v1597
      %v1662 = vmul.f32 %v1286, %v1598
      %v1663 = vmul.f32 %v1288, %v1599
      %v1664 = vmul.f32 %v1290, %v1600
      %v1665 = vmul.f32 %v1292, %v1601
      %v1666 = vmul.f32 %v1294, %v1602
      %v1667 = vmul.f32 %v1296, %v1603
      %v1668 = vmul.f32 %v1298, %v1604
      %v1669 = vmul.f32 %v1300, %v1605
      %v1670 = vmul.f32 %v1302, %v1606
      %v1671 = vmul.f32 %v1304, %v1607
      %v1672 = vmul.f32 %v1306, %v1608
      %v1673 = vmul.f32 %v1308, %v1609
      %v1674 = vmul.f32 %v1310, %v1610
      %v1675 = vmul.f32 %v1312, %v1611
      %v1676 = vmul.f32 %v1314, %v1612
      %v1677 = vmul.f32 %v1316, %v1613
      %v1678 = vmul.f32 %v1318, %v1614
      %v1679 = vmul.f32 %v1320, %v1615
      %v1680 = vmul.f32 %v1322, %v1616
      %v1681 = vmul.f32 %v1324, %v1617
      %v1682 = vmul.f32 %v1326, %v1618
      %v1683 = vmul.f32 %v1328, %v1619
      %v1684 = vmul.f32 %v1330, %v1620
      %v1685 = vmul.f32 %v1332, %v1621
      %v1686 = vmul.f32 %v1334, %v1622
      %v1687 = vmul.f32 %v1336, %v1623
      %v1688 = vmul.f32 %v1338, %v1624
      %v1689 = vmul.f32 %v1340, %v1625
      %v1690 = vmul.f32 %v1342, %v1626
      %v1691 = vmul.f32 %v1344, %v1627
      %v1692 = vmul.f32 %v1346, %v1628
      %v1693 = vmul.f32 %v1348, %v1629
      %v1694 = vmul.f32 %v1350, %v1630
      %v1695 = vmul.f32 %v1352, %v1631
      %v1696 = vmul.f32 %v1354, %v1632
      %v1697 = vmul.f32 %v1356, %v1633
      %v1698 = vmul.f32 %v1358, %v1634
      %v1699 = vmul.f32 %v1360, %v1635
      %v1700 = vmul.f32 %v1362, %v1636
      %v1701 = vmul.f32 %v1364, %v1637
      %v1702 = vmul.f32 %v1366, %v1638
      %v1703 = vmul.f32 %v1368, %v1639
      %v1704 = vmul.f32 %v1370, %v1640
      %v1705 = vmul.f32 %v1372, %v1641
      %v1706 = vmul.f32 %v1374, %v1642
      %v1707 = vmul.f32 %v1376, %v1643
      %v1708 = vmul.f32 %v1378, %v1644
      %v1709 = vmul.f32 %v1380, %v1645
      %v1710 = vmul.f32 %v1382, %v1646
      %v1711 = vmul.f32 %v1384, %v1647
      %v1712 = vmul.f32 %v1386, %v1648
      %v1713 = vmul.f32 %v1388, %v1649
      %v1714 = vmul.f32 %v1390, %v1650
      %v1715 = vmul.f32 %v1392, %v1651
      %v1716 = vmul.f32 %v1394, %v1652
      %v1717 = vmul.f32 %v1396, %v1653
      %v1718 = vmul.f32 %v1398, %v1654
      %v1719 = vadd.f32 %v1655, -0.28449672
      %v1720 = vadd.f32 %v1656, -0.28449672
      %v1721 = vadd.f32 %v1657, -0.28449672
      %v1722 = vadd.f32 %v1658, -0.28449672
      %v1723 = vadd.f32 %v1659, -0.28449672
      %v1724 = vadd.f32 %v1660, -0.28449672
      %v1725 = vadd.f32 %v1661, -0.28449672
      %v1726 = vadd.f32 %v1662, -0.28449672
      %v1727 = vadd.f32 %v1663, -0.28449672
      %v1728 = vadd.f32 %v1664, -0.28449672
      %v1729 = vadd.f32 %v1665, -0.28449672
      %v1730 = vadd.f32 %v1666, -0.28449672
      %v1731 = vadd.f32 %v1667, -0.28449672
      %v1732 = vadd.f32 %v1668, -0.28449672
      %v1733 = vadd.f32 %v1669, -0.28449672
      %v1734 = vadd.f32 %v1670, -0.28449672
      %v1735 = vadd.f32 %v1671, -0.28449672
      %v1736 = vadd.f32 %v1672, -0.28449672
      %v1737 = vadd.f32 %v1673, -0.28449672
      %v1738 = vadd.f32 %v1674, -0.28449672
      %v1739 = vadd.f32 %v1675, -0.28449672
      %v1740 = vadd.f32 %v1676, -0.28449672
      %v1741 = vadd.f32 %v1677, -0.28449672
      %v1742 = vadd.f32 %v1678, -0.28449672
      %v1743 = vadd.f32 %v1679, -0.28449672
      %v1744 = vadd.f32 %v1680, -0.28449672
      %v1745 = vadd.f32 %v1681, -0.28449672
      %v1746 = vadd.f32 %v1682, -0.28449672
      %v1747 = vadd.f32 %v1683, -0.28449672
      %v1748 = vadd.f32 %v1684, -0.28449672
      %v1749 = vadd.f32 %v1685, -0.28449672
      %v1750 = vadd.f32 %v1686, -0.28449672
      %v1751 = vadd.f32 %v1687, -0.28449672
      %v1752 = vadd.f32 %v1688, -0.28449672
      %v1753 = vadd.f32 %v1689, -0.28449672
      %v1754 = vadd.f32 %v1690, -0.28449672
      %v1755 = vadd.f32 %v1691, -0.28449672
      %v1756 = vadd.f32 %v1692, -0.28449672
      %v1757 = vadd.f32 %v1693, -0.28449672
      %v1758 = vadd.f32 %v1694, -0.28449672
      %v1759 = vadd.f32 %v1695, -0.28449672
      %v1760 = vadd.f32 %v1696, -0.28449672
      %v1761 = vadd.f32 %v1697, -0.28449672
      %v1762 = vadd.f32 %v1698, -0.28449672
      %v1763 = vadd.f32 %v1699, -0.28449672
      %v1764 = vadd.f32 %v1700, -0.28449672
      %v1765 = vadd.f32 %v1701, -0.28449672
      %v1766 = vadd.f32 %v1702, -0.28449672
      %v1767 = vadd.f32 %v1703, -0.28449672
      %v1768 = vadd.f32 %v1704, -0.28449672
      %v1769 = vadd.f32 %v1705, -0.28449672
      %v1770 = vadd.f32 %v1706, -0.28449672
      %v1771 = vadd.f32 %v1707, -0.28449672
      %v1772 = vadd.f32 %v1708, -0.28449672
      %v1773 = vadd.f32 %v1709, -0.28449672
      %v1774 = vadd.f32 %v1710, -0.28449672
      %v1775 = vadd.f32 %v1711, -0.28449672
      %v1776 = vadd.f32 %v1712, -0.28449672
      %v1777 = vadd.f32 %v1713, -0.28449672
      %v1778 = vadd.f32 %v1714, -0.28449672
      %v1779 = vadd.f32 %v1715, -0.28449672
      %v1780 = vadd.f32 %v1716, -0.28449672
      %v1781 = vadd.f32 %v1717, -0.28449672
      %v1782 = vadd.f32 %v1718, -0.28449672
      %v1783 = vmul.f32 %v1272, %v1719
      %v1784 = vmul.f32 %v1274, %v1720
      %v1785 = vmul.f32 %v1276, %v1721
      %v1786 = vmul.f32 %v1278, %v1722
      %v1787 = vmul.f32 %v1280, %v1723
      %v1788 = vmul.f32 %v1282, %v1724
      %v1789 = vmul.f32 %v1284, %v1725
      %v1790 = vmul.f32 %v1286, %v1726
      %v1791 = vmul.f32 %v1288, %v1727
      %v1792 = vmul.f32 %v1290, %v1728
      %v1793 = vmul.f32 %v1292, %v1729
      %v1794 = vmul.f32 %v1294, %v1730
      %v1795 = vmul.f32 %v1296, %v1731
      %v1796 = vmul.f32 %v1298, %v1732
      %v1797 = vmul.f32 %v1300, %v1733
      %v1798 = vmul.f32 %v1302, %v1734
      %v1799 = vmul.f32 %v1304, %v1735
      %v1800 = vmul.f32 %v1306, %v1736
      %v1801 = vmul.f32 %v1308, %v1737
      %v1802 = vmul.f32 %v1310, %v1738
      %v1803 = vmul.f32 %v1312, %v1739
      %v1804 = vmul.f32 %v1314, %v1740
      %v1805 = vmul.f32 %v1316, %v1741
      %v1806 = vmul.f32 %v1318, %v1742
      %v1807 = vmul.f32 %v1320, %v1743
      %v1808 = vmul.f32 %v1322, %v1744
      %v1809 = vmul.f32 %v1324, %v1745
      %v1810 = vmul.f32 %v1326, %v1746
      %v1811 = vmul.f32 %v1328, %v1747
      %v1812 = vmul.f32 %v1330, %v1748
      %v1813 = vmul.f32 %v1332, %v1749
      %v1814 = vmul.f32 %v1334, %v1750
      %v1815 = vmul.f32 %v1336, %v1751
      %v1816 = vmul.f32 %v1338, %v1752
      %v1817 = vmul.f32 %v1340, %v1753
      %v1818 = vmul.f32 %v1342, %v1754
      %v1819 = vmul.f32 %v1344, %v1755
      %v1820 = vmul.f32 %v1346, %v1756
      %v1821 = vmul.f32 %v1348, %v1757
      %v1822 = vmul.f32 %v1350, %v1758
      %v1823 = vmul.f32 %v1352, %v1759
      %v1824 = vmul.f32 %v1354, %v1760
      %v1825 = vmul.f32 %v1356, %v1761
      %v1826 = vmul.f32 %v1358, %v1762
      %v1827 = vmul.f32 %v1360, %v1763
      %v1828 = vmul.f32 %v1362, %v1764
      %v1829 = vmul.f32 %v1364, %v1765
      %v1830 = vmul.f32 %v1366, %v1766
      %v1831 = vmul.f32 %v1368, %v1767
      %v1832 = vmul.f32 %v1370, %v1768
      %v1833 = vmul.f32 %v1372, %v1769
      %v1834 = vmul.f32 %v1374, %v1770
      %v1835 = vmul.f32 %v1376, %v1771
      %v1836 = vmul.f32 %v1378, %v1772
      %v1837 = vmul.f32 %v1380, %v1773
      %v1838 = vmul.f32 %v1382, %v1774
      %v1839 = vmul.f32 %v1384, %v1775
      %v1840 = vmul.f32 %v1386, %v1776
      %v1841 = vmul.f32 %v1388, %v1777
      %v1842 = vmul.f32 %v1390, %v1778
      %v1843 = vmul.f32 %v1392, %v1779
      %v1844 = vmul.f32 %v1394, %v1780
      %v1845 = vmul.f32 %v1396, %v1781
      %v1846 = vmul.f32 %v1398, %v1782
      %v1847 = vadd.f32 %v1783, 0.2548296
      %v1848 = vadd.f32 %v1784, 0.2548296
      %v1849 = vadd.f32 %v1785, 0.2548296
      %v1850 = vadd.f32 %v1786, 0.2548296
      %v1851 = vadd.f32 %v1787, 0.2548296
      %v1852 = vadd.f32 %v1788, 0.2548296
      %v1853 = vadd.f32 %v1789, 0.2548296
      %v1854 = vadd.f32 %v1790, 0.2548296
      %v1855 = vadd.f32 %v1791, 0.2548296
      %v1856 = vadd.f32 %v1792, 0.2548296
      %v1857 = vadd.f32 %v1793, 0.2548296
      %v1858 = vadd.f32 %v1794, 0.2548296
      %v1859 = vadd.f32 %v1795, 0.2548296
      %v1860 = vadd.f32 %v1796, 0.2548296
      %v1861 = vadd.f32 %v1797, 0.2548296
      %v1862 = vadd.f32 %v1798, 0.2548296
      %v1863 = vadd.f32 %v1799, 0.2548296
      %v1864 = vadd.f32 %v1800, 0.2548296
      %v1865 = vadd.f32 %v1801, 0.2548296
      %v1866 = vadd.f32 %v1802, 0.2548296
      %v1867 = vadd.f32 %v1803, 0.2548296
      %v1868 = vadd.f32 %v1804, 0.2548296
      %v1869 = vadd.f32 %v1805, 0.2548296
      %v1870 = vadd.f32 %v1806, 0.2548296
      %v1871 = vadd.f32 %v1807, 0.2548296
      %v1872 = vadd.f32 %v1808, 0.2548296
      %v1873 = vadd.f32 %v1809, 0.2548296
      %v1874 = vadd.f32 %v1810, 0.2548296
      %v1875 = vadd.f32 %v1811, 0.2548296
      %v1876 = vadd.f32 %v1812, 0.2548296
      %v1877 = vadd.f32 %v1813, 0.2548296
      %v1878 = vadd.f32 %v1814, 0.2548296
      %v1879 = vadd.f32 %v1815, 0.2548296
      %v1880 = vadd.f32 %v1816, 0.2548296
      %v1881 = vadd.f32 %v1817, 0.2548296
      %v1882 = vadd.f32 %v1818, 0.2548296
      %v1883 = vadd.f32 %v1819, 0.2548296
      %v1884 = vadd.f32 %v1820, 0.2548296
      %v1885 = vadd.f32 %v1821, 0.2548296
      %v1886 = vadd.f32 %v1822, 0.2548296
      %v1887 = vadd.f32 %v1823, 0.2548296
      %v1888 = vadd.f32 %v1824, 0.2548296
      %v1889 = vadd.f32 %v1825, 0.2548296
      %v1890 = vadd.f32 %v1826, 0.2548296
      %v1891 = vadd.f32 %v1827, 0.2548296
      %v1892 = vadd.f32 %v1828, 0.2548296
      %v1893 = vadd.f32 %v1829, 0.2548296
      %v1894 = vadd.f32 %v1830, 0.2548296
      %v1895 = vadd.f32 %v1831, 0.2548296
      %v1896 = vadd.f32 %v1832, 0.2548296
      %v1897 = vadd.f32 %v1833, 0.2548296
      %v1898 = vadd.f32 %v1834, 0.2548296
      %v1899 = vadd.f32 %v1835, 0.2548296
      %v1900 = vadd.f32 %v1836, 0.2548296
      %v1901 = vadd.f32 %v1837, 0.2548296
      %v1902 = vadd.f32 %v1838, 0.2548296
      %v1903 = vadd.f32 %v1839, 0.2548296
      %v1904 = vadd.f32 %v1840, 0.2548296
      %v1905 = vadd.f32 %v1841, 0.2548296
      %v1906 = vadd.f32 %v1842, 0.2548296
      %v1907 = vadd.f32 %v1843, 0.2548296
      %v1908 = vadd.f32 %v1844, 0.2548296
      %v1909 = vadd.f32 %v1845, 0.2548296
      %v1910 = vadd.f32 %v1846, 0.2548296
      %v1911 = vmul.f32 %v1272, %v1847
      %v1912 = vmul.f32 %v1274, %v1848
      %v1913 = vmul.f32 %v1276, %v1849
      %v1914 = vmul.f32 %v1278, %v1850
      %v1915 = vmul.f32 %v1280, %v1851
      %v1916 = vmul.f32 %v1282, %v1852
      %v1917 = vmul.f32 %v1284, %v1853
      %v1918 = vmul.f32 %v1286, %v1854
      %v1919 = vmul.f32 %v1288, %v1855
      %v1920 = vmul.f32 %v1290, %v1856
      %v1921 = vmul.f32 %v1292, %v1857
      %v1922 = vmul.f32 %v1294, %v1858
      %v1923 = vmul.f32 %v1296, %v1859
      %v1924 = vmul.f32 %v1298, %v1860
      %v1925 = vmul.f32 %v1300, %v1861
      %v1926 = vmul.f32 %v1302, %v1862
      %v1927 = vmul.f32 %v1304, %v1863
      %v1928 = vmul.f32 %v1306, %v1864
      %v1929 = vmul.f32 %v1308, %v1865
      %v1930 = vmul.f32 %v1310, %v1866
      %v1931 = vmul.f32 %v1312, %v1867
      %v1932 = vmul.f32 %v1314, %v1868
      %v1933 = vmul.f32 %v1316, %v1869
      %v1934 = vmul.f32 %v1318, %v1870
      %v1935 = vmul.f32 %v1320, %v1871
      %v1936 = vmul.f32 %v1322, %v1872
      %v1937 = vmul.f32 %v1324, %v1873
      %v1938 = vmul.f32 %v1326, %v1874
      %v1939 = vmul.f32 %v1328, %v1875
      %v1940 = vmul.f32 %v1330, %v1876
      %v1941 = vmul.f32 %v1332, %v1877
      %v1942 = vmul.f32 %v1334, %v1878
      %v1943 = vmul.f32 %v1336, %v1879
      %v1944 = vmul.f32 %v1338, %v1880
      %v1945 = vmul.f32 %v1340, %v1881
      %v1946 = vmul.f32 %v1342, %v1882
      %v1947 = vmul.f32 %v1344, %v1883
      %v1948 = vmul.f32 %v1346, %v1884
      %v1949 = vmul.f32 %v1348, %v1885
      %v1950 = vmul.f32 %v1350, %v1886
      %v1951 = vmul.f32 %v1352, %v1887
      %v1952 = vmul.f32 %v1354, %v1888
      %v1953 = vmul.f32 %v1356, %v1889
      %v1954 = vmul.f32 %v1358, %v1890
      %v1955 = vmul.f32 %v1360, %v1891
      %v1956 = vmul.f32 %v1362, %v1892
      %v1957 = vmul.f32 %v1364, %v1893
      %v1958 = vmul.f32 %v1366, %v1894
      %v1959 = vmul.f32 %v1368, %v1895
      %v1960 = vmul.f32 %v1370, %v1896
      %v1961 = vmul.f32 %v1372, %v1897
      %v1962 = vmul.f32 %v1374, %v1898
      %v1963 = vmul.f32 %v1376, %v1899
      %v1964 = vmul.f32 %v1378, %v1900
      %v1965 = vmul.f32 %v1380, %v1901
      %v1966 = vmul.f32 %v1382, %v1902
      %v1967 = vmul.f32 %v1384, %v1903
      %v1968 = vmul.f32 %v1386, %v1904
      %v1969 = vmul.f32 %v1388, %v1905
      %v1970 = vmul.f32 %v1390, %v1906
      %v1971 = vmul.f32 %v1392, %v1907
      %v1972 = vmul.f32 %v1394, %v1908
      %v1973 = vmul.f32 %v1396, %v1909
      %v1974 = vmul.f32 %v1398, %v1910
      %v1975 = vsub.f32 0.0, %v1079
      %v1976 = vsub.f32 0.0, %v1080
      %v1977 = vsub.f32 0.0, %v1081
      %v1978 = vsub.f32 0.0, %v1082
      %v1979 = vsub.f32 0.0, %v1083
      %v1980 = vsub.f32 0.0, %v1084
      %v1981 = vsub.f32 0.0, %v1085
      %v1982 = vsub.f32 0.0, %v1086
      %v1983 = vsub.f32 0.0, %v1087
      %v1984 = vsub.f32 0.0, %v1088
      %v1985 = vsub.f32 0.0, %v1089
      %v1986 = vsub.f32 0.0, %v1090
      %v1987 = vsub.f32 0.0, %v1091
      %v1988 = vsub.f32 0.0, %v1092
      %v1989 = vsub.f32 0.0, %v1093
      %v1990 = vsub.f32 0.0, %v1094
      %v1991 = vsub.f32 0.0, %v1095
      %v1992 = vsub.f32 0.0, %v1096
      %v1993 = vsub.f32 0.0, %v1097
      %v1994 = vsub.f32 0.0, %v1098
      %v1995 = vsub.f32 0.0, %v1099
      %v1996 = vsub.f32 0.0, %v1100
      %v1997 = vsub.f32 0.0, %v1101
      %v1998 = vsub.f32 0.0, %v1102
      %v1999 = vsub.f32 0.0, %v1103
      %v2000 = vsub.f32 0.0, %v1104
      %v2001 = vsub.f32 0.0, %v1105
      %v2002 = vsub.f32 0.0, %v1106
      %v2003 = vsub.f32 0.0, %v1107
      %v2004 = vsub.f32 0.0, %v1108
      %v2005 = vsub.f32 0.0, %v1109
      %v2006 = vsub.f32 0.0, %v1110
      %v2007 = vsub.f32 0.0, %v1111
      %v2008 = vsub.f32 0.0, %v1112
      %v2009 = vsub.f32 0.0, %v1113
      %v2010 = vsub.f32 0.0, %v1114
      %v2011 = vsub.f32 0.0, %v1115
      %v2012 = vsub.f32 0.0, %v1116
      %v2013 = vsub.f32 0.0, %v1117
      %v2014 = vsub.f32 0.0, %v1118
      %v2015 = vsub.f32 0.0, %v1119
      %v2016 = vsub.f32 0.0, %v1120
      %v2017 = vsub.f32 0.0, %v1121
      %v2018 = vsub.f32 0.0, %v1122
      %v2019 = vsub.f32 0.0, %v1123
      %v2020 = vsub.f32 0.0, %v1124
      %v2021 = vsub.f32 0.0, %v1125
      %v2022 = vsub.f32 0.0, %v1126
      %v2023 = vsub.f32 0.0, %v1127
      %v2024 = vsub.f32 0.0, %v1128
      %v2025 = vsub.f32 0.0, %v1129
      %v2026 = vsub.f32 0.0, %v1130
      %v2027 = vsub.f32 0.0, %v1131
      %v2028 = vsub.f32 0.0, %v1132
      %v2029 = vsub.f32 0.0, %v1133
      %v2030 = vsub.f32 0.0, %v1134
      %v2031 = vsub.f32 0.0, %v1135
      %v2032 = vsub.f32 0.0, %v1136
      %v2033 = vsub.f32 0.0, %v1137
      %v2034 = vsub.f32 0.0, %v1138
      %v2035 = vsub.f32 0.0, %v1139
      %v2036 = vsub.f32 0.0, %v1140
      %v2037 = vsub.f32 0.0, %v1141
      %v2038 = vsub.f32 0.0, %v1142
      %v2039 = vmul.f32 %v1975, %v1079
      %v2040 = vmul.f32 %v1976, %v1080
      %v2041 = vmul.f32 %v1977, %v1081
      %v2042 = vmul.f32 %v1978, %v1082
      %v2043 = vmul.f32 %v1979, %v1083
      %v2044 = vmul.f32 %v1980, %v1084
      %v2045 = vmul.f32 %v1981, %v1085
      %v2046 = vmul.f32 %v1982, %v1086
      %v2047 = vmul.f32 %v1983, %v1087
      %v2048 = vmul.f32 %v1984, %v1088
      %v2049 = vmul.f32 %v1985, %v1089
      %v2050 = vmul.f32 %v1986, %v1090
      %v2051 = vmul.f32 %v1987, %v1091
      %v2052 = vmul.f32 %v1988, %v1092
      %v2053 = vmul.f32 %v1989, %v1093
      %v2054 = vmul.f32 %v1990, %v1094
      %v2055 = vmul.f32 %v1991, %v1095
      %v2056 = vmul.f32 %v1992, %v1096
      %v2057 = vmul.f32 %v1993, %v1097
      %v2058 = vmul.f32 %v1994, %v1098
      %v2059 = vmul.f32 %v1995, %v1099
      %v2060 = vmul.f32 %v1996, %v1100
      %v2061 = vmul.f32 %v1997, %v1101
      %v2062 = vmul.f32 %v1998, %v1102
      %v2063 = vmul.f32 %v1999, %v1103
      %v2064 = vmul.f32 %v2000, %v1104
      %v2065 = vmul.f32 %v2001, %v1105
      %v2066 = vmul.f32 %v2002, %v1106
      %v2067 = vmul.f32 %v2003, %v1107
      %v2068 = vmul.f32 %v2004, %v1108
      %v2069 = vmul.f32 %v2005, %v1109
      %v2070 = vmul.f32 %v2006, %v1110
      %v2071 = vmul.f32 %v2007, %v1111
      %v2072 = vmul.f32 %v2008, %v1112
      %v2073 = vmul.f32 %v2009, %v1113
      %v2074 = vmul.f32 %v2010, %v1114
      %v2075 = vmul.f32 %v2011, %v1115
      %v2076 = vmul.f32 %v2012, %v1116
      %v2077 = vmul.f32 %v2013, %v1117
      %v2078 = vmul.f32 %v2014, %v1118
      %v2079 = vmul.f32 %v2015, %v1119
      %v2080 = vmul.f32 %v2016, %v1120
      %v2081 = vmul.f32 %v2017, %v1121
      %v2082 = vmul.f32 %v2018, %v1122
      %v2083 = vmul.f32 %v2019, %v1123
      %v2084 = vmul.f32 %v2020, %v1124
      %v2085 = vmul.f32 %v2021, %v1125
      %v2086 = vmul.f32 %v2022, %v1126
      %v2087 = vmul.f32 %v2023, %v1127
      %v2088 = vmul.f32 %v2024, %v1128
      %v2089 = vmul.f32 %v2025, %v1129
      %v2090 = vmul.f32 %v2026, %v1130
      %v2091 = vmul.f32 %v2027, %v1131
      %v2092 = vmul.f32 %v2028, %v1132
      %v2093 = vmul.f32 %v2029, %v1133
      %v2094 = vmul.f32 %v2030, %v1134
      %v2095 = vmul.f32 %v2031, %v1135
      %v2096 = vmul.f32 %v2032, %v1136
      %v2097 = vmul.f32 %v2033, %v1137
      %v2098 = vmul.f32 %v2034, %v1138
      %v2099 = vmul.f32 %v2035, %v1139
      %v2100 = vmul.f32 %v2036, %v1140
      %v2101 = vmul.f32 %v2037, %v1141
      %v2102 = vmul.f32 %v2038, %v1142
      %v2103 = vmul.f32 %v2039, 1.442695
      %v2104 = vpow.pop %v2103
      %v2105 = vmul.f32 %v2040, 1.442695
      %v2106 = vpow.pop %v2105
      %v2107 = vmul.f32 %v2041, 1.442695
      %v2108 = vpow.pop %v2107
      %v2109 = vmul.f32 %v2042, 1.442695
      %v2110 = vpow.pop %v2109
      %v2111 = vmul.f32 %v2043, 1.442695
      %v2112 = vpow.pop %v2111
      %v2113 = vmul.f32 %v2044, 1.442695
      %v2114 = vpow.pop %v2113
      %v2115 = vmul.f32 %v2045, 1.442695
      %v2116 = vpow.pop %v2115
      %v2117 = vmul.f32 %v2046, 1.442695
      %v2118 = vpow.pop %v2117
      %v2119 = vmul.f32 %v2047, 1.442695
      %v2120 = vpow.pop %v2119
      %v2121 = vmul.f32 %v2048, 1.442695
      %v2122 = vpow.pop %v2121
      %v2123 = vmul.f32 %v2049, 1.442695
      %v2124 = vpow.pop %v2123
      %v2125 = vmul.f32 %v2050, 1.442695
      %v2126 = vpow.pop %v2125
      %v2127 = vmul.f32 %v2051, 1.442695
      %v2128 = vpow.pop %v2127
      %v2129 = vmul.f32 %v2052, 1.442695
      %v2130 = vpow.pop %v2129
      %v2131 = vmul.f32 %v2053, 1.442695
      %v2132 = vpow.pop %v2131
      %v2133 = vmul.f32 %v2054, 1.442695
      %v2134 = vpow.pop %v2133
      %v2135 = vmul.f32 %v2055, 1.442695
      %v2136 = vpow.pop %v2135
      %v2137 = vmul.f32 %v2056, 1.442695
      %v2138 = vpow.pop %v2137
      %v2139 = vmul.f32 %v2057, 1.442695
      %v2140 = vpow.pop %v2139
      %v2141 = vmul.f32 %v2058, 1.442695
      %v2142 = vpow.pop %v2141
      %v2143 = vmul.f32 %v2059, 1.442695
      %v2144 = vpow.pop %v2143
      %v2145 = vmul.f32 %v2060, 1.442695
      %v2146 = vpow.pop %v2145
      %v2147 = vmul.f32 %v2061, 1.442695
      %v2148 = vpow.pop %v2147
      %v2149 = vmul.f32 %v2062, 1.442695
      %v2150 = vpow.pop %v2149
      %v2151 = vmul.f32 %v2063, 1.442695
      %v2152 = vpow.pop %v2151
      %v2153 = vmul.f32 %v2064, 1.442695
      %v2154 = vpow.pop %v2153
      %v2155 = vmul.f32 %v2065, 1.442695
      %v2156 = vpow.pop %v2155
      %v2157 = vmul.f32 %v2066, 1.442695
      %v2158 = vpow.pop %v2157
      %v2159 = vmul.f32 %v2067, 1.442695
      %v2160 = vpow.pop %v2159
      %v2161 = vmul.f32 %v2068, 1.442695
      %v2162 = vpow.pop %v2161
      %v2163 = vmul.f32 %v2069, 1.442695
      %v2164 = vpow.pop %v2163
      %v2165 = vmul.f32 %v2070, 1.442695
      %v2166 = vpow.pop %v2165
      %v2167 = vmul.f32 %v2071, 1.442695
      %v2168 = vpow.pop %v2167
      %v2169 = vmul.f32 %v2072, 1.442695
      %v2170 = vpow.pop %v2169
      %v2171 = vmul.f32 %v2073, 1.442695
      %v2172 = vpow.pop %v2171
      %v2173 = vmul.f32 %v2074, 1.442695
      %v2174 = vpow.pop %v2173
      %v2175 = vmul.f32 %v2075, 1.442695
      %v2176 = vpow.pop %v2175
      %v2177 = vmul.f32 %v2076, 1.442695
      %v2178 = vpow.pop %v2177
      %v2179 = vmul.f32 %v2077, 1.442695
      %v2180 = vpow.pop %v2179
      %v2181 = vmul.f32 %v2078, 1.442695
      %v2182 = vpow.pop %v2181
      %v2183 = vmul.f32 %v2079, 1.442695
      %v2184 = vpow.pop %v2183
      %v2185 = vmul.f32 %v2080, 1.442695
      %v2186 = vpow.pop %v2185
      %v2187 = vmul.f32 %v2081, 1.442695
      %v2188 = vpow.pop %v2187
      %v2189 = vmul.f32 %v2082, 1.442695
      %v2190 = vpow.pop %v2189
      %v2191 = vmul.f32 %v2083, 1.442695
      %v2192 = vpow.pop %v2191
      %v2193 = vmul.f32 %v2084, 1.442695
      %v2194 = vpow.pop %v2193
      %v2195 = vmul.f32 %v2085, 1.442695
      %v2196 = vpow.pop %v2195
      %v2197 = vmul.f32 %v2086, 1.442695
      %v2198 = vpow.pop %v2197
      %v2199 = vmul.f32 %v2087, 1.442695
      %v2200 = vpow.pop %v2199
      %v2201 = vmul.f32 %v2088, 1.442695
      %v2202 = vpow.pop %v2201
      %v2203 = vmul.f32 %v2089, 1.442695
      %v2204 = vpow.pop %v2203
      %v2205 = vmul.f32 %v2090, 1.442695
      %v2206 = vpow.pop %v2205
      %v2207 = vmul.f32 %v2091, 1.442695
      %v2208 = vpow.pop %v2207
      %v2209 = vmul.f32 %v2092, 1.442695
      %v2210 = vpow.pop %v2209
      %v2211 = vmul.f32 %v2093, 1.442695
      %v2212 = vpow.pop %v2211
      %v2213 = vmul.f32 %v2094, 1.442695
      %v2214 = vpow.pop %v2213
      %v2215 = vmul.f32 %v2095, 1.442695
      %v2216 = vpow.pop %v2215
      %v2217 = vmul.f32 %v2096, 1.442695
      %v2218 = vpow.pop %v2217
      %v2219 = vmul.f32 %v2097, 1.442695
      %v2220 = vpow.pop %v2219
      %v2221 = vmul.f32 %v2098, 1.442695
      %v2222 = vpow.pop %v2221
      %v2223 = vmul.f32 %v2099, 1.442695
      %v2224 = vpow.pop %v2223
      %v2225 = vmul.f32 %v2100, 1.442695
      %v2226 = vpow.pop %v2225
      %v2227 = vmul.f32 %v2101, 1.442695
      %v2228 = vpow.pop %v2227
      %v2229 = vmul.f32 %v2102, 1.442695
      %v2230 = vpow.pop %v2229
      %v2231 = vmul.f32 %v1911, %v2104
      %v2232 = vmul.f32 %v1912, %v2106
      %v2233 = vmul.f32 %v1913, %v2108
      %v2234 = vmul.f32 %v1914, %v2110
      %v2235 = vmul.f32 %v1915, %v2112
      %v2236 = vmul.f32 %v1916, %v2114
      %v2237 = vmul.f32 %v1917, %v2116
      %v2238 = vmul.f32 %v1918, %v2118
      %v2239 = vmul.f32 %v1919, %v2120
      %v2240 = vmul.f32 %v1920, %v2122
      %v2241 = vmul.f32 %v1921, %v2124
      %v2242 = vmul.f32 %v1922, %v2126
      %v2243 = vmul.f32 %v1923, %v2128
      %v2244 = vmul.f32 %v1924, %v2130
      %v2245 = vmul.f32 %v1925, %v2132
      %v2246 = vmul.f32 %v1926, %v2134
      %v2247 = vmul.f32 %v1927, %v2136
      %v2248 = vmul.f32 %v1928, %v2138
      %v2249 = vmul.f32 %v1929, %v2140
      %v2250 = vmul.f32 %v1930, %v2142
      %v2251 = vmul.f32 %v1931, %v2144
      %v2252 = vmul.f32 %v1932, %v2146
      %v2253 = vmul.f32 %v1933, %v2148
      %v2254 = vmul.f32 %v1934, %v2150
      %v2255 = vmul.f32 %v1935, %v2152
      %v2256 = vmul.f32 %v1936, %v2154
      %v2257 = vmul.f32 %v1937, %v2156
      %v2258 = vmul.f32 %v1938, %v2158
      %v2259 = vmul.f32 %v1939, %v2160
      %v2260 = vmul.f32 %v1940, %v2162
      %v2261 = vmul.f32 %v1941, %v2164
      %v2262 = vmul.f32 %v1942, %v2166
      %v2263 = vmul.f32 %v1943, %v2168
      %v2264 = vmul.f32 %v1944, %v2170
      %v2265 = vmul.f32 %v1945, %v2172
      %v2266 = vmul.f32 %v1946, %v2174
      %v2267 = vmul.f32 %v1947, %v2176
      %v2268 = vmul.f32 %v1948, %v2178
      %v2269 = vmul.f32 %v1949, %v2180
      %v2270 = vmul.f32 %v1950, %v2182
      %v2271 = vmul.f32 %v1951, %v2184
      %v2272 = vmul.f32 %v1952, %v2186
      %v2273 = vmul.f32 %v1953, %v2188
      %v2274 = vmul.f32 %v1954, %v2190
      %v2275 = vmul.f32 %v1955, %v2192
      %v2276 = vmul.f32 %v1956, %v2194
      %v2277 = vmul.f32 %v1957, %v2196
      %v2278 = vmul.f32 %v1958, %v2198
      %v2279 = vmul.f32 %v1959, %v2200
      %v2280 = vmul.f32 %v1960, %v2202
      %v2281 = vmul.f32 %v1961, %v2204
      %v2282 = vmul.f32 %v1962, %v2206
      %v2283 = vmul.f32 %v1963, %v2208
      %v2284 = vmul.f32 %v1964, %v2210
      %v2285 = vmul.f32 %v1965, %v2212
      %v2286 = vmul.f32 %v1966, %v2214
      %v2287 = vmul.f32 %v1967, %v2216
      %v2288 = vmul.f32 %v1968, %v2218
      %v2289 = vmul.f32 %v1969, %v2220
      %v2290 = vmul.f32 %v1970, %v2222
      %v2291 = vmul.f32 %v1971, %v2224
      %v2292 = vmul.f32 %v1972, %v2226
      %v2293 = vmul.f32 %v1973, %v2228
      %v2294 = vmul.f32 %v1974, %v2230
      %v2295 = vsub.f32 1.0, %v2231
      %v2296 = vsub.f32 1.0, %v2232
      %v2297 = vsub.f32 1.0, %v2233
      %v2298 = vsub.f32 1.0, %v2234
      %v2299 = vsub.f32 1.0, %v2235
      %v2300 = vsub.f32 1.0, %v2236
      %v2301 = vsub.f32 1.0, %v2237
      %v2302 = vsub.f32 1.0, %v2238
      %v2303 = vsub.f32 1.0, %v2239
      %v2304 = vsub.f32 1.0, %v2240
      %v2305 = vsub.f32 1.0, %v2241
      %v2306 = vsub.f32 1.0, %v2242
      %v2307 = vsub.f32 1.0, %v2243
      %v2308 = vsub.f32 1.0, %v2244
      %v2309 = vsub.f32 1.0, %v2245
      %v2310 = vsub.f32 1.0, %v2246
      %v2311 = vsub.f32 1.0, %v2247
      %v2312 = vsub.f32 1.0, %v2248
      %v2313 = vsub.f32 1.0, %v2249
      %v2314 = vsub.f32 1.0, %v2250
      %v2315 = vsub.f32 1.0, %v2251
      %v2316 = vsub.f32 1.0, %v2252
      %v2317 = vsub.f32 1.0, %v2253
      %v2318 = vsub.f32 1.0, %v2254
      %v2319 = vsub.f32 1.0, %v2255
      %v2320 = vsub.f32 1.0, %v2256
      %v2321 = vsub.f32 1.0, %v2257
      %v2322 = vsub.f32 1.0, %v2258
      %v2323 = vsub.f32 1.0, %v2259
      %v2324 = vsub.f32 1.0, %v2260
      %v2325 = vsub.f32 1.0, %v2261
      %v2326 = vsub.f32 1.0, %v2262
      %v2327 = vsub.f32 1.0, %v2263
      %v2328 = vsub.f32 1.0, %v2264
      %v2329 = vsub.f32 1.0, %v2265
      %v2330 = vsub.f32 1.0, %v2266
      %v2331 = vsub.f32 1.0, %v2267
      %v2332 = vsub.f32 1.0, %v2268
      %v2333 = vsub.f32 1.0, %v2269
      %v2334 = vsub.f32 1.0, %v2270
      %v2335 = vsub.f32 1.0, %v2271
      %v2336 = vsub.f32 1.0, %v2272
      %v2337 = vsub.f32 1.0, %v2273
      %v2338 = vsub.f32 1.0, %v2274
      %v2339 = vsub.f32 1.0, %v2275
      %v2340 = vsub.f32 1.0, %v2276
      %v2341 = vsub.f32 1.0, %v2277
      %v2342 = vsub.f32 1.0, %v2278
      %v2343 = vsub.f32 1.0, %v2279
      %v2344 = vsub.f32 1.0, %v2280
      %v2345 = vsub.f32 1.0, %v2281
      %v2346 = vsub.f32 1.0, %v2282
      %v2347 = vsub.f32 1.0, %v2283
      %v2348 = vsub.f32 1.0, %v2284
      %v2349 = vsub.f32 1.0, %v2285
      %v2350 = vsub.f32 1.0, %v2286
      %v2351 = vsub.f32 1.0, %v2287
      %v2352 = vsub.f32 1.0, %v2288
      %v2353 = vsub.f32 1.0, %v2289
      %v2354 = vsub.f32 1.0, %v2290
      %v2355 = vsub.f32 1.0, %v2291
      %v2356 = vsub.f32 1.0, %v2292
      %v2357 = vsub.f32 1.0, %v2293
      %v2358 = vsub.f32 1.0, %v2294
      %vm2359 = vcmp.ge.f32.partialorder %v1015, 0.0
      %vm2360 = vcmp.ge.f32.partialorder %v1016, 0.0
      %vm2361 = vcmp.ge.f32.partialorder %v1017, 0.0
      %vm2362 = vcmp.ge.f32.partialorder %v1018, 0.0
      %vm2363 = vcmp.ge.f32.partialorder %v1019, 0.0
      %vm2364 = vcmp.ge.f32.partialorder %v1020, 0.0
      %vm2365 = vcmp.ge.f32.partialorder %v1021, 0.0
      %vm2366 = vcmp.ge.f32.partialorder %v1022, 0.0
      %vm2367 = vcmp.ge.f32.partialorder %v1023, 0.0
      %vm2368 = vcmp.ge.f32.partialorder %v1024, 0.0
      %vm2369 = vcmp.ge.f32.partialorder %v1025, 0.0
      %vm2370 = vcmp.ge.f32.partialorder %v1026, 0.0
      %vm2371 = vcmp.ge.f32.partialorder %v1027, 0.0
      %vm2372 = vcmp.ge.f32.partialorder %v1028, 0.0
      %vm2373 = vcmp.ge.f32.partialorder %v1029, 0.0
      %vm2374 = vcmp.ge.f32.partialorder %v1030, 0.0
      %vm2375 = vcmp.ge.f32.partialorder %v1031, 0.0
      %vm2376 = vcmp.ge.f32.partialorder %v1032, 0.0
      %vm2377 = vcmp.ge.f32.partialorder %v1033, 0.0
      %vm2378 = vcmp.ge.f32.partialorder %v1034, 0.0
      %vm2379 = vcmp.ge.f32.partialorder %v1035, 0.0
      %vm2380 = vcmp.ge.f32.partialorder %v1036, 0.0
      %vm2381 = vcmp.ge.f32.partialorder %v1037, 0.0
      %vm2382 = vcmp.ge.f32.partialorder %v1038, 0.0
      %vm2383 = vcmp.ge.f32.partialorder %v1039, 0.0
      %vm2384 = vcmp.ge.f32.partialorder %v1040, 0.0
      %vm2385 = vcmp.ge.f32.partialorder %v1041, 0.0
      %vm2386 = vcmp.ge.f32.partialorder %v1042, 0.0
      %vm2387 = vcmp.ge.f32.partialorder %v1043, 0.0
      %vm2388 = vcmp.ge.f32.partialorder %v1044, 0.0
      %vm2389 = vcmp.ge.f32.partialorder %v1045, 0.0
      %vm2390 = vcmp.ge.f32.partialorder %v1046, 0.0
      %vm2391 = vcmp.ge.f32.partialorder %v1047, 0.0
      %vm2392 = vcmp.ge.f32.partialorder %v1048, 0.0
      %vm2393 = vcmp.ge.f32.partialorder %v1049, 0.0
      %vm2394 = vcmp.ge.f32.partialorder %v1050, 0.0
      %vm2395 = vcmp.ge.f32.partialorder %v1051, 0.0
      %vm2396 = vcmp.ge.f32.partialorder %v1052, 0.0
      %vm2397 = vcmp.ge.f32.partialorder %v1053, 0.0
      %vm2398 = vcmp.ge.f32.partialorder %v1054, 0.0
      %vm2399 = vcmp.ge.f32.partialorder %v1055, 0.0
      %vm2400 = vcmp.ge.f32.partialorder %v1056, 0.0
      %vm2401 = vcmp.ge.f32.partialorder %v1057, 0.0
      %vm2402 = vcmp.ge.f32.partialorder %v1058, 0.0
      %vm2403 = vcmp.ge.f32.partialorder %v1059, 0.0
      %vm2404 = vcmp.ge.f32.partialorder %v1060, 0.0
      %vm2405 = vcmp.ge.f32.partialorder %v1061, 0.0
      %vm2406 = vcmp.ge.f32.partialorder %v1062, 0.0
      %vm2407 = vcmp.ge.f32.partialorder %v1063, 0.0
      %vm2408 = vcmp.ge.f32.partialorder %v1064, 0.0
      %vm2409 = vcmp.ge.f32.partialorder %v1065, 0.0
      %vm2410 = vcmp.ge.f32.partialorder %v1066, 0.0
      %vm2411 = vcmp.ge.f32.partialorder %v1067, 0.0
      %vm2412 = vcmp.ge.f32.partialorder %v1068, 0.0
      %vm2413 = vcmp.ge.f32.partialorder %v1069, 0.0
      %vm2414 = vcmp.ge.f32.partialorder %v1070, 0.0
      %vm2415 = vcmp.ge.f32.partialorder %v1071, 0.0
      %vm2416 = vcmp.ge.f32.partialorder %v1072, 0.0
      %vm2417 = vcmp.ge.f32.partialorder %v1073, 0.0
      %vm2418 = vcmp.ge.f32.partialorder %v1074, 0.0
      %vm2419 = vcmp.ge.f32.partialorder %v1075, 0.0
      %vm2420 = vcmp.ge.f32.partialorder %v1076, 0.0
      %vm2421 = vcmp.ge.f32.partialorder %v1077, 0.0
      %vm2422 = vcmp.ge.f32.partialorder %v1078, 0.0
      %v2423 = vsub.f32 0.0, %v2295
      %v2424 = vsub.f32 0.0, %v2296
      %v2425 = vsub.f32 0.0, %v2297
      %v2426 = vsub.f32 0.0, %v2298
      %v2427 = vsub.f32 0.0, %v2299
      %v2428 = vsub.f32 0.0, %v2300
      %v2429 = vsub.f32 0.0, %v2301
      %v2430 = vsub.f32 0.0, %v2302
      %v2431 = vsub.f32 0.0, %v2303
      %v2432 = vsub.f32 0.0, %v2304
      %v2433 = vsub.f32 0.0, %v2305
      %v2434 = vsub.f32 0.0, %v2306
      %v2435 = vsub.f32 0.0, %v2307
      %v2436 = vsub.f32 0.0, %v2308
      %v2437 = vsub.f32 0.0, %v2309
      %v2438 = vsub.f32 0.0, %v2310
      %v2439 = vsub.f32 0.0, %v2311
      %v2440 = vsub.f32 0.0, %v2312
      %v2441 = vsub.f32 0.0, %v2313
      %v2442 = vsub.f32 0.0, %v2314
      %v2443 = vsub.f32 0.0, %v2315
      %v2444 = vsub.f32 0.0, %v2316
      %v2445 = vsub.f32 0.0, %v2317
      %v2446 = vsub.f32 0.0, %v2318
      %v2447 = vsub.f32 0.0, %v2319
      %v2448 = vsub.f32 0.0, %v2320
      %v2449 = vsub.f32 0.0, %v2321
      %v2450 = vsub.f32 0.0, %v2322
      %v2451 = vsub.f32 0.0, %v2323
      %v2452 = vsub.f32 0.0, %v2324
      %v2453 = vsub.f32 0.0, %v2325
      %v2454 = vsub.f32 0.0, %v2326
      %v2455 = vsub.f32 0.0, %v2327
      %v2456 = vsub.f32 0.0, %v2328
      %v2457 = vsub.f32 0.0, %v2329
      %v2458 = vsub.f32 0.0, %v2330
      %v2459 = vsub.f32 0.0, %v2331
      %v2460 = vsub.f32 0.0, %v2332
      %v2461 = vsub.f32 0.0, %v2333
      %v2462 = vsub.f32 0.0, %v2334
      %v2463 = vsub.f32 0.0, %v2335
      %v2464 = vsub.f32 0.0, %v2336
      %v2465 = vsub.f32 0.0, %v2337
      %v2466 = vsub.f32 0.0, %v2338
      %v2467 = vsub.f32 0.0, %v2339
      %v2468 = vsub.f32 0.0, %v2340
      %v2469 = vsub.f32 0.0, %v2341
      %v2470 = vsub.f32 0.0, %v2342
      %v2471 = vsub.f32 0.0, %v2343
      %v2472 = vsub.f32 0.0, %v2344
      %v2473 = vsub.f32 0.0, %v2345
      %v2474 = vsub.f32 0.0, %v2346
      %v2475 = vsub.f32 0.0, %v2347
      %v2476 = vsub.f32 0.0, %v2348
      %v2477 = vsub.f32 0.0, %v2349
      %v2478 = vsub.f32 0.0, %v2350
      %v2479 = vsub.f32 0.0, %v2351
      %v2480 = vsub.f32 0.0, %v2352
      %v2481 = vsub.f32 0.0, %v2353
      %v2482 = vsub.f32 0.0, %v2354
      %v2483 = vsub.f32 0.0, %v2355
      %v2484 = vsub.f32 0.0, %v2356
      %v2485 = vsub.f32 0.0, %v2357
      %v2486 = vsub.f32 0.0, %v2358
      %v2487 = vsel %vm2359, %v2295, %v2423
      %v2488 = vsel %vm2360, %v2296, %v2424
      %v2489 = vsel %vm2361, %v2297, %v2425
      %v2490 = vsel %vm2362, %v2298, %v2426
      %v2491 = vsel %vm2363, %v2299, %v2427
      %v2492 = vsel %vm2364, %v2300, %v2428
      %v2493 = vsel %vm2365, %v2301, %v2429
      %v2494 = vsel %vm2366, %v2302, %v2430
      %v2495 = vsel %vm2367, %v2303, %v2431
      %v2496 = vsel %vm2368, %v2304, %v2432
      %v2497 = vsel %vm2369, %v2305, %v2433
      %v2498 = vsel %vm2370, %v2306, %v2434
      %v2499 = vsel %vm2371, %v2307, %v2435
      %v2500 = vsel %vm2372, %v2308, %v2436
      %v2501 = vsel %vm2373, %v2309, %v2437
      %v2502 = vsel %vm2374, %v2310, %v2438
      %v2503 = vsel %vm2375, %v2311, %v2439
      %v2504 = vsel %vm2376, %v2312, %v2440
      %v2505 = vsel %vm2377, %v2313, %v2441
      %v2506 = vsel %vm2378, %v2314, %v2442
      %v2507 = vsel %vm2379, %v2315, %v2443
      %v2508 = vsel %vm2380, %v2316, %v2444
      %v2509 = vsel %vm2381, %v2317, %v2445
      %v2510 = vsel %vm2382, %v2318, %v2446
      %v2511 = vsel %vm2383, %v2319, %v2447
      %v2512 = vsel %vm2384, %v2320, %v2448
      %v2513 = vsel %vm2385, %v2321, %v2449
      %v2514 = vsel %vm2386, %v2322, %v2450
      %v2515 = vsel %vm2387, %v2323, %v2451
      %v2516 = vsel %vm2388, %v2324, %v2452
      %v2517 = vsel %vm2389, %v2325, %v2453
      %v2518 = vsel %vm2390, %v2326, %v2454
      %v2519 = vsel %vm2391, %v2327, %v2455
      %v2520 = vsel %vm2392, %v2328, %v2456
      %v2521 = vsel %vm2393, %v2329, %v2457
      %v2522 = vsel %vm2394, %v2330, %v2458
      %v2523 = vsel %vm2395, %v2331, %v2459
      %v2524 = vsel %vm2396, %v2332, %v2460
      %v2525 = vsel %vm2397, %v2333, %v2461
      %v2526 = vsel %vm2398, %v2334, %v2462
      %v2527 = vsel %vm2399, %v2335, %v2463
      %v2528 = vsel %vm2400, %v2336, %v2464
      %v2529 = vsel %vm2401, %v2337, %v2465
      %v2530 = vsel %vm2402, %v2338, %v2466
      %v2531 = vsel %vm2403, %v2339, %v2467
      %v2532 = vsel %vm2404, %v2340, %v2468
      %v2533 = vsel %vm2405, %v2341, %v2469
      %v2534 = vsel %vm2406, %v2342, %v2470
      %v2535 = vsel %vm2407, %v2343, %v2471
      %v2536 = vsel %vm2408, %v2344, %v2472
      %v2537 = vsel %vm2409, %v2345, %v2473
      %v2538 = vsel %vm2410, %v2346, %v2474
      %v2539 = vsel %vm2411, %v2347, %v2475
      %v2540 = vsel %vm2412, %v2348, %v2476
      %v2541 = vsel %vm2413, %v2349, %v2477
      %v2542 = vsel %vm2414, %v2350, %v2478
      %v2543 = vsel %vm2415, %v2351, %v2479
      %v2544 = vsel %vm2416, %v2352, %v2480
      %v2545 = vsel %vm2417, %v2353, %v2481
      %v2546 = vsel %vm2418, %v2354, %v2482
      %v2547 = vsel %vm2419, %v2355, %v2483
      %v2548 = vsel %vm2420, %v2356, %v2484
      %v2549 = vsel %vm2421, %v2357, %v2485
      %v2550 = vsel %vm2422, %v2358, %v2486
      %v2551 = vmul.f32 %v697, 0.5
      %v2552 = vmul.f32 %v702, 0.5
      %v2553 = vmul.f32 %v707, 0.5
      %v2554 = vmul.f32 %v712, 0.5
      %v2555 = vmul.f32 %v717, 0.5
      %v2556 = vmul.f32 %v722, 0.5
      %v2557 = vmul.f32 %v727, 0.5
      %v2558 = vmul.f32 %v732, 0.5
      %v2559 = vmul.f32 %v737, 0.5
      %v2560 = vmul.f32 %v742, 0.5
      %v2561 = vmul.f32 %v747, 0.5
      %v2562 = vmul.f32 %v752, 0.5
      %v2563 = vmul.f32 %v757, 0.5
      %v2564 = vmul.f32 %v762, 0.5
      %v2565 = vmul.f32 %v767, 0.5
      %v2566 = vmul.f32 %v772, 0.5
      %v2567 = vmul.f32 %v777, 0.5
      %v2568 = vmul.f32 %v782, 0.5
      %v2569 = vmul.f32 %v787, 0.5
      %v2570 = vmul.f32 %v792, 0.5
      %v2571 = vmul.f32 %v797, 0.5
      %v2572 = vmul.f32 %v802, 0.5
      %v2573 = vmul.f32 %v807, 0.5
      %v2574 = vmul.f32 %v812, 0.5
      %v2575 = vmul.f32 %v817, 0.5
      %v2576 = vmul.f32 %v822, 0.5
      %v2577 = vmul.f32 %v827, 0.5
      %v2578 = vmul.f32 %v832, 0.5
      %v2579 = vmul.f32 %v837, 0.5
      %v2580 = vmul.f32 %v842, 0.5
      %v2581 = vmul.f32 %v847, 0.5
      %v2582 = vmul.f32 %v852, 0.5
      %v2583 = vmul.f32 %v857, 0.5
      %v2584 = vmul.f32 %v862, 0.5
      %v2585 = vmul.f32 %v867, 0.5
      %v2586 = vmul.f32 %v872, 0.5
      %v2587 = vmul.f32 %v877, 0.5
      %v2588 = vmul.f32 %v882, 0.5
      %v2589 = vmul.f32 %v887, 0.5
      %v2590 = vmul.f32 %v892, 0.5
      %v2591 = vmul.f32 %v897, 0.5
      %v2592 = vmul.f32 %v902, 0.5
      %v2593 = vmul.f32 %v907, 0.5
      %v2594 = vmul.f32 %v912, 0.5
      %v2595 = vmul.f32 %v917, 0.5
      %v2596 = vmul.f32 %v922, 0.5
      %v2597 = vmul.f32 %v927, 0.5
      %v2598 = vmul.f32 %v932, 0.5
      %v2599 = vmul.f32 %v937, 0.5
      %v2600 = vmul.f32 %v942, 0.5
      %v2601 = vmul.f32 %v947, 0.5
      %v2602 = vmul.f32 %v952, 0.5
      %v2603 = vmul.f32 %v957, 0.5
      %v2604 = vmul.f32 %v962, 0.5
      %v2605 = vmul.f32 %v967, 0.5
      %v2606 = vmul.f32 %v972, 0.5
      %v2607 = vmul.f32 %v977, 0.5
      %v2608 = vmul.f32 %v982, 0.5
      %v2609 = vmul.f32 %v987, 0.5
      %v2610 = vmul.f32 %v992, 0.5
      %v2611 = vmul.f32 %v997, 0.5
      %v2612 = vmul.f32 %v1002, 0.5
      %v2613 = vmul.f32 %v1007, 0.5
      %v2614 = vmul.f32 %v1012, 0.5
      %v2615 = vadd.f32 %v2487, 1.0
      %v2616 = vadd.f32 %v2488, 1.0
      %v2617 = vadd.f32 %v2489, 1.0
      %v2618 = vadd.f32 %v2490, 1.0
      %v2619 = vadd.f32 %v2491, 1.0
      %v2620 = vadd.f32 %v2492, 1.0
      %v2621 = vadd.f32 %v2493, 1.0
      %v2622 = vadd.f32 %v2494, 1.0
      %v2623 = vadd.f32 %v2495, 1.0
      %v2624 = vadd.f32 %v2496, 1.0
      %v2625 = vadd.f32 %v2497, 1.0
      %v2626 = vadd.f32 %v2498, 1.0
      %v2627 = vadd.f32 %v2499, 1.0
      %v2628 = vadd.f32 %v2500, 1.0
      %v2629 = vadd.f32 %v2501, 1.0
      %v2630 = vadd.f32 %v2502, 1.0
      %v2631 = vadd.f32 %v2503, 1.0
      %v2632 = vadd.f32 %v2504, 1.0
      %v2633 = vadd.f32 %v2505, 1.0
      %v2634 = vadd.f32 %v2506, 1.0
      %v2635 = vadd.f32 %v2507, 1.0
      %v2636 = vadd.f32 %v2508, 1.0
      %v2637 = vadd.f32 %v2509, 1.0
      %v2638 = vadd.f32 %v2510, 1.0
      %v2639 = vadd.f32 %v2511, 1.0
      %v2640 = vadd.f32 %v2512, 1.0
      %v2641 = vadd.f32 %v2513, 1.0
      %v2642 = vadd.f32 %v2514, 1.0
      %v2643 = vadd.f32 %v2515, 1.0
      %v2644 = vadd.f32 %v2516, 1.0
      %v2645 = vadd.f32 %v2517, 1.0
      %v2646 = vadd.f32 %v2518, 1.0
      %v2647 = vadd.f32 %v2519, 1.0
      %v2648 = vadd.f32 %v2520, 1.0
      %v2649 = vadd.f32 %v2521, 1.0
      %v2650 = vadd.f32 %v2522, 1.0
      %v2651 = vadd.f32 %v2523, 1.0
      %v2652 = vadd.f32 %v2524, 1.0
      %v2653 = vadd.f32 %v2525, 1.0
      %v2654 = vadd.f32 %v2526, 1.0
      %v2655 = vadd.f32 %v2527, 1.0
      %v2656 = vadd.f32 %v2528, 1.0
      %v2657 = vadd.f32 %v2529, 1.0
      %v2658 = vadd.f32 %v2530, 1.0
      %v2659 = vadd.f32 %v2531, 1.0
      %v2660 = vadd.f32 %v2532, 1.0
      %v2661 = vadd.f32 %v2533, 1.0
      %v2662 = vadd.f32 %v2534, 1.0
      %v2663 = vadd.f32 %v2535, 1.0
      %v2664 = vadd.f32 %v2536, 1.0
      %v2665 = vadd.f32 %v2537, 1.0
      %v2666 = vadd.f32 %v2538, 1.0
      %v2667 = vadd.f32 %v2539, 1.0
      %v2668 = vadd.f32 %v2540, 1.0
      %v2669 = vadd.f32 %v2541, 1.0
      %v2670 = vadd.f32 %v2542, 1.0
      %v2671 = vadd.f32 %v2543, 1.0
      %v2672 = vadd.f32 %v2544, 1.0
      %v2673 = vadd.f32 %v2545, 1.0
      %v2674 = vadd.f32 %v2546, 1.0
      %v2675 = vadd.f32 %v2547, 1.0
      %v2676 = vadd.f32 %v2548, 1.0
      %v2677 = vadd.f32 %v2549, 1.0
      %v2678 = vadd.f32 %v2550, 1.0
      %v2679 = vmul.f32 %v2551, %v2615
      %v2680 = vmul.f32 %v2552, %v2616
      %v2681 = vmul.f32 %v2553, %v2617
      %v2682 = vmul.f32 %v2554, %v2618
      %v2683 = vmul.f32 %v2555, %v2619
      %v2684 = vmul.f32 %v2556, %v2620
      %v2685 = vmul.f32 %v2557, %v2621
      %v2686 = vmul.f32 %v2558, %v2622
      %v2687 = vmul.f32 %v2559, %v2623
      %v2688 = vmul.f32 %v2560, %v2624
      %v2689 = vmul.f32 %v2561, %v2625
      %v2690 = vmul.f32 %v2562, %v2626
      %v2691 = vmul.f32 %v2563, %v2627
      %v2692 = vmul.f32 %v2564, %v2628
      %v2693 = vmul.f32 %v2565, %v2629
      %v2694 = vmul.f32 %v2566, %v2630
      %v2695 = vmul.f32 %v2567, %v2631
      %v2696 = vmul.f32 %v2568, %v2632
      %v2697 = vmul.f32 %v2569, %v2633
      %v2698 = vmul.f32 %v2570, %v2634
      %v2699 = vmul.f32 %v2571, %v2635
      %v2700 = vmul.f32 %v2572, %v2636
      %v2701 = vmul.f32 %v2573, %v2637
      %v2702 = vmul.f32 %v2574, %v2638
      %v2703 = vmul.f32 %v2575, %v2639
      %v2704 = vmul.f32 %v2576, %v2640
      %v2705 = vmul.f32 %v2577, %v2641
      %v2706 = vmul.f32 %v2578, %v2642
      %v2707 = vmul.f32 %v2579, %v2643
      %v2708 = vmul.f32 %v2580, %v2644
      %v2709 = vmul.f32 %v2581, %v2645
      %v2710 = vmul.f32 %v2582, %v2646
      %v2711 = vmul.f32 %v2583, %v2647
      %v2712 = vmul.f32 %v2584, %v2648
      %v2713 = vmul.f32 %v2585, %v2649
      %v2714 = vmul.f32 %v2586, %v2650
      %v2715 = vmul.f32 %v2587, %v2651
      %v2716 = vmul.f32 %v2588, %v2652
      %v2717 = vmul.f32 %v2589, %v2653
      %v2718 = vmul.f32 %v2590, %v2654
      %v2719 = vmul.f32 %v2591, %v2655
      %v2720 = vmul.f32 %v2592, %v2656
      %v2721 = vmul.f32 %v2593, %v2657
      %v2722 = vmul.f32 %v2594, %v2658
      %v2723 = vmul.f32 %v2595, %v2659
      %v2724 = vmul.f32 %v2596, %v2660
      %v2725 = vmul.f32 %v2597, %v2661
      %v2726 = vmul.f32 %v2598, %v2662
      %v2727 = vmul.f32 %v2599, %v2663
      %v2728 = vmul.f32 %v2600, %v2664
      %v2729 = vmul.f32 %v2601, %v2665
      %v2730 = vmul.f32 %v2602, %v2666
      %v2731 = vmul.f32 %v2603, %v2667
      %v2732 = vmul.f32 %v2604, %v2668
      %v2733 = vmul.f32 %v2605, %v2669
      %v2734 = vmul.f32 %v2606, %v2670
      %v2735 = vmul.f32 %v2607, %v2671
      %v2736 = vmul.f32 %v2608, %v2672
      %v2737 = vmul.f32 %v2609, %v2673
      %v2738 = vmul.f32 %v2610, %v2674
      %v2739 = vmul.f32 %v2611, %v2675
      %v2740 = vmul.f32 %v2612, %v2676
      %v2741 = vmul.f32 %v2613, %v2677
      %v2742 = vmul.f32 %v2614, %v2678
      %v2743 = vld [vmem:[#allocation2] sm:$0xff]
      %v2744 = vld [vmem:[#allocation2 + $0x8] sm:$0xff]
      %v2745 = vld [vmem:[#allocation2 + $0x10] sm:$0xff]
      %v2746 = vld [vmem:[#allocation2 + $0x18] sm:$0xff]
      %v2747 = vld [vmem:[#allocation2 + $0x20] sm:$0xff]
      %v2748 = vld [vmem:[#allocation2 + $0x28] sm:$0xff]
      %v2749 = vld [vmem:[#allocation2 + $0x30] sm:$0xff]
      %v2750 = vld [vmem:[#allocation2 + $0x38] sm:$0xff]
      %v2751 = vld [vmem:[#allocation2 + $0x40] sm:$0xff]
      %v2752 = vld [vmem:[#allocation2 + $0x48] sm:$0xff]
      %v2753 = vld [vmem:[#allocation2 + $0x50] sm:$0xff]
      %v2754 = vld [vmem:[#allocation2 + $0x58] sm:$0xff]
      %v2755 = vld [vmem:[#allocation2 + $0x60] sm:$0xff]
      %v2756 = vld [vmem:[#allocation2 + $0x68] sm:$0xff]
      %v2757 = vld [vmem:[#allocation2 + $0x70] sm:$0xff]
      %v2758 = vld [vmem:[#allocation2 + $0x78] sm:$0xff]
      %v2759 = vld [vmem:[#allocation2 + $0x80] sm:$0xff]
      %v2760 = vld [vmem:[#allocation2 + $0x88] sm:$0xff]
      %v2761 = vld [vmem:[#allocation2 + $0x90] sm:$0xff]
      %v2762 = vld [vmem:[#allocation2 + $0x98] sm:$0xff]
      %v2763 = vld [vmem:[#allocation2 + $0xa0] sm:$0xff]
      %v2764 = vld [vmem:[#allocation2 + $0xa8] sm:$0xff]
      %v2765 = vld [vmem:[#allocation2 + $0xb0] sm:$0xff]
      %v2766 = vld [vmem:[#allocation2 + $0xb8] sm:$0xff]
      %v2767 = vld [vmem:[#allocation2 + $0xc0] sm:$0xff]
      %v2768 = vld [vmem:[#allocation2 + $0xc8] sm:$0xff]
      %v2769 = vld [vmem:[#allocation2 + $0xd0] sm:$0xff]
      %v2770 = vld [vmem:[#allocation2 + $0xd8] sm:$0xff]
      %v2771 = vld [vmem:[#allocation2 + $0xe0] sm:$0xff]
      %v2772 = vld [vmem:[#allocation2 + $0xe8] sm:$0xff]
      %v2773 = vld [vmem:[#allocation2 + $0xf0] sm:$0xff]
      %v2774 = vld [vmem:[#allocation2 + $0xf8] sm:$0xff]
      %v2775 = vld [vmem:[#allocation2 + $0x100] sm:$0xff]
      %v2776 = vld [vmem:[#allocation2 + $0x108] sm:$0xff]
      %v2777 = vld [vmem:[#allocation2 + $0x110] sm:$0xff]
      %v2778 = vld [vmem:[#allocation2 + $0x118] sm:$0xff]
      %v2779 = vld [vmem:[#allocation2 + $0x120] sm:$0xff]
      %v2780 = vld [vmem:[#allocation2 + $0x128] sm:$0xff]
      %v2781 = vld [vmem:[#allocation2 + $0x130] sm:$0xff]
      %v2782 = vld [vmem:[#allocation2 + $0x138] sm:$0xff]
      %v2783 = vld [vmem:[#allocation2 + $0x140] sm:$0xff]
      %v2784 = vld [vmem:[#allocation2 + $0x148] sm:$0xff]
      %v2785 = vld [vmem:[#allocation2 + $0x150] sm:$0xff]
      %v2786 = vld [vmem:[#allocation2 + $0x158] sm:$0xff]
      %v2787 = vld [vmem:[#allocation2 + $0x160] sm:$0xff]
      %v2788 = vld [vmem:[#allocation2 + $0x168] sm:$0xff]
      %v2789 = vld [vmem:[#allocation2 + $0x170] sm:$0xff]
      %v2790 = vld [vmem:[#allocation2 + $0x178] sm:$0xff]
      %v2791 = vld [vmem:[#allocation2 + $0x180] sm:$0xff]
      %v2792 = vld [vmem:[#allocation2 + $0x188] sm:$0xff]
      %v2793 = vld [vmem:[#allocation2 + $0x190] sm:$0xff]
      %v2794 = vld [vmem:[#allocation2 + $0x198] sm:$0xff]
      %v2795 = vld [vmem:[#allocation2 + $0x1a0] sm:$0xff]
      %v2796 = vld [vmem:[#allocation2 + $0x1a8] sm:$0xff]
      %v2797 = vld [vmem:[#allocation2 + $0x1b0] sm:$0xff]
      %v2798 = vld [vmem:[#allocation2 + $0x1b8] sm:$0xff]
      %v2799 = vld [vmem:[#allocation2 + $0x1c0] sm:$0xff]
      %v2800 = vld [vmem:[#allocation2 + $0x1c8] sm:$0xff]
      %v2801 = vld [vmem:[#allocation2 + $0x1d0] sm:$0xff]
      %v2802 = vld [vmem:[#allocation2 + $0x1d8] sm:$0xff]
      %v2803 = vld [vmem:[#allocation2 + $0x1e0] sm:$0xff]
      %v2804 = vld [vmem:[#allocation2 + $0x1e8] sm:$0xff]
      %v2805 = vld [vmem:[#allocation2 + $0x1f0] sm:$0xff]
      %v2806 = vld [vmem:[#allocation2 + $0x1f8] sm:$0xff]
      %v2807 = vld [vmem:[%s285] sm:$0xff]
      %v2808 = vld [vmem:[%s285 + $0x8] sm:$0xff]
      %v2809 = vld [vmem:[%s285 + $0x10] sm:$0xff]
      %v2810 = vld [vmem:[%s285 + $0x18] sm:$0xff]
      %v2811 = vld [vmem:[%s285 + $0x20] sm:$0xff]
      %v2812 = vld [vmem:[%s285 + $0x28] sm:$0xff]
      %v2813 = vld [vmem:[%s285 + $0x30] sm:$0xff]
      %v2814 = vld [vmem:[%s285 + $0x38] sm:$0xff]
      %v2815 = vld [vmem:[%s285 + $0x40] sm:$0xff]
      %v2816 = vld [vmem:[%s285 + $0x48] sm:$0xff]
      %v2817 = vld [vmem:[%s285 + $0x50] sm:$0xff]
      %v2818 = vld [vmem:[%s285 + $0x58] sm:$0xff]
      %v2819 = vld [vmem:[%s285 + $0x60] sm:$0xff]
      %v2820 = vld [vmem:[%s285 + $0x68] sm:$0xff]
      %v2821 = vld [vmem:[%s285 + $0x70] sm:$0xff]
      %v2822 = vld [vmem:[%s285 + $0x78] sm:$0xff]
      %2823 = vmatprep.subr.mxu0 0.0
      %2824 = vmatpush1.msra.mxu0 %v2807
      %2825 = vmatprep.subr.mxu0 0.0
      %2826 = vmatpush1.msra.mxu0 %v2808
      %2827 = vmatprep.subr.mxu0 0.0
      %2828 = vmatpush1.msra.mxu0 %v2809
      %2829 = vmatprep.subr.mxu0 0.0
      %2830 = vmatpush1.msra.mxu0 %v2810
      %2831 = vmatprep.subr.mxu0 0.0
      %2832 = vmatpush1.msra.mxu0 %v2811
      %2833 = vmatprep.subr.mxu0 0.0
      %2834 = vmatpush1.msra.mxu0 %v2812
      %2835 = vmatprep.subr.mxu0 0.0
      %2836 = vmatpush1.msra.mxu0 %v2813
      %2837 = vmatprep.subr.mxu0 0.0
      %2838 = vmatpush1.msra.mxu0 %v2814
      %2839 = vmatprep.subr.mxu0 0.0
      %2840 = vmatpush1.msra.mxu0 %v2815
      %2841 = vmatprep.subr.mxu0 0.0
      %2842 = vmatpush1.msra.mxu0 %v2816
      %2843 = vmatprep.subr.mxu0 0.0
      %2844 = vmatpush1.msra.mxu0 %v2817
      %2845 = vmatprep.subr.mxu0 0.0
      %2846 = vmatpush1.msra.mxu0 %v2818
      %2847 = vmatprep.subr.mxu0 0.0
      %2848 = vmatpush1.msra.mxu0 %v2819
      %2849 = vmatprep.subr.mxu0 0.0
      %2850 = vmatpush1.msra.mxu0 %v2820
      %2851 = vmatprep.subr.mxu0 0.0
      %2852 = vmatpush1.msra.mxu0 %v2821
      %2853 = vmatprep.subr.mxu0 0.0
      %2854 = vmatpush1.msra.mxu0 %v2822
      %2855 = vmatprep.subr.mxu0 0.0
      %2856 = vmatpush1.msra.mxu0 0.0
      %2857 = vmatprep.subr.mxu0 0.0
      %2858 = vmatpush1.msra.mxu0 0.0
      %2859 = vmatprep.subr.mxu0 0.0
      %2860 = vmatpush1.msra.mxu0 0.0
      %2861 = vmatprep.subr.mxu0 0.0
      %2862 = vmatpush1.msra.mxu0 0.0
      %2863 = vmatprep.subr.mxu0 0.0
      %2864 = vmatpush1.msra.mxu0 0.0
      %2865 = vmatprep.subr.mxu0 0.0
      %2866 = vmatpush1.msra.mxu0 0.0
      %2867 = vmatprep.subr.mxu0 0.0
      %2868 = vmatpush1.msra.mxu0 0.0
      %2869 = vmatprep.subr.mxu0 0.0
      %2870 = vmatpush1.msra.mxu0 0.0
      %2871 = vmatprep.subr.mxu0 0.0
      %2872 = vmatpush1.msra.mxu0 0.0
      %2873 = vmatprep.subr.mxu0 0.0
      %2874 = vmatpush1.msra.mxu0 0.0
      %2875 = vmatprep.subr.mxu0 0.0
      %2876 = vmatpush1.msra.mxu0 0.0
      %2877 = vmatprep.subr.mxu0 0.0
      %2878 = vmatpush1.msra.mxu0 0.0
      %2879 = vmatprep.subr.mxu0 0.0
      %2880 = vmatpush1.msra.mxu0 0.0
      %2881 = vmatprep.subr.mxu0 0.0
      %2882 = vmatpush1.msra.mxu0 0.0
      %2883 = vmatprep.subr.mxu0 0.0
      %2884 = vmatpush1.msra.mxu0 0.0
      %2885 = vmatprep.subr.mxu0 0.0
      %2886 = vmatpush1.msra.mxu0 0.0
      %2887 = vmatprep.mubr.f32.mxu0 0.0
      %2888 = vmatmul.mubr.f32.gmra.mrb[0].mxu0 %v2679
      %v2889 = vpop.f32.mrb[0].mxu0
      %v2890 = vadd.f32 0.0, %v2889
      %v2891 = vpop.f32.mrb[0].mxu0
      %2892 = vmatprep.mubr.f32.mxu0 0.0
      %2893 = vmatmul.mubr.f32.gmra.mrb[0].mxu0 %v2680
      %v2894 = vpop.f32.mrb[0].mxu0
      %v2895 = vadd.f32 0.0, %v2894
      %v2896 = vpop.f32.mrb[0].mxu0
      %2897 = vmatprep.mubr.f32.mxu0 0.0
      %2898 = vmatmul.mubr.f32.gmra.mrb[0].mxu0 %v2681
      %v2899 = vpop.f32.mrb[0].mxu0
      %v2900 = vadd.f32 0.0, %v2899
      %v2901 = vpop.f32.mrb[0].mxu0
      %2902 = vmatprep.mubr.f32.mxu0 0.0
      %2903 = vmatmul.mubr.f32.gmra.mrb[0].mxu0 %v2682
      %v2904 = vpop.f32.mrb[0].mxu0
      %v2905 = vadd.f32 0.0, %v2904
      %v2906 = vpop.f32.mrb[0].mxu0
      %2907 = vmatprep.mubr.f32.mxu0 0.0
      %2908 = vmatmul.mubr.f32.gmra.mrb[0].mxu0 %v2683
      %v2909 = vpop.f32.mrb[0].mxu0
      %v2910 = vadd.f32 0.0, %v2909
      %v2911 = vpop.f32.mrb[0].mxu0
      %2912 = vmatprep.mubr.f32.mxu0 0.0
      %2913 = vmatmul.mubr.f32.gmra.mrb[0].mxu0 %v2684
      %v2914 = vpop.f32.mrb[0].mxu0
      %v2915 = vadd.f32 0.0, %v2914
      %v2916 = vpop.f32.mrb[0].mxu0
      %2917 = vmatprep.mubr.f32.mxu0 0.0
      %2918 = vmatmul.mubr.f32.gmra.mrb[0].mxu0 %v2685
      %v2919 = vpop.f32.mrb[0].mxu0
      %v2920 = vadd.f32 0.0, %v2919
      %v2921 = vpop.f32.mrb[0].mxu0
      %2922 = vmatprep.mubr.f32.mxu0 0.0
      %2923 = vmatmul.mubr.f32.gmra.mrb[0].mxu0 %v2686
      %v2924 = vpop.f32.mrb[0].mxu0
      %v2925 = vadd.f32 0.0, %v2924
      %v2926 = vpop.f32.mrb[0].mxu0
      %2927 = vmatprep.mubr.f32.mxu0 0.0
      %2928 = vmatmul.mubr.f32.gmra.mrb[0].mxu0 %v2687
      %v2929 = vpop.f32.mrb[0].mxu0
      %v2930 = vadd.f32 0.0, %v2929
      %v2931 = vpop.f32.mrb[0].mxu0
      %2932 = vmatprep.mubr.f32.mxu0 0.0
      %2933 = vmatmul.mubr.f32.gmra.mrb[0].mxu0 %v2688
      %v2934 = vpop.f32.mrb[0].mxu0
      %v2935 = vadd.f32 0.0, %v2934
      %v2936 = vpop.f32.mrb[0].mxu0
      %2937 = vmatprep.mubr.f32.mxu0 0.0
      %2938 = vmatmul.mubr.f32.gmra.mrb[0].mxu0 %v2689
      %v2939 = vpop.f32.mrb[0].mxu0
      %v2940 = vadd.f32 0.0, %v2939
      %v2941 = vpop.f32.mrb[0].mxu0
      %2942 = vmatprep.mubr.f32.mxu0 0.0
      %2943 = vmatmul.mubr.f32.gmra.mrb[0].mxu0 %v2690
      %v2944 = vpop.f32.mrb[0].mxu0
      %v2945 = vadd.f32 0.0, %v2944
      %v2946 = vpop.f32.mrb[0].mxu0
      %2947 = vmatprep.mubr.f32.mxu0 0.0
      %2948 = vmatmul.mubr.f32.gmra.mrb[0].mxu0 %v2691
      %v2949 = vpop.f32.mrb[0].mxu0
      %v2950 = vadd.f32 0.0, %v2949
      %v2951 = vpop.f32.mrb[0].mxu0
      %2952 = vmatprep.mubr.f32.mxu0 0.0
      %2953 = vmatmul.mubr.f32.gmra.mrb[0].mxu0 %v2692
      %v2954 = vpop.f32.mrb[0].mxu0
      %v2955 = vadd.f32 0.0, %v2954
      %v2956 = vpop.f32.mrb[0].mxu0
      %2957 = vmatprep.mubr.f32.mxu0 0.0
      %2958 = vmatmul.mubr.f32.gmra.mrb[0].mxu0 %v2693
      %v2959 = vpop.f32.mrb[0].mxu0
      %v2960 = vadd.f32 0.0, %v2959
      %v2961 = vpop.f32.mrb[0].mxu0
      %2962 = vmatprep.mubr.f32.mxu0 0.0
      %2963 = vmatmul.mubr.f32.gmra.mrb[0].mxu0 %v2694
      %v2964 = vpop.f32.mrb[0].mxu0
      %v2965 = vadd.f32 0.0, %v2964
      %v2966 = vpop.f32.mrb[0].mxu0
      %2967 = vmatprep.mubr.f32.mxu0 0.0
      %2968 = vmatmul.mubr.f32.gmra.mrb[0].mxu0 %v2695
      %v2969 = vpop.f32.mrb[0].mxu0
      %v2970 = vadd.f32 0.0, %v2969
      %v2971 = vpop.f32.mrb[0].mxu0
      %2972 = vmatprep.mubr.f32.mxu0 0.0
      %2973 = vmatmul.mubr.f32.gmra.mrb[0].mxu0 %v2696
      %v2974 = vpop.f32.mrb[0].mxu0
      %v2975 = vadd.f32 0.0, %v2974
      %v2976 = vpop.f32.mrb[0].mxu0
      %2977 = vmatprep.mubr.f32.mxu0 0.0
      %2978 = vmatmul.mubr.f32.gmra.mrb[0].mxu0 %v2697
      %v2979 = vpop.f32.mrb[0].mxu0
      %v2980 = vadd.f32 0.0, %v2979
      %v2981 = vpop.f32.mrb[0].mxu0
      %2982 = vmatprep.mubr.f32.mxu0 0.0
      %2983 = vmatmul.mubr.f32.gmra.mrb[0].mxu0 %v2698
      %v2984 = vpop.f32.mrb[0].mxu0
      %v2985 = vadd.f32 0.0, %v2984
      %v2986 = vpop.f32.mrb[0].mxu0
      %2987 = vmatprep.mubr.f32.mxu0 0.0
      %2988 = vmatmul.mubr.f32.gmra.mrb[0].mxu0 %v2699
      %v2989 = vpop.f32.mrb[0].mxu0
      %v2990 = vadd.f32 0.0, %v2989
      %v2991 = vpop.f32.mrb[0].mxu0
      %2992 = vmatprep.mubr.f32.mxu0 0.0
      %2993 = vmatmul.mubr.f32.gmra.mrb[0].mxu0 %v2700
      %v2994 = vpop.f32.mrb[0].mxu0
      %v2995 = vadd.f32 0.0, %v2994
      %v2996 = vpop.f32.mrb[0].mxu0
      %2997 = vmatprep.mubr.f32.mxu0 0.0
      %2998 = vmatmul.mubr.f32.gmra.mrb[0].mxu0 %v2701
      %v2999 = vpop.f32.mrb[0].mxu0
      %v3000 = vadd.f32 0.0, %v2999
      %v3001 = vpop.f32.mrb[0].mxu0
      %3002 = vmatprep.mubr.f32.mxu0 0.0
      %3003 = vmatmul.mubr.f32.gmra.mrb[0].mxu0 %v2702
      %v3004 = vpop.f32.mrb[0].mxu0
      %v3005 = vadd.f32 0.0, %v3004
      %v3006 = vpop.f32.mrb[0].mxu0
      %3007 = vmatprep.mubr.f32.mxu0 0.0
      %3008 = vmatmul.mubr.f32.gmra.mrb[0].mxu0 %v2703
      %v3009 = vpop.f32.mrb[0].mxu0
      %v3010 = vadd.f32 0.0, %v3009
      %v3011 = vpop.f32.mrb[0].mxu0
      %3012 = vmatprep.mubr.f32.mxu0 0.0
      %3013 = vmatmul.mubr.f32.gmra.mrb[0].mxu0 %v2704
      %v3014 = vpop.f32.mrb[0].mxu0
      %v3015 = vadd.f32 0.0, %v3014
      %v3016 = vpop.f32.mrb[0].mxu0
      %3017 = vmatprep.mubr.f32.mxu0 0.0
      %3018 = vmatmul.mubr.f32.gmra.mrb[0].mxu0 %v2705
      %v3019 = vpop.f32.mrb[0].mxu0
      %v3020 = vadd.f32 0.0, %v3019
      %v3021 = vpop.f32.mrb[0].mxu0
      %3022 = vmatprep.mubr.f32.mxu0 0.0
      %3023 = vmatmul.mubr.f32.gmra.mrb[0].mxu0 %v2706
      %v3024 = vpop.f32.mrb[0].mxu0
      %v3025 = vadd.f32 0.0, %v3024
      %v3026 = vpop.f32.mrb[0].mxu0
      %3027 = vmatprep.mubr.f32.mxu0 0.0
      %3028 = vmatmul.mubr.f32.gmra.mrb[0].mxu0 %v2707
      %v3029 = vpop.f32.mrb[0].mxu0
      %v3030 = vadd.f32 0.0, %v3029
      %v3031 = vpop.f32.mrb[0].mxu0
      %3032 = vmatprep.mubr.f32.mxu0 0.0
      %3033 = vmatmul.mubr.f32.gmra.mrb[0].mxu0 %v2708
      %v3034 = vpop.f32.mrb[0].mxu0
      %v3035 = vadd.f32 0.0, %v3034
      %v3036 = vpop.f32.mrb[0].mxu0
      %3037 = vmatprep.mubr.f32.mxu0 0.0
      %3038 = vmatmul.mubr.f32.gmra.mrb[0].mxu0 %v2709
      %v3039 = vpop.f32.mrb[0].mxu0
      %v3040 = vadd.f32 0.0, %v3039
      %v3041 = vpop.f32.mrb[0].mxu0
      %3042 = vmatprep.mubr.f32.mxu0 0.0
      %3043 = vmatmul.mubr.f32.gmra.mrb[0].mxu0 %v2710
      %v3044 = vpop.f32.mrb[0].mxu0
      %v3045 = vadd.f32 0.0, %v3044
      %v3046 = vpop.f32.mrb[0].mxu0
      %3047 = vmatprep.mubr.f32.mxu0 0.0
      %3048 = vmatmul.mubr.f32.gmra.mrb[0].mxu0 %v2711
      %v3049 = vpop.f32.mrb[0].mxu0
      %v3050 = vadd.f32 0.0, %v3049
      %v3051 = vpop.f32.mrb[0].mxu0
      %3052 = vmatprep.mubr.f32.mxu0 0.0
      %3053 = vmatmul.mubr.f32.gmra.mrb[0].mxu0 %v2712
      %v3054 = vpop.f32.mrb[0].mxu0
      %v3055 = vadd.f32 0.0, %v3054
      %v3056 = vpop.f32.mrb[0].mxu0
      %3057 = vmatprep.mubr.f32.mxu0 0.0
      %3058 = vmatmul.mubr.f32.gmra.mrb[0].mxu0 %v2713
      %v3059 = vpop.f32.mrb[0].mxu0
      %v3060 = vadd.f32 0.0, %v3059
      %v3061 = vpop.f32.mrb[0].mxu0
      %3062 = vmatprep.mubr.f32.mxu0 0.0
      %3063 = vmatmul.mubr.f32.gmra.mrb[0].mxu0 %v2714
      %v3064 = vpop.f32.mrb[0].mxu0
      %v3065 = vadd.f32 0.0, %v3064
      %v3066 = vpop.f32.mrb[0].mxu0
      %3067 = vmatprep.mubr.f32.mxu0 0.0
      %3068 = vmatmul.mubr.f32.gmra.mrb[0].mxu0 %v2715
      %v3069 = vpop.f32.mrb[0].mxu0
      %v3070 = vadd.f32 0.0, %v3069
      %v3071 = vpop.f32.mrb[0].mxu0
      %3072 = vmatprep.mubr.f32.mxu0 0.0
      %3073 = vmatmul.mubr.f32.gmra.mrb[0].mxu0 %v2716
      %v3074 = vpop.f32.mrb[0].mxu0
      %v3075 = vadd.f32 0.0, %v3074
      %v3076 = vpop.f32.mrb[0].mxu0
      %3077 = vmatprep.mubr.f32.mxu0 0.0
      %3078 = vmatmul.mubr.f32.gmra.mrb[0].mxu0 %v2717
      %v3079 = vpop.f32.mrb[0].mxu0
      %v3080 = vadd.f32 0.0, %v3079
      %v3081 = vpop.f32.mrb[0].mxu0
      %3082 = vmatprep.mubr.f32.mxu0 0.0
      %3083 = vmatmul.mubr.f32.gmra.mrb[0].mxu0 %v2718
      %v3084 = vpop.f32.mrb[0].mxu0
      %v3085 = vadd.f32 0.0, %v3084
      %v3086 = vpop.f32.mrb[0].mxu0
      %3087 = vmatprep.mubr.f32.mxu0 0.0
      %3088 = vmatmul.mubr.f32.gmra.mrb[0].mxu0 %v2719
      %v3089 = vpop.f32.mrb[0].mxu0
      %v3090 = vadd.f32 0.0, %v3089
      %v3091 = vpop.f32.mrb[0].mxu0
      %3092 = vmatprep.mubr.f32.mxu0 0.0
      %3093 = vmatmul.mubr.f32.gmra.mrb[0].mxu0 %v2720
      %v3094 = vpop.f32.mrb[0].mxu0
      %v3095 = vadd.f32 0.0, %v3094
      %v3096 = vpop.f32.mrb[0].mxu0
      %3097 = vmatprep.mubr.f32.mxu0 0.0
      %3098 = vmatmul.mubr.f32.gmra.mrb[0].mxu0 %v2721
      %v3099 = vpop.f32.mrb[0].mxu0
      %v3100 = vadd.f32 0.0, %v3099
      %v3101 = vpop.f32.mrb[0].mxu0
      %3102 = vmatprep.mubr.f32.mxu0 0.0
      %3103 = vmatmul.mubr.f32.gmra.mrb[0].mxu0 %v2722
      %v3104 = vpop.f32.mrb[0].mxu0
      %v3105 = vadd.f32 0.0, %v3104
      %v3106 = vpop.f32.mrb[0].mxu0
      %3107 = vmatprep.mubr.f32.mxu0 0.0
      %3108 = vmatmul.mubr.f32.gmra.mrb[0].mxu0 %v2723
      %v3109 = vpop.f32.mrb[0].mxu0
      %v3110 = vadd.f32 0.0, %v3109
      %v3111 = vpop.f32.mrb[0].mxu0
      %3112 = vmatprep.mubr.f32.mxu0 0.0
      %3113 = vmatmul.mubr.f32.gmra.mrb[0].mxu0 %v2724
      %v3114 = vpop.f32.mrb[0].mxu0
      %v3115 = vadd.f32 0.0, %v3114
      %v3116 = vpop.f32.mrb[0].mxu0
      %3117 = vmatprep.mubr.f32.mxu0 0.0
      %3118 = vmatmul.mubr.f32.gmra.mrb[0].mxu0 %v2725
      %v3119 = vpop.f32.mrb[0].mxu0
      %v3120 = vadd.f32 0.0, %v3119
      %v3121 = vpop.f32.mrb[0].mxu0
      %3122 = vmatprep.mubr.f32.mxu0 0.0
      %3123 = vmatmul.mubr.f32.gmra.mrb[0].mxu0 %v2726
      %v3124 = vpop.f32.mrb[0].mxu0
      %v3125 = vadd.f32 0.0, %v3124
      %v3126 = vpop.f32.mrb[0].mxu0
      %3127 = vmatprep.mubr.f32.mxu0 0.0
      %3128 = vmatmul.mubr.f32.gmra.mrb[0].mxu0 %v2727
      %v3129 = vpop.f32.mrb[0].mxu0
      %v3130 = vadd.f32 0.0, %v3129
      %v3131 = vpop.f32.mrb[0].mxu0
      %3132 = vmatprep.mubr.f32.mxu0 0.0
      %3133 = vmatmul.mubr.f32.gmra.mrb[0].mxu0 %v2728
      %v3134 = vpop.f32.mrb[0].mxu0
      %v3135 = vadd.f32 0.0, %v3134
      %v3136 = vpop.f32.mrb[0].mxu0
      %3137 = vmatprep.mubr.f32.mxu0 0.0
      %3138 = vmatmul.mubr.f32.gmra.mrb[0].mxu0 %v2729
      %v3139 = vpop.f32.mrb[0].mxu0
      %v3140 = vadd.f32 0.0, %v3139
      %v3141 = vpop.f32.mrb[0].mxu0
      %3142 = vmatprep.mubr.f32.mxu0 0.0
      %3143 = vmatmul.mubr.f32.gmra.mrb[0].mxu0 %v2730
      %v3144 = vpop.f32.mrb[0].mxu0
      %v3145 = vadd.f32 0.0, %v3144
      %v3146 = vpop.f32.mrb[0].mxu0
      %3147 = vmatprep.mubr.f32.mxu0 0.0
      %3148 = vmatmul.mubr.f32.gmra.mrb[0].mxu0 %v2731
      %v3149 = vpop.f32.mrb[0].mxu0
      %v3150 = vadd.f32 0.0, %v3149
      %v3151 = vpop.f32.mrb[0].mxu0
      %3152 = vmatprep.mubr.f32.mxu0 0.0
      %3153 = vmatmul.mubr.f32.gmra.mrb[0].mxu0 %v2732
      %v3154 = vpop.f32.mrb[0].mxu0
      %v3155 = vadd.f32 0.0, %v3154
      %v3156 = vpop.f32.mrb[0].mxu0
      %3157 = vmatprep.mubr.f32.mxu0 0.0
      %3158 = vmatmul.mubr.f32.gmra.mrb[0].mxu0 %v2733
      %v3159 = vpop.f32.mrb[0].mxu0
      %v3160 = vadd.f32 0.0, %v3159
      %v3161 = vpop.f32.mrb[0].mxu0
      %3162 = vmatprep.mubr.f32.mxu0 0.0
      %3163 = vmatmul.mubr.f32.gmra.mrb[0].mxu0 %v2734
      %v3164 = vpop.f32.mrb[0].mxu0
      %v3165 = vadd.f32 0.0, %v3164
      %v3166 = vpop.f32.mrb[0].mxu0
      %3167 = vmatprep.mubr.f32.mxu0 0.0
      %3168 = vmatmul.mubr.f32.gmra.mrb[0].mxu0 %v2735
      %v3169 = vpop.f32.mrb[0].mxu0
      %v3170 = vadd.f32 0.0, %v3169
      %v3171 = vpop.f32.mrb[0].mxu0
      %3172 = vmatprep.mubr.f32.mxu0 0.0
      %3173 = vmatmul.mubr.f32.gmra.mrb[0].mxu0 %v2736
      %v3174 = vpop.f32.mrb[0].mxu0
      %v3175 = vadd.f32 0.0, %v3174
      %v3176 = vpop.f32.mrb[0].mxu0
      %3177 = vmatprep.mubr.f32.mxu0 0.0
      %3178 = vmatmul.mubr.f32.gmra.mrb[0].mxu0 %v2737
      %v3179 = vpop.f32.mrb[0].mxu0
      %v3180 = vadd.f32 0.0, %v3179
      %v3181 = vpop.f32.mrb[0].mxu0
      %3182 = vmatprep.mubr.f32.mxu0 0.0
      %3183 = vmatmul.mubr.f32.gmra.mrb[0].mxu0 %v2738
      %v3184 = vpop.f32.mrb[0].mxu0
      %v3185 = vadd.f32 0.0, %v3184
      %v3186 = vpop.f32.mrb[0].mxu0
      %3187 = vmatprep.mubr.f32.mxu0 0.0
      %3188 = vmatmul.mubr.f32.gmra.mrb[0].mxu0 %v2739
      %v3189 = vpop.f32.mrb[0].mxu0
      %v3190 = vadd.f32 0.0, %v3189
      %v3191 = vpop.f32.mrb[0].mxu0
      %3192 = vmatprep.mubr.f32.mxu0 0.0
      %3193 = vmatmul.mubr.f32.gmra.mrb[0].mxu0 %v2740
      %v3194 = vpop.f32.mrb[0].mxu0
      %v3195 = vadd.f32 0.0, %v3194
      %v3196 = vpop.f32.mrb[0].mxu0
      %3197 = vmatprep.mubr.f32.mxu0 0.0
      %3198 = vmatmul.mubr.f32.gmra.mrb[0].mxu0 %v2741
      %v3199 = vpop.f32.mrb[0].mxu0
      %v3200 = vadd.f32 0.0, %v3199
      %v3201 = vpop.f32.mrb[0].mxu0
      %3202 = vmatprep.mubr.f32.mxu0 0.0
      %3203 = vmatmul.mubr.f32.gmra.mrb[0].mxu0 %v2742
      %v3204 = vpop.f32.mrb[0].mxu0
      %v3205 = vadd.f32 0.0, %v3204
      %v3206 = vpop.f32.mrb[0].mxu0
      %3207 = vdwg.mxu0
      %v3208 = vadd.f32 %v2743, %v2890
      %v3209 = vadd.f32 %v2744, %v2895
      %v3210 = vadd.f32 %v2745, %v2900
      %v3211 = vadd.f32 %v2746, %v2905
      %v3212 = vadd.f32 %v2747, %v2910
      %v3213 = vadd.f32 %v2748, %v2915
      %v3214 = vadd.f32 %v2749, %v2920
      %v3215 = vadd.f32 %v2750, %v2925
      %v3216 = vadd.f32 %v2751, %v2930
      %v3217 = vadd.f32 %v2752, %v2935
      %v3218 = vadd.f32 %v2753, %v2940
      %v3219 = vadd.f32 %v2754, %v2945
      %v3220 = vadd.f32 %v2755, %v2950
      %v3221 = vadd.f32 %v2756, %v2955
      %v3222 = vadd.f32 %v2757, %v2960
      %v3223 = vadd.f32 %v2758, %v2965
      %v3224 = vadd.f32 %v2759, %v2970
      %v3225 = vadd.f32 %v2760, %v2975
      %v3226 = vadd.f32 %v2761, %v2980
      %v3227 = vadd.f32 %v2762, %v2985
      %v3228 = vadd.f32 %v2763, %v2990
      %v3229 = vadd.f32 %v2764, %v2995
      %v3230 = vadd.f32 %v2765, %v3000
      %v3231 = vadd.f32 %v2766, %v3005
      %v3232 = vadd.f32 %v2767, %v3010
      %v3233 = vadd.f32 %v2768, %v3015
      %v3234 = vadd.f32 %v2769, %v3020
      %v3235 = vadd.f32 %v2770, %v3025
      %v3236 = vadd.f32 %v2771, %v3030
      %v3237 = vadd.f32 %v2772, %v3035
      %v3238 = vadd.f32 %v2773, %v3040
      %v3239 = vadd.f32 %v2774, %v3045
      %v3240 = vadd.f32 %v2775, %v3050
      %v3241 = vadd.f32 %v2776, %v3055
      %v3242 = vadd.f32 %v2777, %v3060
      %v3243 = vadd.f32 %v2778, %v3065
      %v3244 = vadd.f32 %v2779, %v3070
      %v3245 = vadd.f32 %v2780, %v3075
      %v3246 = vadd.f32 %v2781, %v3080
      %v3247 = vadd.f32 %v2782, %v3085
      %v3248 = vadd.f32 %v2783, %v3090
      %v3249 = vadd.f32 %v2784, %v3095
      %v3250 = vadd.f32 %v2785, %v3100
      %v3251 = vadd.f32 %v2786, %v3105
      %v3252 = vadd.f32 %v2787, %v3110
      %v3253 = vadd.f32 %v2788, %v3115
      %v3254 = vadd.f32 %v2789, %v3120
      %v3255 = vadd.f32 %v2790, %v3125
      %v3256 = vadd.f32 %v2791, %v3130
      %v3257 = vadd.f32 %v2792, %v3135
      %v3258 = vadd.f32 %v2793, %v3140
      %v3259 = vadd.f32 %v2794, %v3145
      %v3260 = vadd.f32 %v2795, %v3150
      %v3261 = vadd.f32 %v2796, %v3155
      %v3262 = vadd.f32 %v2797, %v3160
      %v3263 = vadd.f32 %v2798, %v3165
      %v3264 = vadd.f32 %v2799, %v3170
      %v3265 = vadd.f32 %v2800, %v3175
      %v3266 = vadd.f32 %v2801, %v3180
      %v3267 = vadd.f32 %v2802, %v3185
      %v3268 = vadd.f32 %v2803, %v3190
      %v3269 = vadd.f32 %v2804, %v3195
      %v3270 = vadd.f32 %v2805, %v3200
      %v3271 = vadd.f32 %v2806, %v3205
      %3272 = vst.msk [vmem:[#allocation2] sm:$0xff] %vm437, %v3208
      %3273 = vst.msk [vmem:[#allocation2 + $0x8] sm:$0xff] %vm437, %v3209
      %3274 = vst.msk [vmem:[#allocation2 + $0x10] sm:$0xff] %vm437, %v3210
      %3275 = vst.msk [vmem:[#allocation2 + $0x18] sm:$0xff] %vm437, %v3211
      %3276 = vst.msk [vmem:[#allocation2 + $0x20] sm:$0xff] %vm437, %v3212
      %3277 = vst.msk [vmem:[#allocation2 + $0x28] sm:$0xff] %vm437, %v3213
      %3278 = vst.msk [vmem:[#allocation2 + $0x30] sm:$0xff] %vm437, %v3214
      %3279 = vst.msk [vmem:[#allocation2 + $0x38] sm:$0xff] %vm437, %v3215
      %3280 = vst.msk [vmem:[#allocation2 + $0x40] sm:$0xff] %vm437, %v3216
      %3281 = vst.msk [vmem:[#allocation2 + $0x48] sm:$0xff] %vm437, %v3217
      %3282 = vst.msk [vmem:[#allocation2 + $0x50] sm:$0xff] %vm437, %v3218
      %3283 = vst.msk [vmem:[#allocation2 + $0x58] sm:$0xff] %vm437, %v3219
      %3284 = vst.msk [vmem:[#allocation2 + $0x60] sm:$0xff] %vm437, %v3220
      %3285 = vst.msk [vmem:[#allocation2 + $0x68] sm:$0xff] %vm437, %v3221
      %3286 = vst.msk [vmem:[#allocation2 + $0x70] sm:$0xff] %vm437, %v3222
      %3287 = vst.msk [vmem:[#allocation2 + $0x78] sm:$0xff] %vm437, %v3223
      %3288 = vst.msk [vmem:[#allocation2 + $0x80] sm:$0xff] %vm437, %v3224
      %3289 = vst.msk [vmem:[#allocation2 + $0x88] sm:$0xff] %vm437, %v3225
      %3290 = vst.msk [vmem:[#allocation2 + $0x90] sm:$0xff] %vm437, %v3226
      %3291 = vst.msk [vmem:[#allocation2 + $0x98] sm:$0xff] %vm437, %v3227
      %3292 = vst.msk [vmem:[#allocation2 + $0xa0] sm:$0xff] %vm437, %v3228
      %3293 = vst.msk [vmem:[#allocation2 + $0xa8] sm:$0xff] %vm437, %v3229
      %3294 = vst.msk [vmem:[#allocation2 + $0xb0] sm:$0xff] %vm437, %v3230
      %3295 = vst.msk [vmem:[#allocation2 + $0xb8] sm:$0xff] %vm437, %v3231
      %3296 = vst.msk [vmem:[#allocation2 + $0xc0] sm:$0xff] %vm437, %v3232
      %3297 = vst.msk [vmem:[#allocation2 + $0xc8] sm:$0xff] %vm437, %v3233
      %3298 = vst.msk [vmem:[#allocation2 + $0xd0] sm:$0xff] %vm437, %v3234
      %3299 = vst.msk [vmem:[#allocation2 + $0xd8] sm:$0xff] %vm437, %v3235
      %3300 = vst.msk [vmem:[#allocation2 + $0xe0] sm:$0xff] %vm437, %v3236
      %3301 = vst.msk [vmem:[#allocation2 + $0xe8] sm:$0xff] %vm437, %v3237
      %3302 = vst.msk [vmem:[#allocation2 + $0xf0] sm:$0xff] %vm437, %v3238
      %3303 = vst.msk [vmem:[#allocation2 + $0xf8] sm:$0xff] %vm437, %v3239
      %3304 = vst.msk [vmem:[#allocation2 + $0x100] sm:$0xff] %vm437, %v3240
      %3305 = vst.msk [vmem:[#allocation2 + $0x108] sm:$0xff] %vm437, %v3241
      %3306 = vst.msk [vmem:[#allocation2 + $0x110] sm:$0xff] %vm437, %v3242
      %3307 = vst.msk [vmem:[#allocation2 + $0x118] sm:$0xff] %vm437, %v3243
      %3308 = vst.msk [vmem:[#allocation2 + $0x120] sm:$0xff] %vm437, %v3244
      %3309 = vst.msk [vmem:[#allocation2 + $0x128] sm:$0xff] %vm437, %v3245
      %3310 = vst.msk [vmem:[#allocation2 + $0x130] sm:$0xff] %vm437, %v3246
      %3311 = vst.msk [vmem:[#allocation2 + $0x138] sm:$0xff] %vm437, %v3247
      %3312 = vst.msk [vmem:[#allocation2 + $0x140] sm:$0xff] %vm437, %v3248
      %3313 = vst.msk [vmem:[#allocation2 + $0x148] sm:$0xff] %vm437, %v3249
      %3314 = vst.msk [vmem:[#allocation2 + $0x150] sm:$0xff] %vm437, %v3250
      %3315 = vst.msk [vmem:[#allocation2 + $0x158] sm:$0xff] %vm437, %v3251
      %3316 = vst.msk [vmem:[#allocation2 + $0x160] sm:$0xff] %vm437, %v3252
      %3317 = vst.msk [vmem:[#allocation2 + $0x168] sm:$0xff] %vm437, %v3253
      %3318 = vst.msk [vmem:[#allocation2 + $0x170] sm:$0xff] %vm437, %v3254
      %3319 = vst.msk [vmem:[#allocation2 + $0x178] sm:$0xff] %vm437, %v3255
      %3320 = vst.msk [vmem:[#allocation2 + $0x180] sm:$0xff] %vm437, %v3256
      %3321 = vst.msk [vmem:[#allocation2 + $0x188] sm:$0xff] %vm437, %v3257
      %3322 = vst.msk [vmem:[#allocation2 + $0x190] sm:$0xff] %vm437, %v3258
      %3323 = vst.msk [vmem:[#allocation2 + $0x198] sm:$0xff] %vm437, %v3259
      %3324 = vst.msk [vmem:[#allocation2 + $0x1a0] sm:$0xff] %vm437, %v3260
      %3325 = vst.msk [vmem:[#allocation2 + $0x1a8] sm:$0xff] %vm437, %v3261
      %3326 = vst.msk [vmem:[#allocation2 + $0x1b0] sm:$0xff] %vm437, %v3262
      %3327 = vst.msk [vmem:[#allocation2 + $0x1b8] sm:$0xff] %vm437, %v3263
      %3328 = vst.msk [vmem:[#allocation2 + $0x1c0] sm:$0xff] %vm437, %v3264
      %3329 = vst.msk [vmem:[#allocation2 + $0x1c8] sm:$0xff] %vm437, %v3265
      %3330 = vst.msk [vmem:[#allocation2 + $0x1d0] sm:$0xff] %vm437, %v3266
      %3331 = vst.msk [vmem:[#allocation2 + $0x1d8] sm:$0xff] %vm437, %v3267
      %3332 = vst.msk [vmem:[#allocation2 + $0x1e0] sm:$0xff] %vm437, %v3268
      %3333 = vst.msk [vmem:[#allocation2 + $0x1e8] sm:$0xff] %vm437, %v3269
      %3334 = vst.msk [vmem:[#allocation2 + $0x1f0] sm:$0xff] %vm437, %v3270
      %3335 = vst.msk [vmem:[#allocation2 + $0x1f8] sm:$0xff] %vm437, %v3271
      // Predicated region
      $region45: #{tpu_custom_call.1} parent=39 // pred_check
        %p3336 = pneg %p293
      $region46: #{tpu_custom_call.1} parent=39 // pred_check_branch
        %3338 = sbr.rel (%p3336) target = $region48
      $region47: #{tpu_custom_call.1} parent=39 // pred_region
        %v3339 = vld [vmem:[#allocation2] sm:$0xff]
        %v3340 = vld [vmem:[#allocation2 + $0x8] sm:$0xff]
        %v3341 = vld [vmem:[#allocation2 + $0x10] sm:$0xff]
        %v3342 = vld [vmem:[#allocation2 + $0x18] sm:$0xff]
        %v3343 = vld [vmem:[#allocation2 + $0x20] sm:$0xff]
        %v3344 = vld [vmem:[#allocation2 + $0x28] sm:$0xff]
        %v3345 = vld [vmem:[#allocation2 + $0x30] sm:$0xff]
        %v3346 = vld [vmem:[#allocation2 + $0x38] sm:$0xff]
        %v3347 = vld [vmem:[#allocation2 + $0x40] sm:$0xff]
        %v3348 = vld [vmem:[#allocation2 + $0x48] sm:$0xff]
        %v3349 = vld [vmem:[#allocation2 + $0x50] sm:$0xff]
        %v3350 = vld [vmem:[#allocation2 + $0x58] sm:$0xff]
        %v3351 = vld [vmem:[#allocation2 + $0x60] sm:$0xff]
        %v3352 = vld [vmem:[#allocation2 + $0x68] sm:$0xff]
        %v3353 = vld [vmem:[#allocation2 + $0x70] sm:$0xff]
        %v3354 = vld [vmem:[#allocation2 + $0x78] sm:$0xff]
        %v3355 = vld [vmem:[#allocation2 + $0x80] sm:$0xff]
        %v3356 = vld [vmem:[#allocation2 + $0x88] sm:$0xff]
        %v3357 = vld [vmem:[#allocation2 + $0x90] sm:$0xff]
        %v3358 = vld [vmem:[#allocation2 + $0x98] sm:$0xff]
        %v3359 = vld [vmem:[#allocation2 + $0xa0] sm:$0xff]
        %v3360 = vld [vmem:[#allocation2 + $0xa8] sm:$0xff]
        %v3361 = vld [vmem:[#allocation2 + $0xb0] sm:$0xff]
        %v3362 = vld [vmem:[#allocation2 + $0xb8] sm:$0xff]
        %v3363 = vld [vmem:[#allocation2 + $0xc0] sm:$0xff]
        %v3364 = vld [vmem:[#allocation2 + $0xc8] sm:$0xff]
        %v3365 = vld [vmem:[#allocation2 + $0xd0] sm:$0xff]
        %v3366 = vld [vmem:[#allocation2 + $0xd8] sm:$0xff]
        %v3367 = vld [vmem:[#allocation2 + $0xe0] sm:$0xff]
        %v3368 = vld [vmem:[#allocation2 + $0xe8] sm:$0xff]
        %v3369 = vld [vmem:[#allocation2 + $0xf0] sm:$0xff]
        %v3370 = vld [vmem:[#allocation2 + $0xf8] sm:$0xff]
        %v3371 = vld [vmem:[#allocation2 + $0x100] sm:$0xff]
        %v3372 = vld [vmem:[#allocation2 + $0x108] sm:$0xff]
        %v3373 = vld [vmem:[#allocation2 + $0x110] sm:$0xff]
        %v3374 = vld [vmem:[#allocation2 + $0x118] sm:$0xff]
        %v3375 = vld [vmem:[#allocation2 + $0x120] sm:$0xff]
        %v3376 = vld [vmem:[#allocation2 + $0x128] sm:$0xff]
        %v3377 = vld [vmem:[#allocation2 + $0x130] sm:$0xff]
        %v3378 = vld [vmem:[#allocation2 + $0x138] sm:$0xff]
        %v3379 = vld [vmem:[#allocation2 + $0x140] sm:$0xff]
        %v3380 = vld [vmem:[#allocation2 + $0x148] sm:$0xff]
        %v3381 = vld [vmem:[#allocation2 + $0x150] sm:$0xff]
        %v3382 = vld [vmem:[#allocation2 + $0x158] sm:$0xff]
        %v3383 = vld [vmem:[#allocation2 + $0x160] sm:$0xff]
        %v3384 = vld [vmem:[#allocation2 + $0x168] sm:$0xff]
        %v3385 = vld [vmem:[#allocation2 + $0x170] sm:$0xff]
        %v3386 = vld [vmem:[#allocation2 + $0x178] sm:$0xff]
        %v3387 = vld [vmem:[#allocation2 + $0x180] sm:$0xff]
        %v3388 = vld [vmem:[#allocation2 + $0x188] sm:$0xff]
        %v3389 = vld [vmem:[#allocation2 + $0x190] sm:$0xff]
        %v3390 = vld [vmem:[#allocation2 + $0x198] sm:$0xff]
        %v3391 = vld [vmem:[#allocation2 + $0x1a0] sm:$0xff]
        %v3392 = vld [vmem:[#allocation2 + $0x1a8] sm:$0xff]
        %v3393 = vld [vmem:[#allocation2 + $0x1b0] sm:$0xff]
        %v3394 = vld [vmem:[#allocation2 + $0x1b8] sm:$0xff]
        %v3395 = vld [vmem:[#allocation2 + $0x1c0] sm:$0xff]
        %v3396 = vld [vmem:[#allocation2 + $0x1c8] sm:$0xff]
        %v3397 = vld [vmem:[#allocation2 + $0x1d0] sm:$0xff]
        %v3398 = vld [vmem:[#allocation2 + $0x1d8] sm:$0xff]
        %v3399 = vld [vmem:[#allocation2 + $0x1e0] sm:$0xff]
        %v3400 = vld [vmem:[#allocation2 + $0x1e8] sm:$0xff]
        %v3401 = vld [vmem:[#allocation2 + $0x1f0] sm:$0xff]
        %v3402 = vld [vmem:[#allocation2 + $0x1f8] sm:$0xff]
        %v3403 = vld [vmem:[%s4] sm:$0x1]
        %v3405 = vlaneseq
        %v3406 = vshrl.u32 %v3405, 7
        %v3407 = vsub.s32 0, %v3406
        %v3408 = vrot.slane %v3403, %v3407
        %v3410 = vadd.f32 %v3339, %v3408
        %v3411 = vadd.f32 %v3340, %v3408
        %v3412 = vadd.f32 %v3341, %v3408
        %v3413 = vadd.f32 %v3342, %v3408
        %v3414 = vadd.f32 %v3343, %v3408
        %v3415 = vadd.f32 %v3344, %v3408
        %v3416 = vadd.f32 %v3345, %v3408
        %v3417 = vadd.f32 %v3346, %v3408
        %v3418 = vadd.f32 %v3347, %v3408
        %v3419 = vadd.f32 %v3348, %v3408
        %v3420 = vadd.f32 %v3349, %v3408
        %v3421 = vadd.f32 %v3350, %v3408
        %v3422 = vadd.f32 %v3351, %v3408
        %v3423 = vadd.f32 %v3352, %v3408
        %v3424 = vadd.f32 %v3353, %v3408
        %v3425 = vadd.f32 %v3354, %v3408
        %v3426 = vadd.f32 %v3355, %v3408
        %v3427 = vadd.f32 %v3356, %v3408
        %v3428 = vadd.f32 %v3357, %v3408
        %v3429 = vadd.f32 %v3358, %v3408
        %v3430 = vadd.f32 %v3359, %v3408
        %v3431 = vadd.f32 %v3360, %v3408
        %v3432 = vadd.f32 %v3361, %v3408
        %v3433 = vadd.f32 %v3362, %v3408
        %v3434 = vadd.f32 %v3363, %v3408
        %v3435 = vadd.f32 %v3364, %v3408
        %v3436 = vadd.f32 %v3365, %v3408
        %v3437 = vadd.f32 %v3366, %v3408
        %v3438 = vadd.f32 %v3367, %v3408
        %v3439 = vadd.f32 %v3368, %v3408
        %v3440 = vadd.f32 %v3369, %v3408
        %v3441 = vadd.f32 %v3370, %v3408
        %v3442 = vadd.f32 %v3371, %v3408
        %v3443 = vadd.f32 %v3372, %v3408
        %v3444 = vadd.f32 %v3373, %v3408
        %v3445 = vadd.f32 %v3374, %v3408
        %v3446 = vadd.f32 %v3375, %v3408
        %v3447 = vadd.f32 %v3376, %v3408
        %v3448 = vadd.f32 %v3377, %v3408
        %v3449 = vadd.f32 %v3378, %v3408
        %v3450 = vadd.f32 %v3379, %v3408
        %v3451 = vadd.f32 %v3380, %v3408
        %v3452 = vadd.f32 %v3381, %v3408
        %v3453 = vadd.f32 %v3382, %v3408
        %v3454 = vadd.f32 %v3383, %v3408
        %v3455 = vadd.f32 %v3384, %v3408
        %v3456 = vadd.f32 %v3385, %v3408
        %v3457 = vadd.f32 %v3386, %v3408
        %v3458 = vadd.f32 %v3387, %v3408
        %v3459 = vadd.f32 %v3388, %v3408
        %v3460 = vadd.f32 %v3389, %v3408
        %v3461 = vadd.f32 %v3390, %v3408
        %v3462 = vadd.f32 %v3391, %v3408
        %v3463 = vadd.f32 %v3392, %v3408
        %v3464 = vadd.f32 %v3393, %v3408
        %v3465 = vadd.f32 %v3394, %v3408
        %v3466 = vadd.f32 %v3395, %v3408
        %v3467 = vadd.f32 %v3396, %v3408
        %v3468 = vadd.f32 %v3397, %v3408
        %v3469 = vadd.f32 %v3398, %v3408
        %v3470 = vadd.f32 %v3399, %v3408
        %v3471 = vadd.f32 %v3400, %v3408
        %v3472 = vadd.f32 %v3401, %v3408
        %v3473 = vadd.f32 %v3402, %v3408
        %3474 = vst.msk [vmem:[%s291] sm:$0xff] %vm437, %v3410
        %3475 = vst.msk [vmem:[%s291 + $0x8] sm:$0xff] %vm437, %v3411
        %3476 = vst.msk [vmem:[%s291 + $0x10] sm:$0xff] %vm437, %v3412
        %3477 = vst.msk [vmem:[%s291 + $0x18] sm:$0xff] %vm437, %v3413
        %3478 = vst.msk [vmem:[%s291 + $0x20] sm:$0xff] %vm437, %v3414
        %3479 = vst.msk [vmem:[%s291 + $0x28] sm:$0xff] %vm437, %v3415
        %3480 = vst.msk [vmem:[%s291 + $0x30] sm:$0xff] %vm437, %v3416
        %3481 = vst.msk [vmem:[%s291 + $0x38] sm:$0xff] %vm437, %v3417
        %3482 = vst.msk [vmem:[%s291 + $0x40] sm:$0xff] %vm437, %v3418
        %3483 = vst.msk [vmem:[%s291 + $0x48] sm:$0xff] %vm437, %v3419
        %3484 = vst.msk [vmem:[%s291 + $0x50] sm:$0xff] %vm437, %v3420
        %3485 = vst.msk [vmem:[%s291 + $0x58] sm:$0xff] %vm437, %v3421
        %3486 = vst.msk [vmem:[%s291 + $0x60] sm:$0xff] %vm437, %v3422
        %3487 = vst.msk [vmem:[%s291 + $0x68] sm:$0xff] %vm437, %v3423
        %3488 = vst.msk [vmem:[%s291 + $0x70] sm:$0xff] %vm437, %v3424
        %3489 = vst.msk [vmem:[%s291 + $0x78] sm:$0xff] %vm437, %v3425
        %3490 = vst.msk [vmem:[%s291 + $0x80] sm:$0xff] %vm437, %v3426
        %3491 = vst.msk [vmem:[%s291 + $0x88] sm:$0xff] %vm437, %v3427
        %3492 = vst.msk [vmem:[%s291 + $0x90] sm:$0xff] %vm437, %v3428
        %3493 = vst.msk [vmem:[%s291 + $0x98] sm:$0xff] %vm437, %v3429
        %3494 = vst.msk [vmem:[%s291 + $0xa0] sm:$0xff] %vm437, %v3430
        %3495 = vst.msk [vmem:[%s291 + $0xa8] sm:$0xff] %vm437, %v3431
        %3496 = vst.msk [vmem:[%s291 + $0xb0] sm:$0xff] %vm437, %v3432
        %3497 = vst.msk [vmem:[%s291 + $0xb8] sm:$0xff] %vm437, %v3433
        %3498 = vst.msk [vmem:[%s291 + $0xc0] sm:$0xff] %vm437, %v3434
        %3499 = vst.msk [vmem:[%s291 + $0xc8] sm:$0xff] %vm437, %v3435
        %3500 = vst.msk [vmem:[%s291 + $0xd0] sm:$0xff] %vm437, %v3436
        %3501 = vst.msk [vmem:[%s291 + $0xd8] sm:$0xff] %vm437, %v3437
        %3502 = vst.msk [vmem:[%s291 + $0xe0] sm:$0xff] %vm437, %v3438
        %3503 = vst.msk [vmem:[%s291 + $0xe8] sm:$0xff] %vm437, %v3439
        %3504 = vst.msk [vmem:[%s291 + $0xf0] sm:$0xff] %vm437, %v3440
        %3505 = vst.msk [vmem:[%s291 + $0xf8] sm:$0xff] %vm437, %v3441
        %3506 = vst.msk [vmem:[%s291 + $0x100] sm:$0xff] %vm437, %v3442
        %3507 = vst.msk [vmem:[%s291 + $0x108] sm:$0xff] %vm437, %v3443
        %3508 = vst.msk [vmem:[%s291 + $0x110] sm:$0xff] %vm437, %v3444
        %3509 = vst.msk [vmem:[%s291 + $0x118] sm:$0xff] %vm437, %v3445
        %3510 = vst.msk [vmem:[%s291 + $0x120] sm:$0xff] %vm437, %v3446
        %3511 = vst.msk [vmem:[%s291 + $0x128] sm:$0xff] %vm437, %v3447
        %3512 = vst.msk [vmem:[%s291 + $0x130] sm:$0xff] %vm437, %v3448
        %3513 = vst.msk [vmem:[%s291 + $0x138] sm:$0xff] %vm437, %v3449
        %3514 = vst.msk [vmem:[%s291 + $0x140] sm:$0xff] %vm437, %v3450
        %3515 = vst.msk [vmem:[%s291 + $0x148] sm:$0xff] %vm437, %v3451
        %3516 = vst.msk [vmem:[%s291 + $0x150] sm:$0xff] %vm437, %v3452
        %3517 = vst.msk [vmem:[%s291 + $0x158] sm:$0xff] %vm437, %v3453
        %3518 = vst.msk [vmem:[%s291 + $0x160] sm:$0xff] %vm437, %v3454
        %3519 = vst.msk [vmem:[%s291 + $0x168] sm:$0xff] %vm437, %v3455
        %3520 = vst.msk [vmem:[%s291 + $0x170] sm:$0xff] %vm437, %v3456
        %3521 = vst.msk [vmem:[%s291 + $0x178] sm:$0xff] %vm437, %v3457
        %3522 = vst.msk [vmem:[%s291 + $0x180] sm:$0xff] %vm437, %v3458
        %3523 = vst.msk [vmem:[%s291 + $0x188] sm:$0xff] %vm437, %v3459
        %3524 = vst.msk [vmem:[%s291 + $0x190] sm:$0xff] %vm437, %v3460
        %3525 = vst.msk [vmem:[%s291 + $0x198] sm:$0xff] %vm437, %v3461
        %3526 = vst.msk [vmem:[%s291 + $0x1a0] sm:$0xff] %vm437, %v3462
        %3527 = vst.msk [vmem:[%s291 + $0x1a8] sm:$0xff] %vm437, %v3463
        %3528 = vst.msk [vmem:[%s291 + $0x1b0] sm:$0xff] %vm437, %v3464
        %3529 = vst.msk [vmem:[%s291 + $0x1b8] sm:$0xff] %vm437, %v3465
        %3530 = vst.msk [vmem:[%s291 + $0x1c0] sm:$0xff] %vm437, %v3466
        %3531 = vst.msk [vmem:[%s291 + $0x1c8] sm:$0xff] %vm437, %v3467
        %3532 = vst.msk [vmem:[%s291 + $0x1d0] sm:$0xff] %vm437, %v3468
        %3533 = vst.msk [vmem:[%s291 + $0x1d8] sm:$0xff] %vm437, %v3469
        %3534 = vst.msk [vmem:[%s291 + $0x1e0] sm:$0xff] %vm437, %v3470
        %3535 = vst.msk [vmem:[%s291 + $0x1e8] sm:$0xff] %vm437, %v3471
        %3536 = vst.msk [vmem:[%s291 + $0x1f0] sm:$0xff] %vm437, %v3472
        %3537 = vst.msk [vmem:[%s291 + $0x1f8] sm:$0xff] %vm437, %v3473
      $region48: #{tpu_custom_call.1} parent=39 // pred_fallthru
        _
      %s3538 = smul.u32 64, %s20
      %p3539 = scmp.lt.s32.totalorder %s3538, 127
      %s3540 = scalar_select %p3539, %s3538, 127
      %s3541 = smul.addr %s3540, 8
      %s3542 = scalar_lea.vmem %s5, %s3541
      // Predicated region
      $region49: #{tpu_custom_call.1} parent=39 // pred_check
        %p3543 = pneg %p171
      $region50: #{tpu_custom_call.1} parent=39 // pred_check_branch
        %3545 = sbr.rel (%p3543) target = $region52
      $region51: #{tpu_custom_call.1} parent=39 // pred_region
        %s3546 = smul.u32 64, %s20
      $region52: #{tpu_custom_call.1} parent=39 // pred_fallthru
        _
    $region40: #{tpu_custom_call.1} parent=5 // pred_fallthru
      _
    %p3547 = scmp.le.s32.totalorder 2, %s11
    // Predicated region
    $region53: #{tpu_custom_call.1} parent=5 // pred_check
      %p3548 = pneg %p3547
    $region54: #{tpu_custom_call.1} parent=5 // pred_check_branch
      %3550 = sbr.rel (%p3548) target = $region56
    $region55: #{tpu_custom_call.1} parent=5 // pred_region
      %s3551 = ssub.s32 %s11, 2
      // Predicated region
      $region57: #{tpu_custom_call.1} parent=55 // pred_check
        %p3552 = pneg %p177
      $region58: #{tpu_custom_call.1} parent=55 // pred_check_branch
        %3554 = sbr.rel (%p3552) target = $region60
      $region59: #{tpu_custom_call.1} parent=55 // pred_region
        %s3555 = smul.u32 64, %s22
        %p3556 = scmp.lt.s32.totalorder %s3555, 127
        %s3557 = scalar_select %p3556, %s3555, 127
        %s3558 = smul.addr %s3557, 8
        %s3559 = scalar_lea.vmem %s5, %s3558
      $region60: #{tpu_custom_call.1} parent=55 // pred_fallthru
        _
    $region56: #{tpu_custom_call.1} parent=5 // pred_fallthru
      _
  $region6: #{tpu_custom_call.1} parent=0 // loop_footer
    %s15 = sadd.s32 1, %s11
  $region7: #{tpu_custom_call.1} parent=0 // loop_footer_branch
    %10 = sbr.rel target = $region3
  $region8: #{tpu_custom_call.1} parent=0 // loop_exit
    _

</llo_original>
